<compile_context>
chip_gen: v7x
topology: tpu7x:2x2x1
jax: 0.10.0
libtpu: 0.0.40
codegen_flags: <defaults>
</compile_context>

<pallas_src>
import functools

import numpy as np

import jax
import jax.numpy as jnp
from jax.experimental import pallas as pl
from jax.experimental.pallas import tpu as pltpu


# ----------------------------------------------------------------------------
# Fused kernel: project -> (expand) -> depthwise KxK -> pointwise, all in VMEM.
# Activations are kept as (C, H*W) with H*W on lanes.
# ----------------------------------------------------------------------------
def _fused_ppm_kernel(x_ref, masks_ref, *rest, H, W, K, has_expand):
    if has_expand:
        (wp_ref, bp_ref, we_ref, be_ref,
         wd_ref, bd_ref, wl_ref, bl_ref, o_ref) = rest
    else:
        (wp_ref, bp_ref,
         wd_ref, bd_ref, wl_ref, bl_ref, o_ref) = rest
        we_ref = be_ref = None

    HW = H * W
    pad = K // 2

    def conv1x1(w_ref, b_ref, act):
        # w_ref: (Ci, Co, 1) with BN scale folded in, b_ref: (Co, 1),
        # act: (Ci, HW).  Channel widths are tiny, so this is done as Ci
        # VPU broadcast-multiply-accumulates (exact f32) instead of a
        # degenerate MXU matmul.
        ci, co, _ = w_ref.shape
        acc = jnp.zeros((co, HW), jnp.float32)
        for c in range(ci):
            acc = acc + w_ref[c] * act[c:c + 1, :]   # (Co,1)*(1,HW) -> (Co,HW)
        return acc + b_ref[...]

    x = x_ref[0].astype(jnp.float32)                      # (Cin, HW)

    # --- project: 1x1 conv (+ folded BN) + ReLU6 ---
    y = jnp.clip(conv1x1(wp_ref, bp_ref, x), 0.0, 6.0)    # (Cout, HW)

    # --- inverted bottleneck: 1x1 conv (+ folded BN) + ReLU6 ---
    if has_expand:
        y = jnp.clip(conv1x1(we_ref, be_ref, y), 0.0, 6.0)  # (Cmid, HW)

    # --- depthwise KxK, stride 1, 'same' zero padding via roll + border mask ---
    # out(h, w) = sum_{kh,kw} w(kh,kw,c) * in(h+kh-pad, w+kw-pad)
    # On the flattened spatial axis the tap offset is d = (kh-pad)*W + (kw-pad);
    # pltpu.roll(y, -d) brings in[i+d] to lane i, and the precomputed mask zeroes
    # the taps that fall into the zero padding (including row wrap-around).
    acc = jnp.zeros_like(y)
    for kh in range(K):
        for kw in range(K):
            kk = kh * K + kw
            d = (kh - pad) * W + (kw - pad)
            tap = y if d == 0 else pltpu.roll(y, shift=(-d) % HW, axis=1)
            acc = acc + tap * masks_ref[kk] * wd_ref[kk]   # (1,HW) and (Cmid,1) bcasts
    y = jnp.clip(acc + bd_ref[...], 0.0, 6.0)              # (Cmid, HW)

    # --- point_linear: 1x1 conv (+ folded BN), no activation ---
    out = conv1x1(wl_ref, bl_ref, y)                       # (Cout, HW)
    o_ref[0] = out.astype(o_ref.dtype)                     # lane-dense, NCHW-flat


# ----------------------------------------------------------------------------
# Wrapper: fold BN, lay out weights/masks, launch the fused kernel.
# ----------------------------------------------------------------------------
def _fold_bn(w, bn, eps=1e-5):
    """Fold inference BN (gamma,beta,mean,var) into conv weight rows (per out-ch)."""
    gamma, beta, mean, var = bn
    scale = gamma / jnp.sqrt(var + eps)
    return w * scale[:, None], (beta - mean * scale)[:, None]


def _depthwise_border_masks(H, W, K):
    """(K*K, 1, H*W) f32: 1 where the depthwise tap reads inside the image."""
    pad = K // 2
    hh, ww = np.meshgrid(np.arange(H), np.arange(W), indexing="ij")
    rows = []
    for kh in range(K):
        for kw in range(K):
            dh, dw = kh - pad, kw - pad
            valid = ((hh + dh >= 0) & (hh + dh < H) &
                     (ww + dw >= 0) & (ww + dw < W))
            rows.append(valid.reshape(-1))
    return jnp.asarray(np.stack(rows).astype(np.float32))[:, None, :]


def ppm_out_conv_forward(x_nchw, params, *, kernel_size=3, stride=1, expand_ratio=6):
    assert stride == 1, "TODO(synk): stride > 1 depthwise path not implemented"
    assert kernel_size > 1 and kernel_size % 2 == 1, \
        "TODO(synk): kernel_size == 1 (project-only) path not implemented"

    N, Cin, H, W = x_nchw.shape
    HW = H * W
    has_expand = expand_ratio > 1

    # Fold BN scale into the conv weights; keep only the shift as a bias.
    wp, bp = _fold_bn(params["w_proj"], params["bn_proj"])   # (Cout, Cin), (Cout,1)
    wd, bd = _fold_bn(params["w_dw"], params["bn_dw"])       # (Cmid, K*K), (Cmid,1)
    wl, bl = _fold_bn(params["w_pw"], params["bn_pw"])       # (Cout, Cmid), (Cout,1)
    Cout = wp.shape[0]

    # Kernel-friendly layouts: 1x1 weights as (Ci, Co, 1) so a leading index gives
    # a (Co,1) column; depthwise weights as (K*K, Cmid, 1) per tap.
    wp_k = jnp.transpose(wp, (1, 0))[:, :, None]
    wd_k = jnp.transpose(wd, (1, 0))[:, :, None]
    wl_k = jnp.transpose(wl, (1, 0))[:, :, None]
    masks = _depthwise_border_masks(H, W, kernel_size)        # (K*K, 1, HW)

    # Free reshape: stays NCHW-contiguous, spatial flattened onto lanes.
    x_flat = x_nchw.reshape(N, Cin, HW).astype(jnp.float32)

    operands = [x_flat, masks, wp_k, bp]
    in_specs = [
        pl.BlockSpec((1, Cin, HW), lambda n: (n, 0, 0)),
        pl.BlockSpec(masks.shape, lambda n: (0, 0, 0)),
        pl.BlockSpec(wp_k.shape, lambda n: (0, 0, 0)),
        pl.BlockSpec(bp.shape, lambda n: (0, 0)),
    ]
    if has_expand:
        we, be = _fold_bn(params["w_exp"], params["bn_exp"])  # (Cmid, Cout), (Cmid,1)
        we_k = jnp.transpose(we, (1, 0))[:, :, None]
        operands += [we_k, be]
        in_specs += [pl.BlockSpec(we_k.shape, lambda n: (0, 0, 0)),
                     pl.BlockSpec(be.shape, lambda n: (0, 0))]
    operands += [wd_k, bd, wl_k, bl]
    in_specs += [pl.BlockSpec(wd_k.shape, lambda n: (0, 0, 0)),
                 pl.BlockSpec(bd.shape, lambda n: (0, 0)),
                 pl.BlockSpec(wl_k.shape, lambda n: (0, 0, 0)),
                 pl.BlockSpec(bl.shape, lambda n: (0, 0))]

    kernel = functools.partial(_fused_ppm_kernel, H=H, W=W, K=kernel_size,
                               has_expand=has_expand)

    out_flat = pl.pallas_call(
        kernel,
        out_shape=jax.ShapeDtypeStruct((N, Cout, HW), jnp.float32),
        grid_spec=pltpu.PrefetchScalarGridSpec(
            num_scalar_prefetch=0,
            grid=(N,),
            in_specs=in_specs,
            out_specs=pl.BlockSpec((1, Cout, HW), lambda n: (n, 0, 0)),
        ),
        compiler_params=pltpu.CompilerParams(
            dimension_semantics=("parallel",)),
    )(*operands)

    return out_flat.reshape(N, Cout, H, W)   # free reshape back to NCHW


# ----------------------------------------------------------------------------
# Pure-JAX reference (unfused, BN applied explicitly) for correctness check.
# 1x1 convs are explicit broadcast-sums so both paths are exact f32.
# ----------------------------------------------------------------------------
def _reference_forward(x_nchw, params, *, kernel_size=3, expand_ratio=6, eps=1e-5):
    def bn(x, bn_params):
        g, b, m, v = bn_params
        s = g / jnp.sqrt(v + eps)
        return x * s[None, :, None, None] + (b - m * s)[None, :, None, None]

    def conv1x1(x, w):  # x: (N, Ci, H, W), w: (Co, Ci)
        return jnp.sum(w[None, :, :, None, None] * x[:, None, :, :, :], axis=2)

    x = x_nchw.astype(jnp.float32)
    x = jnp.clip(bn(conv1x1(x, params["w_proj"]), params["bn_proj"]), 0.0, 6.0)
    if expand_ratio > 1:
        x = jnp.clip(bn(conv1x1(x, params["w_exp"]), params["bn_exp"]), 0.0, 6.0)

    K = kernel_size
    pad = K // 2
    N, C, H, W = x.shape
    xp = jnp.pad(x, ((0, 0), (0, 0), (pad, pad), (pad, pad)))
    wdw = params["w_dw"].reshape(C, K, K)
    acc = jnp.zeros_like(x)
    for kh in range(K):
        for kw in range(K):
            acc = acc + xp[:, :, kh:kh + H, kw:kw + W] * \
                wdw[:, kh, kw][None, :, None, None]
    x = jnp.clip(bn(acc, params["bn_dw"]), 0.0, 6.0)
    x = bn(conv1x1(x, params["w_pw"]), params["bn_pw"])
    return x


if __name__ == "__main__":
    # Default PPMOutConvLayer config: kernel 3, stride 1, expand 6, f_size None.
    in_channels, out_channels = 4, 8
    kernel_size, stride, expand_ratio = 3, 1, 6
    N, H, W = 2, 16, 16
    feature_dim = round(out_channels * expand_ratio)   # 48

    key = jax.random.PRNGKey(0)
    ks = jax.random.split(key, 16)

    def bn_params(kg, kb, c):
        return (1.0 + 0.1 * jax.random.normal(kg, (c,), jnp.float32),  # gamma
                0.1 * jax.random.normal(kb, (c,), jnp.float32),        # beta
                jnp.zeros((c,), jnp.float32),                          # running_mean
                jnp.ones((c,), jnp.float32))                           # running_var

    params = {
        # project Conv2d(in, out, 1): torch weight (out, in, 1, 1) -> (out, in)
        "w_proj": 0.1 * jax.random.normal(ks[0], (out_channels, in_channels), jnp.float32),
        "bn_proj": bn_params(ks[1], ks[2], out_channels),
        # inverted_bottleneck Conv2d(out, feat, 1): (feat, out, 1, 1) -> (feat, out)
        "w_exp": 0.1 * jax.random.normal(ks[3], (feature_dim, out_channels), jnp.float32),
        "bn_exp": bn_params(ks[4], ks[5], feature_dim),
        # depth_conv Conv2d(feat, feat, K, groups=feat): (feat, 1, K, K) -> (feat, K*K)
        "w_dw": 0.1 * jax.random.normal(ks[6], (feature_dim, kernel_size * kernel_size),
                                        jnp.float32),
        "bn_dw": bn_params(ks[7], ks[8], feature_dim),
        # point_linear Conv2d(feat, out, 1): (out, feat, 1, 1) -> (out, feat)
        "w_pw": 0.1 * jax.random.normal(ks[9], (out_channels, feature_dim), jnp.float32),
        "bn_pw": bn_params(ks[10], ks[11], out_channels),
    }

    x = jax.random.normal(ks[12], (N, in_channels, H, W), jnp.float32)

    out = ppm_out_conv_forward(x, params, kernel_size=kernel_size,
                               stride=stride, expand_ratio=expand_ratio)
    out = jax.block_until_ready(out)
    assert out.shape == (N, out_channels, H, W), out.shape

    ref = _reference_forward(x, params, kernel_size=kernel_size,
                             expand_ratio=expand_ratio)
    assert jnp.allclose(out, ref, atol=1e-4, rtol=1e-4), \
        float(jnp.max(jnp.abs(out - ref)))

    print("KERNEL_OK")
</pallas_src>

<mosaic_0001>
module attributes {stable_mosaic.version = 11 : i64} {
  func.func @_fused_ppm_kernel(%arg0: i32, %arg1: memref<1x4x256xf32, #tpu.memory_space<vmem>>, %arg2: memref<9x1x256xf32, #tpu.memory_space<vmem>>, %arg3: memref<4x8x1xf32, #tpu.memory_space<vmem>>, %arg4: memref<8x1xf32, #tpu.memory_space<vmem>>, %arg5: memref<8x48x1xf32, #tpu.memory_space<vmem>>, %arg6: memref<48x1xf32, #tpu.memory_space<vmem>>, %arg7: memref<9x48x1xf32, #tpu.memory_space<vmem>>, %arg8: memref<48x1xf32, #tpu.memory_space<vmem>>, %arg9: memref<48x8x1xf32, #tpu.memory_space<vmem>>, %arg10: memref<8x1xf32, #tpu.memory_space<vmem>>, %arg11: memref<1x8x256xf32, #tpu.memory_space<vmem>>) attributes {dimension_semantics = [#tpu.dimension_semantics<parallel>], iteration_bounds = array<i64: 2>, scalar_prefetch = 0 : i64, scratch_operands = 0 : i64, tpu.core_type = #tpu.core_type<tc>, window_params = [{transform_indices = @transform_0, window_bounds = array<i64: 1, 4, 256>}, {pipeline_mode = #tpu.pipeline_mode<synchronous>, transform_indices = @transform_1, window_bounds = array<i64: 9, 1, 256>}, {pipeline_mode = #tpu.pipeline_mode<synchronous>, transform_indices = @transform_2, window_bounds = array<i64: 4, 8, 1>}, {pipeline_mode = #tpu.pipeline_mode<synchronous>, transform_indices = @transform_3, window_bounds = array<i64: 8, 1>}, {pipeline_mode = #tpu.pipeline_mode<synchronous>, transform_indices = @transform_4, window_bounds = array<i64: 8, 48, 1>}, {pipeline_mode = #tpu.pipeline_mode<synchronous>, transform_indices = @transform_5, window_bounds = array<i64: 48, 1>}, {pipeline_mode = #tpu.pipeline_mode<synchronous>, transform_indices = @transform_6, window_bounds = array<i64: 9, 48, 1>}, {pipeline_mode = #tpu.pipeline_mode<synchronous>, transform_indices = @transform_7, window_bounds = array<i64: 48, 1>}, {pipeline_mode = #tpu.pipeline_mode<synchronous>, transform_indices = @transform_8, window_bounds = array<i64: 48, 8, 1>}, {pipeline_mode = #tpu.pipeline_mode<synchronous>, transform_indices = @transform_9, window_bounds = array<i64: 8, 1>}, {transform_indices = @transform_10, window_bounds = array<i64: 1, 8, 256>}]} {
    %c0 = arith.constant 0 : index
    %c0_0 = arith.constant 0 : index
    %c0_1 = arith.constant 0 : index
    %0 = vector.load %arg1[%c0, %c0_0, %c0_1] : memref<1x4x256xf32, #tpu.memory_space<vmem>>, vector<1x4x256xf32>
    %1 = vector.shape_cast %0 : vector<1x4x256xf32> to vector<4x256xf32>
    %cst = arith.constant 0.000000e+00 : f32
    %2 = vector.broadcast %cst : f32 to vector<8x256xf32>
    %c0_2 = arith.constant 0 : index
    %c0_3 = arith.constant 0 : index
    %c0_4 = arith.constant 0 : index
    %3 = vector.load %arg3[%c0_2, %c0_3, %c0_4] : memref<4x8x1xf32, #tpu.memory_space<vmem>>, vector<1x8x1xf32>
    %4 = vector.shape_cast %3 : vector<1x8x1xf32> to vector<8x1xf32>
    %5 = vector.extract_strided_slice %1 {offsets = [0, 0], sizes = [1, 256], strides = [1, 1]} : vector<4x256xf32> to vector<1x256xf32>
    %6 = vector.broadcast %4 : vector<8x1xf32> to vector<8x256xf32>
    %7 = vector.broadcast %5 : vector<1x256xf32> to vector<8x256xf32>
    %8 = arith.mulf %6, %7 : vector<8x256xf32>
    %9 = arith.addf %2, %8 : vector<8x256xf32>
    %c1 = arith.constant 1 : index
    %c0_5 = arith.constant 0 : index
    %c0_6 = arith.constant 0 : index
    %10 = vector.load %arg3[%c1, %c0_5, %c0_6] : memref<4x8x1xf32, #tpu.memory_space<vmem>>, vector<1x8x1xf32>
    %11 = vector.shape_cast %10 : vector<1x8x1xf32> to vector<8x1xf32>
    %12 = vector.extract_strided_slice %1 {offsets = [1, 0], sizes = [1, 256], strides = [1, 1]} : vector<4x256xf32> to vector<1x256xf32>
    %13 = vector.broadcast %11 : vector<8x1xf32> to vector<8x256xf32>
    %14 = vector.broadcast %12 : vector<1x256xf32> to vector<8x256xf32>
    %15 = arith.mulf %13, %14 : vector<8x256xf32>
    %16 = arith.addf %9, %15 : vector<8x256xf32>
    %c2 = arith.constant 2 : index
    %c0_7 = arith.constant 0 : index
    %c0_8 = arith.constant 0 : index
    %17 = vector.load %arg3[%c2, %c0_7, %c0_8] : memref<4x8x1xf32, #tpu.memory_space<vmem>>, vector<1x8x1xf32>
    %18 = vector.shape_cast %17 : vector<1x8x1xf32> to vector<8x1xf32>
    %19 = vector.extract_strided_slice %1 {offsets = [2, 0], sizes = [1, 256], strides = [1, 1]} : vector<4x256xf32> to vector<1x256xf32>
    %20 = vector.broadcast %18 : vector<8x1xf32> to vector<8x256xf32>
    %21 = vector.broadcast %19 : vector<1x256xf32> to vector<8x256xf32>
    %22 = arith.mulf %20, %21 : vector<8x256xf32>
    %23 = arith.addf %16, %22 : vector<8x256xf32>
    %c3 = arith.constant 3 : index
    %c0_9 = arith.constant 0 : index
    %c0_10 = arith.constant 0 : index
    %24 = vector.load %arg3[%c3, %c0_9, %c0_10] : memref<4x8x1xf32, #tpu.memory_space<vmem>>, vector<1x8x1xf32>
    %25 = vector.shape_cast %24 : vector<1x8x1xf32> to vector<8x1xf32>
    %26 = vector.extract_strided_slice %1 {offsets = [3, 0], sizes = [1, 256], strides = [1, 1]} : vector<4x256xf32> to vector<1x256xf32>
    %27 = vector.broadcast %25 : vector<8x1xf32> to vector<8x256xf32>
    %28 = vector.broadcast %26 : vector<1x256xf32> to vector<8x256xf32>
    %29 = arith.mulf %27, %28 : vector<8x256xf32>
    %30 = arith.addf %23, %29 : vector<8x256xf32>
    %c0_11 = arith.constant 0 : index
    %c0_12 = arith.constant 0 : index
    %31 = vector.load %arg4[%c0_11, %c0_12] : memref<8x1xf32, #tpu.memory_space<vmem>>, vector<8x1xf32>
    %32 = vector.broadcast %31 : vector<8x1xf32> to vector<8x256xf32>
    %33 = arith.addf %30, %32 : vector<8x256xf32>
    %cst_13 = arith.constant 0.000000e+00 : f32
    %cst_14 = arith.constant 6.000000e+00 : f32
    %34 = vector.broadcast %cst_13 : f32 to vector<8x256xf32>
    %35 = arith.maximumf %34, %33 : vector<8x256xf32>
    %36 = vector.broadcast %cst_14 : f32 to vector<8x256xf32>
    %37 = arith.minimumf %36, %35 : vector<8x256xf32>
    %cst_15 = arith.constant 0.000000e+00 : f32
    %38 = vector.broadcast %cst_15 : f32 to vector<48x256xf32>
    %c0_16 = arith.constant 0 : index
    %c0_17 = arith.constant 0 : index
    %c0_18 = arith.constant 0 : index
    %39 = vector.load %arg5[%c0_16, %c0_17, %c0_18] : memref<8x48x1xf32, #tpu.memory_space<vmem>>, vector<1x48x1xf32>
    %40 = vector.shape_cast %39 : vector<1x48x1xf32> to vector<48x1xf32>
    %41 = vector.extract_strided_slice %37 {offsets = [0, 0], sizes = [1, 256], strides = [1, 1]} : vector<8x256xf32> to vector<1x256xf32>
    %42 = vector.broadcast %40 : vector<48x1xf32> to vector<48x256xf32>
    %43 = vector.broadcast %41 : vector<1x256xf32> to vector<48x256xf32>
    %44 = arith.mulf %42, %43 : vector<48x256xf32>
    %45 = arith.addf %38, %44 : vector<48x256xf32>
    %c1_19 = arith.constant 1 : index
    %c0_20 = arith.constant 0 : index
    %c0_21 = arith.constant 0 : index
    %46 = vector.load %arg5[%c1_19, %c0_20, %c0_21] : memref<8x48x1xf32, #tpu.memory_space<vmem>>, vector<1x48x1xf32>
    %47 = vector.shape_cast %46 : vector<1x48x1xf32> to vector<48x1xf32>
    %48 = vector.extract_strided_slice %37 {offsets = [1, 0], sizes = [1, 256], strides = [1, 1]} : vector<8x256xf32> to vector<1x256xf32>
    %49 = vector.broadcast %47 : vector<48x1xf32> to vector<48x256xf32>
    %50 = vector.broadcast %48 : vector<1x256xf32> to vector<48x256xf32>
    %51 = arith.mulf %49, %50 : vector<48x256xf32>
    %52 = arith.addf %45, %51 : vector<48x256xf32>
    %c2_22 = arith.constant 2 : index
    %c0_23 = arith.constant 0 : index
    %c0_24 = arith.constant 0 : index
    %53 = vector.load %arg5[%c2_22, %c0_23, %c0_24] : memref<8x48x1xf32, #tpu.memory_space<vmem>>, vector<1x48x1xf32>
    %54 = vector.shape_cast %53 : vector<1x48x1xf32> to vector<48x1xf32>
    %55 = vector.extract_strided_slice %37 {offsets = [2, 0], sizes = [1, 256], strides = [1, 1]} : vector<8x256xf32> to vector<1x256xf32>
    %56 = vector.broadcast %54 : vector<48x1xf32> to vector<48x256xf32>
    %57 = vector.broadcast %55 : vector<1x256xf32> to vector<48x256xf32>
    %58 = arith.mulf %56, %57 : vector<48x256xf32>
    %59 = arith.addf %52, %58 : vector<48x256xf32>
    %c3_25 = arith.constant 3 : index
    %c0_26 = arith.constant 0 : index
    %c0_27 = arith.constant 0 : index
    %60 = vector.load %arg5[%c3_25, %c0_26, %c0_27] : memref<8x48x1xf32, #tpu.memory_space<vmem>>, vector<1x48x1xf32>
    %61 = vector.shape_cast %60 : vector<1x48x1xf32> to vector<48x1xf32>
    %62 = vector.extract_strided_slice %37 {offsets = [3, 0], sizes = [1, 256], strides = [1, 1]} : vector<8x256xf32> to vector<1x256xf32>
    %63 = vector.broadcast %61 : vector<48x1xf32> to vector<48x256xf32>
    %64 = vector.broadcast %62 : vector<1x256xf32> to vector<48x256xf32>
    %65 = arith.mulf %63, %64 : vector<48x256xf32>
    %66 = arith.addf %59, %65 : vector<48x256xf32>
    %c4 = arith.constant 4 : index
    %c0_28 = arith.constant 0 : index
    %c0_29 = arith.constant 0 : index
    %67 = vector.load %arg5[%c4, %c0_28, %c0_29] : memref<8x48x1xf32, #tpu.memory_space<vmem>>, vector<1x48x1xf32>
    %68 = vector.shape_cast %67 : vector<1x48x1xf32> to vector<48x1xf32>
    %69 = vector.extract_strided_slice %37 {offsets = [4, 0], sizes = [1, 256], strides = [1, 1]} : vector<8x256xf32> to vector<1x256xf32>
    %70 = vector.broadcast %68 : vector<48x1xf32> to vector<48x256xf32>
    %71 = vector.broadcast %69 : vector<1x256xf32> to vector<48x256xf32>
    %72 = arith.mulf %70, %71 : vector<48x256xf32>
    %73 = arith.addf %66, %72 : vector<48x256xf32>
    %c5 = arith.constant 5 : index
    %c0_30 = arith.constant 0 : index
    %c0_31 = arith.constant 0 : index
    %74 = vector.load %arg5[%c5, %c0_30, %c0_31] : memref<8x48x1xf32, #tpu.memory_space<vmem>>, vector<1x48x1xf32>
    %75 = vector.shape_cast %74 : vector<1x48x1xf32> to vector<48x1xf32>
    %76 = vector.extract_strided_slice %37 {offsets = [5, 0], sizes = [1, 256], strides = [1, 1]} : vector<8x256xf32> to vector<1x256xf32>
    %77 = vector.broadcast %75 : vector<48x1xf32> to vector<48x256xf32>
    %78 = vector.broadcast %76 : vector<1x256xf32> to vector<48x256xf32>
    %79 = arith.mulf %77, %78 : vector<48x256xf32>
    %80 = arith.addf %73, %79 : vector<48x256xf32>
    %c6 = arith.constant 6 : index
    %c0_32 = arith.constant 0 : index
    %c0_33 = arith.constant 0 : index
    %81 = vector.load %arg5[%c6, %c0_32, %c0_33] : memref<8x48x1xf32, #tpu.memory_space<vmem>>, vector<1x48x1xf32>
    %82 = vector.shape_cast %81 : vector<1x48x1xf32> to vector<48x1xf32>
    %83 = vector.extract_strided_slice %37 {offsets = [6, 0], sizes = [1, 256], strides = [1, 1]} : vector<8x256xf32> to vector<1x256xf32>
    %84 = vector.broadcast %82 : vector<48x1xf32> to vector<48x256xf32>
    %85 = vector.broadcast %83 : vector<1x256xf32> to vector<48x256xf32>
    %86 = arith.mulf %84, %85 : vector<48x256xf32>
    %87 = arith.addf %80, %86 : vector<48x256xf32>
    %c7 = arith.constant 7 : index
    %c0_34 = arith.constant 0 : index
    %c0_35 = arith.constant 0 : index
    %88 = vector.load %arg5[%c7, %c0_34, %c0_35] : memref<8x48x1xf32, #tpu.memory_space<vmem>>, vector<1x48x1xf32>
    %89 = vector.shape_cast %88 : vector<1x48x1xf32> to vector<48x1xf32>
    %90 = vector.extract_strided_slice %37 {offsets = [7, 0], sizes = [1, 256], strides = [1, 1]} : vector<8x256xf32> to vector<1x256xf32>
    %91 = vector.broadcast %89 : vector<48x1xf32> to vector<48x256xf32>
    %92 = vector.broadcast %90 : vector<1x256xf32> to vector<48x256xf32>
    %93 = arith.mulf %91, %92 : vector<48x256xf32>
    %94 = arith.addf %87, %93 : vector<48x256xf32>
    %c0_36 = arith.constant 0 : index
    %c0_37 = arith.constant 0 : index
    %95 = vector.load %arg6[%c0_36, %c0_37] : memref<48x1xf32, #tpu.memory_space<vmem>>, vector<48x1xf32>
    %96 = vector.broadcast %95 : vector<48x1xf32> to vector<48x256xf32>
    %97 = arith.addf %94, %96 : vector<48x256xf32>
    %cst_38 = arith.constant 0.000000e+00 : f32
    %cst_39 = arith.constant 6.000000e+00 : f32
    %98 = vector.broadcast %cst_38 : f32 to vector<48x256xf32>
    %99 = arith.maximumf %98, %97 : vector<48x256xf32>
    %100 = vector.broadcast %cst_39 : f32 to vector<48x256xf32>
    %101 = arith.minimumf %100, %99 : vector<48x256xf32>
    %cst_40 = arith.constant 0.000000e+00 : f32
    %102 = vector.broadcast %cst_40 : f32 to vector<48x256xf32>
    %c17_i32 = arith.constant 17 : i32
    %103 = tpu.dynamic_rotate %101 by %c17_i32 dim 1 : vector<48x256xf32>, i32 -> vector<48x256xf32>
    %c0_41 = arith.constant 0 : index
    %c0_42 = arith.constant 0 : index
    %c0_43 = arith.constant 0 : index
    %104 = vector.load %arg2[%c0_41, %c0_42, %c0_43] : memref<9x1x256xf32, #tpu.memory_space<vmem>>, vector<1x1x256xf32>
    %105 = vector.shape_cast %104 : vector<1x1x256xf32> to vector<1x256xf32>
    %106 = vector.broadcast %105 : vector<1x256xf32> to vector<48x256xf32>
    %107 = arith.mulf %103, %106 : vector<48x256xf32>
    %c0_44 = arith.constant 0 : index
    %c0_45 = arith.constant 0 : index
    %c0_46 = arith.constant 0 : index
    %108 = vector.load %arg7[%c0_44, %c0_45, %c0_46] : memref<9x48x1xf32, #tpu.memory_space<vmem>>, vector<1x48x1xf32>
    %109 = vector.shape_cast %108 : vector<1x48x1xf32> to vector<48x1xf32>
    %110 = vector.broadcast %109 : vector<48x1xf32> to vector<48x256xf32>
    %111 = arith.mulf %107, %110 : vector<48x256xf32>
    %112 = arith.addf %102, %111 : vector<48x256xf32>
    %c16_i32 = arith.constant 16 : i32
    %113 = tpu.dynamic_rotate %101 by %c16_i32 dim 1 : vector<48x256xf32>, i32 -> vector<48x256xf32>
    %c1_47 = arith.constant 1 : index
    %c0_48 = arith.constant 0 : index
    %c0_49 = arith.constant 0 : index
    %114 = vector.load %arg2[%c1_47, %c0_48, %c0_49] : memref<9x1x256xf32, #tpu.memory_space<vmem>>, vector<1x1x256xf32>
    %115 = vector.shape_cast %114 : vector<1x1x256xf32> to vector<1x256xf32>
    %116 = vector.broadcast %115 : vector<1x256xf32> to vector<48x256xf32>
    %117 = arith.mulf %113, %116 : vector<48x256xf32>
    %c1_50 = arith.constant 1 : index
    %c0_51 = arith.constant 0 : index
    %c0_52 = arith.constant 0 : index
    %118 = vector.load %arg7[%c1_50, %c0_51, %c0_52] : memref<9x48x1xf32, #tpu.memory_space<vmem>>, vector<1x48x1xf32>
    %119 = vector.shape_cast %118 : vector<1x48x1xf32> to vector<48x1xf32>
    %120 = vector.broadcast %119 : vector<48x1xf32> to vector<48x256xf32>
    %121 = arith.mulf %117, %120 : vector<48x256xf32>
    %122 = arith.addf %112, %121 : vector<48x256xf32>
    %c15_i32 = arith.constant 15 : i32
    %123 = tpu.dynamic_rotate %101 by %c15_i32 dim 1 : vector<48x256xf32>, i32 -> vector<48x256xf32>
    %c2_53 = arith.constant 2 : index
    %c0_54 = arith.constant 0 : index
    %c0_55 = arith.constant 0 : index
    %124 = vector.load %arg2[%c2_53, %c0_54, %c0_55] : memref<9x1x256xf32, #tpu.memory_space<vmem>>, vector<1x1x256xf32>
    %125 = vector.shape_cast %124 : vector<1x1x256xf32> to vector<1x256xf32>
    %126 = vector.broadcast %125 : vector<1x256xf32> to vector<48x256xf32>
    %127 = arith.mulf %123, %126 : vector<48x256xf32>
    %c2_56 = arith.constant 2 : index
    %c0_57 = arith.constant 0 : index
    %c0_58 = arith.constant 0 : index
    %128 = vector.load %arg7[%c2_56, %c0_57, %c0_58] : memref<9x48x1xf32, #tpu.memory_space<vmem>>, vector<1x48x1xf32>
    %129 = vector.shape_cast %128 : vector<1x48x1xf32> to vector<48x1xf32>
    %130 = vector.broadcast %129 : vector<48x1xf32> to vector<48x256xf32>
    %131 = arith.mulf %127, %130 : vector<48x256xf32>
    %132 = arith.addf %122, %131 : vector<48x256xf32>
    %c1_i32 = arith.constant 1 : i32
    %133 = tpu.dynamic_rotate %101 by %c1_i32 dim 1 : vector<48x256xf32>, i32 -> vector<48x256xf32>
    %c3_59 = arith.constant 3 : index
    %c0_60 = arith.constant 0 : index
    %c0_61 = arith.constant 0 : index
    %134 = vector.load %arg2[%c3_59, %c0_60, %c0_61] : memref<9x1x256xf32, #tpu.memory_space<vmem>>, vector<1x1x256xf32>
    %135 = vector.shape_cast %134 : vector<1x1x256xf32> to vector<1x256xf32>
    %136 = vector.broadcast %135 : vector<1x256xf32> to vector<48x256xf32>
    %137 = arith.mulf %133, %136 : vector<48x256xf32>
    %c3_62 = arith.constant 3 : index
    %c0_63 = arith.constant 0 : index
    %c0_64 = arith.constant 0 : index
    %138 = vector.load %arg7[%c3_62, %c0_63, %c0_64] : memref<9x48x1xf32, #tpu.memory_space<vmem>>, vector<1x48x1xf32>
    %139 = vector.shape_cast %138 : vector<1x48x1xf32> to vector<48x1xf32>
    %140 = vector.broadcast %139 : vector<48x1xf32> to vector<48x256xf32>
    %141 = arith.mulf %137, %140 : vector<48x256xf32>
    %142 = arith.addf %132, %141 : vector<48x256xf32>
    %c4_65 = arith.constant 4 : index
    %c0_66 = arith.constant 0 : index
    %c0_67 = arith.constant 0 : index
    %143 = vector.load %arg2[%c4_65, %c0_66, %c0_67] : memref<9x1x256xf32, #tpu.memory_space<vmem>>, vector<1x1x256xf32>
    %144 = vector.shape_cast %143 : vector<1x1x256xf32> to vector<1x256xf32>
    %145 = vector.broadcast %144 : vector<1x256xf32> to vector<48x256xf32>
    %146 = arith.mulf %101, %145 : vector<48x256xf32>
    %c4_68 = arith.constant 4 : index
    %c0_69 = arith.constant 0 : index
    %c0_70 = arith.constant 0 : index
    %147 = vector.load %arg7[%c4_68, %c0_69, %c0_70] : memref<9x48x1xf32, #tpu.memory_space<vmem>>, vector<1x48x1xf32>
    %148 = vector.shape_cast %147 : vector<1x48x1xf32> to vector<48x1xf32>
    %149 = vector.broadcast %148 : vector<48x1xf32> to vector<48x256xf32>
    %150 = arith.mulf %146, %149 : vector<48x256xf32>
    %151 = arith.addf %142, %150 : vector<48x256xf32>
    %c255_i32 = arith.constant 255 : i32
    %152 = tpu.dynamic_rotate %101 by %c255_i32 dim 1 : vector<48x256xf32>, i32 -> vector<48x256xf32>
    %c5_71 = arith.constant 5 : index
    %c0_72 = arith.constant 0 : index
    %c0_73 = arith.constant 0 : index
    %153 = vector.load %arg2[%c5_71, %c0_72, %c0_73] : memref<9x1x256xf32, #tpu.memory_space<vmem>>, vector<1x1x256xf32>
    %154 = vector.shape_cast %153 : vector<1x1x256xf32> to vector<1x256xf32>
    %155 = vector.broadcast %154 : vector<1x256xf32> to vector<48x256xf32>
    %156 = arith.mulf %152, %155 : vector<48x256xf32>
    %c5_74 = arith.constant 5 : index
    %c0_75 = arith.constant 0 : index
    %c0_76 = arith.constant 0 : index
    %157 = vector.load %arg7[%c5_74, %c0_75, %c0_76] : memref<9x48x1xf32, #tpu.memory_space<vmem>>, vector<1x48x1xf32>
    %158 = vector.shape_cast %157 : vector<1x48x1xf32> to vector<48x1xf32>
    %159 = vector.broadcast %158 : vector<48x1xf32> to vector<48x256xf32>
    %160 = arith.mulf %156, %159 : vector<48x256xf32>
    %161 = arith.addf %151, %160 : vector<48x256xf32>
    %c241_i32 = arith.constant 241 : i32
    %162 = tpu.dynamic_rotate %101 by %c241_i32 dim 1 : vector<48x256xf32>, i32 -> vector<48x256xf32>
    %c6_77 = arith.constant 6 : index
    %c0_78 = arith.constant 0 : index
    %c0_79 = arith.constant 0 : index
    %163 = vector.load %arg2[%c6_77, %c0_78, %c0_79] : memref<9x1x256xf32, #tpu.memory_space<vmem>>, vector<1x1x256xf32>
    %164 = vector.shape_cast %163 : vector<1x1x256xf32> to vector<1x256xf32>
    %165 = vector.broadcast %164 : vector<1x256xf32> to vector<48x256xf32>
    %166 = arith.mulf %162, %165 : vector<48x256xf32>
    %c6_80 = arith.constant 6 : index
    %c0_81 = arith.constant 0 : index
    %c0_82 = arith.constant 0 : index
    %167 = vector.load %arg7[%c6_80, %c0_81, %c0_82] : memref<9x48x1xf32, #tpu.memory_space<vmem>>, vector<1x48x1xf32>
    %168 = vector.shape_cast %167 : vector<1x48x1xf32> to vector<48x1xf32>
    %169 = vector.broadcast %168 : vector<48x1xf32> to vector<48x256xf32>
    %170 = arith.mulf %166, %169 : vector<48x256xf32>
    %171 = arith.addf %161, %170 : vector<48x256xf32>
    %c240_i32 = arith.constant 240 : i32
    %172 = tpu.dynamic_rotate %101 by %c240_i32 dim 1 : vector<48x256xf32>, i32 -> vector<48x256xf32>
    %c7_83 = arith.constant 7 : index
    %c0_84 = arith.constant 0 : index
    %c0_85 = arith.constant 0 : index
    %173 = vector.load %arg2[%c7_83, %c0_84, %c0_85] : memref<9x1x256xf32, #tpu.memory_space<vmem>>, vector<1x1x256xf32>
    %174 = vector.shape_cast %173 : vector<1x1x256xf32> to vector<1x256xf32>
    %175 = vector.broadcast %174 : vector<1x256xf32> to vector<48x256xf32>
    %176 = arith.mulf %172, %175 : vector<48x256xf32>
    %c7_86 = arith.constant 7 : index
    %c0_87 = arith.constant 0 : index
    %c0_88 = arith.constant 0 : index
    %177 = vector.load %arg7[%c7_86, %c0_87, %c0_88] : memref<9x48x1xf32, #tpu.memory_space<vmem>>, vector<1x48x1xf32>
    %178 = vector.shape_cast %177 : vector<1x48x1xf32> to vector<48x1xf32>
    %179 = vector.broadcast %178 : vector<48x1xf32> to vector<48x256xf32>
    %180 = arith.mulf %176, %179 : vector<48x256xf32>
    %181 = arith.addf %171, %180 : vector<48x256xf32>
    %c239_i32 = arith.constant 239 : i32
    %182 = tpu.dynamic_rotate %101 by %c239_i32 dim 1 : vector<48x256xf32>, i32 -> vector<48x256xf32>
    %c8 = arith.constant 8 : index
    %c0_89 = arith.constant 0 : index
    %c0_90 = arith.constant 0 : index
    %183 = vector.load %arg2[%c8, %c0_89, %c0_90] : memref<9x1x256xf32, #tpu.memory_space<vmem>>, vector<1x1x256xf32>
    %184 = vector.shape_cast %183 : vector<1x1x256xf32> to vector<1x256xf32>
    %185 = vector.broadcast %184 : vector<1x256xf32> to vector<48x256xf32>
    %186 = arith.mulf %182, %185 : vector<48x256xf32>
    %c8_91 = arith.constant 8 : index
    %c0_92 = arith.constant 0 : index
    %c0_93 = arith.constant 0 : index
    %187 = vector.load %arg7[%c8_91, %c0_92, %c0_93] : memref<9x48x1xf32, #tpu.memory_space<vmem>>, vector<1x48x1xf32>
    %188 = vector.shape_cast %187 : vector<1x48x1xf32> to vector<48x1xf32>
    %189 = vector.broadcast %188 : vector<48x1xf32> to vector<48x256xf32>
    %190 = arith.mulf %186, %189 : vector<48x256xf32>
    %191 = arith.addf %181, %190 : vector<48x256xf32>
    %c0_94 = arith.constant 0 : index
    %c0_95 = arith.constant 0 : index
    %192 = vector.load %arg8[%c0_94, %c0_95] : memref<48x1xf32, #tpu.memory_space<vmem>>, vector<48x1xf32>
    %193 = vector.broadcast %192 : vector<48x1xf32> to vector<48x256xf32>
    %194 = arith.addf %191, %193 : vector<48x256xf32>
    %cst_96 = arith.constant 0.000000e+00 : f32
    %cst_97 = arith.constant 6.000000e+00 : f32
    %195 = vector.broadcast %cst_96 : f32 to vector<48x256xf32>
    %196 = arith.maximumf %195, %194 : vector<48x256xf32>
    %197 = vector.broadcast %cst_97 : f32 to vector<48x256xf32>
    %198 = arith.minimumf %197, %196 : vector<48x256xf32>
    %cst_98 = arith.constant 0.000000e+00 : f32
    %199 = vector.broadcast %cst_98 : f32 to vector<8x256xf32>
    %c0_99 = arith.constant 0 : index
    %c0_100 = arith.constant 0 : index
    %c0_101 = arith.constant 0 : index
    %200 = vector.load %arg9[%c0_99, %c0_100, %c0_101] : memref<48x8x1xf32, #tpu.memory_space<vmem>>, vector<1x8x1xf32>
    %201 = vector.shape_cast %200 : vector<1x8x1xf32> to vector<8x1xf32>
    %202 = vector.extract_strided_slice %198 {offsets = [0, 0], sizes = [1, 256], strides = [1, 1]} : vector<48x256xf32> to vector<1x256xf32>
    %203 = vector.broadcast %201 : vector<8x1xf32> to vector<8x256xf32>
    %204 = vector.broadcast %202 : vector<1x256xf32> to vector<8x256xf32>
    %205 = arith.mulf %203, %204 : vector<8x256xf32>
    %206 = arith.addf %199, %205 : vector<8x256xf32>
    %c1_102 = arith.constant 1 : index
    %c0_103 = arith.constant 0 : index
    %c0_104 = arith.constant 0 : index
    %207 = vector.load %arg9[%c1_102, %c0_103, %c0_104] : memref<48x8x1xf32, #tpu.memory_space<vmem>>, vector<1x8x1xf32>
    %208 = vector.shape_cast %207 : vector<1x8x1xf32> to vector<8x1xf32>
    %209 = vector.extract_strided_slice %198 {offsets = [1, 0], sizes = [1, 256], strides = [1, 1]} : vector<48x256xf32> to vector<1x256xf32>
    %210 = vector.broadcast %208 : vector<8x1xf32> to vector<8x256xf32>
    %211 = vector.broadcast %209 : vector<1x256xf32> to vector<8x256xf32>
    %212 = arith.mulf %210, %211 : vector<8x256xf32>
    %213 = arith.addf %206, %212 : vector<8x256xf32>
    %c2_105 = arith.constant 2 : index
    %c0_106 = arith.constant 0 : index
    %c0_107 = arith.constant 0 : index
    %214 = vector.load %arg9[%c2_105, %c0_106, %c0_107] : memref<48x8x1xf32, #tpu.memory_space<vmem>>, vector<1x8x1xf32>
    %215 = vector.shape_cast %214 : vector<1x8x1xf32> to vector<8x1xf32>
    %216 = vector.extract_strided_slice %198 {offsets = [2, 0], sizes = [1, 256], strides = [1, 1]} : vector<48x256xf32> to vector<1x256xf32>
    %217 = vector.broadcast %215 : vector<8x1xf32> to vector<8x256xf32>
    %218 = vector.broadcast %216 : vector<1x256xf32> to vector<8x256xf32>
    %219 = arith.mulf %217, %218 : vector<8x256xf32>
    %220 = arith.addf %213, %219 : vector<8x256xf32>
    %c3_108 = arith.constant 3 : index
    %c0_109 = arith.constant 0 : index
    %c0_110 = arith.constant 0 : index
    %221 = vector.load %arg9[%c3_108, %c0_109, %c0_110] : memref<48x8x1xf32, #tpu.memory_space<vmem>>, vector<1x8x1xf32>
    %222 = vector.shape_cast %221 : vector<1x8x1xf32> to vector<8x1xf32>
    %223 = vector.extract_strided_slice %198 {offsets = [3, 0], sizes = [1, 256], strides = [1, 1]} : vector<48x256xf32> to vector<1x256xf32>
    %224 = vector.broadcast %222 : vector<8x1xf32> to vector<8x256xf32>
    %225 = vector.broadcast %223 : vector<1x256xf32> to vector<8x256xf32>
    %226 = arith.mulf %224, %225 : vector<8x256xf32>
    %227 = arith.addf %220, %226 : vector<8x256xf32>
    %c4_111 = arith.constant 4 : index
    %c0_112 = arith.constant 0 : index
    %c0_113 = arith.constant 0 : index
    %228 = vector.load %arg9[%c4_111, %c0_112, %c0_113] : memref<48x8x1xf32, #tpu.memory_space<vmem>>, vector<1x8x1xf32>
    %229 = vector.shape_cast %228 : vector<1x8x1xf32> to vector<8x1xf32>
    %230 = vector.extract_strided_slice %198 {offsets = [4, 0], sizes = [1, 256], strides = [1, 1]} : vector<48x256xf32> to vector<1x256xf32>
    %231 = vector.broadcast %229 : vector<8x1xf32> to vector<8x256xf32>
    %232 = vector.broadcast %230 : vector<1x256xf32> to vector<8x256xf32>
    %233 = arith.mulf %231, %232 : vector<8x256xf32>
    %234 = arith.addf %227, %233 : vector<8x256xf32>
    %c5_114 = arith.constant 5 : index
    %c0_115 = arith.constant 0 : index
    %c0_116 = arith.constant 0 : index
    %235 = vector.load %arg9[%c5_114, %c0_115, %c0_116] : memref<48x8x1xf32, #tpu.memory_space<vmem>>, vector<1x8x1xf32>
    %236 = vector.shape_cast %235 : vector<1x8x1xf32> to vector<8x1xf32>
    %237 = vector.extract_strided_slice %198 {offsets = [5, 0], sizes = [1, 256], strides = [1, 1]} : vector<48x256xf32> to vector<1x256xf32>
    %238 = vector.broadcast %236 : vector<8x1xf32> to vector<8x256xf32>
    %239 = vector.broadcast %237 : vector<1x256xf32> to vector<8x256xf32>
    %240 = arith.mulf %238, %239 : vector<8x256xf32>
    %241 = arith.addf %234, %240 : vector<8x256xf32>
    %c6_117 = arith.constant 6 : index
    %c0_118 = arith.constant 0 : index
    %c0_119 = arith.constant 0 : index
    %242 = vector.load %arg9[%c6_117, %c0_118, %c0_119] : memref<48x8x1xf32, #tpu.memory_space<vmem>>, vector<1x8x1xf32>
    %243 = vector.shape_cast %242 : vector<1x8x1xf32> to vector<8x1xf32>
    %244 = vector.extract_strided_slice %198 {offsets = [6, 0], sizes = [1, 256], strides = [1, 1]} : vector<48x256xf32> to vector<1x256xf32>
    %245 = vector.broadcast %243 : vector<8x1xf32> to vector<8x256xf32>
    %246 = vector.broadcast %244 : vector<1x256xf32> to vector<8x256xf32>
    %247 = arith.mulf %245, %246 : vector<8x256xf32>
    %248 = arith.addf %241, %247 : vector<8x256xf32>
    %c7_120 = arith.constant 7 : index
    %c0_121 = arith.constant 0 : index
    %c0_122 = arith.constant 0 : index
    %249 = vector.load %arg9[%c7_120, %c0_121, %c0_122] : memref<48x8x1xf32, #tpu.memory_space<vmem>>, vector<1x8x1xf32>
    %250 = vector.shape_cast %249 : vector<1x8x1xf32> to vector<8x1xf32>
    %251 = vector.extract_strided_slice %198 {offsets = [7, 0], sizes = [1, 256], strides = [1, 1]} : vector<48x256xf32> to vector<1x256xf32>
    %252 = vector.broadcast %250 : vector<8x1xf32> to vector<8x256xf32>
    %253 = vector.broadcast %251 : vector<1x256xf32> to vector<8x256xf32>
    %254 = arith.mulf %252, %253 : vector<8x256xf32>
    %255 = arith.addf %248, %254 : vector<8x256xf32>
    %c8_123 = arith.constant 8 : index
    %c0_124 = arith.constant 0 : index
    %c0_125 = arith.constant 0 : index
    %256 = vector.load %arg9[%c8_123, %c0_124, %c0_125] : memref<48x8x1xf32, #tpu.memory_space<vmem>>, vector<1x8x1xf32>
    %257 = vector.shape_cast %256 : vector<1x8x1xf32> to vector<8x1xf32>
    %258 = vector.extract_strided_slice %198 {offsets = [8, 0], sizes = [1, 256], strides = [1, 1]} : vector<48x256xf32> to vector<1x256xf32>
    %259 = vector.broadcast %257 : vector<8x1xf32> to vector<8x256xf32>
    %260 = vector.broadcast %258 : vector<1x256xf32> to vector<8x256xf32>
    %261 = arith.mulf %259, %260 : vector<8x256xf32>
    %262 = arith.addf %255, %261 : vector<8x256xf32>
    %c9 = arith.constant 9 : index
    %c0_126 = arith.constant 0 : index
    %c0_127 = arith.constant 0 : index
    %263 = vector.load %arg9[%c9, %c0_126, %c0_127] : memref<48x8x1xf32, #tpu.memory_space<vmem>>, vector<1x8x1xf32>
    %264 = vector.shape_cast %263 : vector<1x8x1xf32> to vector<8x1xf32>
    %265 = vector.extract_strided_slice %198 {offsets = [9, 0], sizes = [1, 256], strides = [1, 1]} : vector<48x256xf32> to vector<1x256xf32>
    %266 = vector.broadcast %264 : vector<8x1xf32> to vector<8x256xf32>
    %267 = vector.broadcast %265 : vector<1x256xf32> to vector<8x256xf32>
    %268 = arith.mulf %266, %267 : vector<8x256xf32>
    %269 = arith.addf %262, %268 : vector<8x256xf32>
    %c10 = arith.constant 10 : index
    %c0_128 = arith.constant 0 : index
    %c0_129 = arith.constant 0 : index
    %270 = vector.load %arg9[%c10, %c0_128, %c0_129] : memref<48x8x1xf32, #tpu.memory_space<vmem>>, vector<1x8x1xf32>
    %271 = vector.shape_cast %270 : vector<1x8x1xf32> to vector<8x1xf32>
    %272 = vector.extract_strided_slice %198 {offsets = [10, 0], sizes = [1, 256], strides = [1, 1]} : vector<48x256xf32> to vector<1x256xf32>
    %273 = vector.broadcast %271 : vector<8x1xf32> to vector<8x256xf32>
    %274 = vector.broadcast %272 : vector<1x256xf32> to vector<8x256xf32>
    %275 = arith.mulf %273, %274 : vector<8x256xf32>
    %276 = arith.addf %269, %275 : vector<8x256xf32>
    %c11 = arith.constant 11 : index
    %c0_130 = arith.constant 0 : index
    %c0_131 = arith.constant 0 : index
    %277 = vector.load %arg9[%c11, %c0_130, %c0_131] : memref<48x8x1xf32, #tpu.memory_space<vmem>>, vector<1x8x1xf32>
    %278 = vector.shape_cast %277 : vector<1x8x1xf32> to vector<8x1xf32>
    %279 = vector.extract_strided_slice %198 {offsets = [11, 0], sizes = [1, 256], strides = [1, 1]} : vector<48x256xf32> to vector<1x256xf32>
    %280 = vector.broadcast %278 : vector<8x1xf32> to vector<8x256xf32>
    %281 = vector.broadcast %279 : vector<1x256xf32> to vector<8x256xf32>
    %282 = arith.mulf %280, %281 : vector<8x256xf32>
    %283 = arith.addf %276, %282 : vector<8x256xf32>
    %c12 = arith.constant 12 : index
    %c0_132 = arith.constant 0 : index
    %c0_133 = arith.constant 0 : index
    %284 = vector.load %arg9[%c12, %c0_132, %c0_133] : memref<48x8x1xf32, #tpu.memory_space<vmem>>, vector<1x8x1xf32>
    %285 = vector.shape_cast %284 : vector<1x8x1xf32> to vector<8x1xf32>
    %286 = vector.extract_strided_slice %198 {offsets = [12, 0], sizes = [1, 256], strides = [1, 1]} : vector<48x256xf32> to vector<1x256xf32>
    %287 = vector.broadcast %285 : vector<8x1xf32> to vector<8x256xf32>
    %288 = vector.broadcast %286 : vector<1x256xf32> to vector<8x256xf32>
    %289 = arith.mulf %287, %288 : vector<8x256xf32>
    %290 = arith.addf %283, %289 : vector<8x256xf32>
    %c13 = arith.constant 13 : index
    %c0_134 = arith.constant 0 : index
    %c0_135 = arith.constant 0 : index
    %291 = vector.load %arg9[%c13, %c0_134, %c0_135] : memref<48x8x1xf32, #tpu.memory_space<vmem>>, vector<1x8x1xf32>
    %292 = vector.shape_cast %291 : vector<1x8x1xf32> to vector<8x1xf32>
    %293 = vector.extract_strided_slice %198 {offsets = [13, 0], sizes = [1, 256], strides = [1, 1]} : vector<48x256xf32> to vector<1x256xf32>
    %294 = vector.broadcast %292 : vector<8x1xf32> to vector<8x256xf32>
    %295 = vector.broadcast %293 : vector<1x256xf32> to vector<8x256xf32>
    %296 = arith.mulf %294, %295 : vector<8x256xf32>
    %297 = arith.addf %290, %296 : vector<8x256xf32>
    %c14 = arith.constant 14 : index
    %c0_136 = arith.constant 0 : index
    %c0_137 = arith.constant 0 : index
    %298 = vector.load %arg9[%c14, %c0_136, %c0_137] : memref<48x8x1xf32, #tpu.memory_space<vmem>>, vector<1x8x1xf32>
    %299 = vector.shape_cast %298 : vector<1x8x1xf32> to vector<8x1xf32>
    %300 = vector.extract_strided_slice %198 {offsets = [14, 0], sizes = [1, 256], strides = [1, 1]} : vector<48x256xf32> to vector<1x256xf32>
    %301 = vector.broadcast %299 : vector<8x1xf32> to vector<8x256xf32>
    %302 = vector.broadcast %300 : vector<1x256xf32> to vector<8x256xf32>
    %303 = arith.mulf %301, %302 : vector<8x256xf32>
    %304 = arith.addf %297, %303 : vector<8x256xf32>
    %c15 = arith.constant 15 : index
    %c0_138 = arith.constant 0 : index
    %c0_139 = arith.constant 0 : index
    %305 = vector.load %arg9[%c15, %c0_138, %c0_139] : memref<48x8x1xf32, #tpu.memory_space<vmem>>, vector<1x8x1xf32>
    %306 = vector.shape_cast %305 : vector<1x8x1xf32> to vector<8x1xf32>
    %307 = vector.extract_strided_slice %198 {offsets = [15, 0], sizes = [1, 256], strides = [1, 1]} : vector<48x256xf32> to vector<1x256xf32>
    %308 = vector.broadcast %306 : vector<8x1xf32> to vector<8x256xf32>
    %309 = vector.broadcast %307 : vector<1x256xf32> to vector<8x256xf32>
    %310 = arith.mulf %308, %309 : vector<8x256xf32>
    %311 = arith.addf %304, %310 : vector<8x256xf32>
    %c16 = arith.constant 16 : index
    %c0_140 = arith.constant 0 : index
    %c0_141 = arith.constant 0 : index
    %312 = vector.load %arg9[%c16, %c0_140, %c0_141] : memref<48x8x1xf32, #tpu.memory_space<vmem>>, vector<1x8x1xf32>
    %313 = vector.shape_cast %312 : vector<1x8x1xf32> to vector<8x1xf32>
    %314 = vector.extract_strided_slice %198 {offsets = [16, 0], sizes = [1, 256], strides = [1, 1]} : vector<48x256xf32> to vector<1x256xf32>
    %315 = vector.broadcast %313 : vector<8x1xf32> to vector<8x256xf32>
    %316 = vector.broadcast %314 : vector<1x256xf32> to vector<8x256xf32>
    %317 = arith.mulf %315, %316 : vector<8x256xf32>
    %318 = arith.addf %311, %317 : vector<8x256xf32>
    %c17 = arith.constant 17 : index
    %c0_142 = arith.constant 0 : index
    %c0_143 = arith.constant 0 : index
    %319 = vector.load %arg9[%c17, %c0_142, %c0_143] : memref<48x8x1xf32, #tpu.memory_space<vmem>>, vector<1x8x1xf32>
    %320 = vector.shape_cast %319 : vector<1x8x1xf32> to vector<8x1xf32>
    %321 = vector.extract_strided_slice %198 {offsets = [17, 0], sizes = [1, 256], strides = [1, 1]} : vector<48x256xf32> to vector<1x256xf32>
    %322 = vector.broadcast %320 : vector<8x1xf32> to vector<8x256xf32>
    %323 = vector.broadcast %321 : vector<1x256xf32> to vector<8x256xf32>
    %324 = arith.mulf %322, %323 : vector<8x256xf32>
    %325 = arith.addf %318, %324 : vector<8x256xf32>
    %c18 = arith.constant 18 : index
    %c0_144 = arith.constant 0 : index
    %c0_145 = arith.constant 0 : index
    %326 = vector.load %arg9[%c18, %c0_144, %c0_145] : memref<48x8x1xf32, #tpu.memory_space<vmem>>, vector<1x8x1xf32>
    %327 = vector.shape_cast %326 : vector<1x8x1xf32> to vector<8x1xf32>
    %328 = vector.extract_strided_slice %198 {offsets = [18, 0], sizes = [1, 256], strides = [1, 1]} : vector<48x256xf32> to vector<1x256xf32>
    %329 = vector.broadcast %327 : vector<8x1xf32> to vector<8x256xf32>
    %330 = vector.broadcast %328 : vector<1x256xf32> to vector<8x256xf32>
    %331 = arith.mulf %329, %330 : vector<8x256xf32>
    %332 = arith.addf %325, %331 : vector<8x256xf32>
    %c19 = arith.constant 19 : index
    %c0_146 = arith.constant 0 : index
    %c0_147 = arith.constant 0 : index
    %333 = vector.load %arg9[%c19, %c0_146, %c0_147] : memref<48x8x1xf32, #tpu.memory_space<vmem>>, vector<1x8x1xf32>
    %334 = vector.shape_cast %333 : vector<1x8x1xf32> to vector<8x1xf32>
    %335 = vector.extract_strided_slice %198 {offsets = [19, 0], sizes = [1, 256], strides = [1, 1]} : vector<48x256xf32> to vector<1x256xf32>
    %336 = vector.broadcast %334 : vector<8x1xf32> to vector<8x256xf32>
    %337 = vector.broadcast %335 : vector<1x256xf32> to vector<8x256xf32>
    %338 = arith.mulf %336, %337 : vector<8x256xf32>
    %339 = arith.addf %332, %338 : vector<8x256xf32>
    %c20 = arith.constant 20 : index
    %c0_148 = arith.constant 0 : index
    %c0_149 = arith.constant 0 : index
    %340 = vector.load %arg9[%c20, %c0_148, %c0_149] : memref<48x8x1xf32, #tpu.memory_space<vmem>>, vector<1x8x1xf32>
    %341 = vector.shape_cast %340 : vector<1x8x1xf32> to vector<8x1xf32>
    %342 = vector.extract_strided_slice %198 {offsets = [20, 0], sizes = [1, 256], strides = [1, 1]} : vector<48x256xf32> to vector<1x256xf32>
    %343 = vector.broadcast %341 : vector<8x1xf32> to vector<8x256xf32>
    %344 = vector.broadcast %342 : vector<1x256xf32> to vector<8x256xf32>
    %345 = arith.mulf %343, %344 : vector<8x256xf32>
    %346 = arith.addf %339, %345 : vector<8x256xf32>
    %c21 = arith.constant 21 : index
    %c0_150 = arith.constant 0 : index
    %c0_151 = arith.constant 0 : index
    %347 = vector.load %arg9[%c21, %c0_150, %c0_151] : memref<48x8x1xf32, #tpu.memory_space<vmem>>, vector<1x8x1xf32>
    %348 = vector.shape_cast %347 : vector<1x8x1xf32> to vector<8x1xf32>
    %349 = vector.extract_strided_slice %198 {offsets = [21, 0], sizes = [1, 256], strides = [1, 1]} : vector<48x256xf32> to vector<1x256xf32>
    %350 = vector.broadcast %348 : vector<8x1xf32> to vector<8x256xf32>
    %351 = vector.broadcast %349 : vector<1x256xf32> to vector<8x256xf32>
    %352 = arith.mulf %350, %351 : vector<8x256xf32>
    %353 = arith.addf %346, %352 : vector<8x256xf32>
    %c22 = arith.constant 22 : index
    %c0_152 = arith.constant 0 : index
    %c0_153 = arith.constant 0 : index
    %354 = vector.load %arg9[%c22, %c0_152, %c0_153] : memref<48x8x1xf32, #tpu.memory_space<vmem>>, vector<1x8x1xf32>
    %355 = vector.shape_cast %354 : vector<1x8x1xf32> to vector<8x1xf32>
    %356 = vector.extract_strided_slice %198 {offsets = [22, 0], sizes = [1, 256], strides = [1, 1]} : vector<48x256xf32> to vector<1x256xf32>
    %357 = vector.broadcast %355 : vector<8x1xf32> to vector<8x256xf32>
    %358 = vector.broadcast %356 : vector<1x256xf32> to vector<8x256xf32>
    %359 = arith.mulf %357, %358 : vector<8x256xf32>
    %360 = arith.addf %353, %359 : vector<8x256xf32>
    %c23 = arith.constant 23 : index
    %c0_154 = arith.constant 0 : index
    %c0_155 = arith.constant 0 : index
    %361 = vector.load %arg9[%c23, %c0_154, %c0_155] : memref<48x8x1xf32, #tpu.memory_space<vmem>>, vector<1x8x1xf32>
    %362 = vector.shape_cast %361 : vector<1x8x1xf32> to vector<8x1xf32>
    %363 = vector.extract_strided_slice %198 {offsets = [23, 0], sizes = [1, 256], strides = [1, 1]} : vector<48x256xf32> to vector<1x256xf32>
    %364 = vector.broadcast %362 : vector<8x1xf32> to vector<8x256xf32>
    %365 = vector.broadcast %363 : vector<1x256xf32> to vector<8x256xf32>
    %366 = arith.mulf %364, %365 : vector<8x256xf32>
    %367 = arith.addf %360, %366 : vector<8x256xf32>
    %c24 = arith.constant 24 : index
    %c0_156 = arith.constant 0 : index
    %c0_157 = arith.constant 0 : index
    %368 = vector.load %arg9[%c24, %c0_156, %c0_157] : memref<48x8x1xf32, #tpu.memory_space<vmem>>, vector<1x8x1xf32>
    %369 = vector.shape_cast %368 : vector<1x8x1xf32> to vector<8x1xf32>
    %370 = vector.extract_strided_slice %198 {offsets = [24, 0], sizes = [1, 256], strides = [1, 1]} : vector<48x256xf32> to vector<1x256xf32>
    %371 = vector.broadcast %369 : vector<8x1xf32> to vector<8x256xf32>
    %372 = vector.broadcast %370 : vector<1x256xf32> to vector<8x256xf32>
    %373 = arith.mulf %371, %372 : vector<8x256xf32>
    %374 = arith.addf %367, %373 : vector<8x256xf32>
    %c25 = arith.constant 25 : index
    %c0_158 = arith.constant 0 : index
    %c0_159 = arith.constant 0 : index
    %375 = vector.load %arg9[%c25, %c0_158, %c0_159] : memref<48x8x1xf32, #tpu.memory_space<vmem>>, vector<1x8x1xf32>
    %376 = vector.shape_cast %375 : vector<1x8x1xf32> to vector<8x1xf32>
    %377 = vector.extract_strided_slice %198 {offsets = [25, 0], sizes = [1, 256], strides = [1, 1]} : vector<48x256xf32> to vector<1x256xf32>
    %378 = vector.broadcast %376 : vector<8x1xf32> to vector<8x256xf32>
    %379 = vector.broadcast %377 : vector<1x256xf32> to vector<8x256xf32>
    %380 = arith.mulf %378, %379 : vector<8x256xf32>
    %381 = arith.addf %374, %380 : vector<8x256xf32>
    %c26 = arith.constant 26 : index
    %c0_160 = arith.constant 0 : index
    %c0_161 = arith.constant 0 : index
    %382 = vector.load %arg9[%c26, %c0_160, %c0_161] : memref<48x8x1xf32, #tpu.memory_space<vmem>>, vector<1x8x1xf32>
    %383 = vector.shape_cast %382 : vector<1x8x1xf32> to vector<8x1xf32>
    %384 = vector.extract_strided_slice %198 {offsets = [26, 0], sizes = [1, 256], strides = [1, 1]} : vector<48x256xf32> to vector<1x256xf32>
    %385 = vector.broadcast %383 : vector<8x1xf32> to vector<8x256xf32>
    %386 = vector.broadcast %384 : vector<1x256xf32> to vector<8x256xf32>
    %387 = arith.mulf %385, %386 : vector<8x256xf32>
    %388 = arith.addf %381, %387 : vector<8x256xf32>
    %c27 = arith.constant 27 : index
    %c0_162 = arith.constant 0 : index
    %c0_163 = arith.constant 0 : index
    %389 = vector.load %arg9[%c27, %c0_162, %c0_163] : memref<48x8x1xf32, #tpu.memory_space<vmem>>, vector<1x8x1xf32>
    %390 = vector.shape_cast %389 : vector<1x8x1xf32> to vector<8x1xf32>
    %391 = vector.extract_strided_slice %198 {offsets = [27, 0], sizes = [1, 256], strides = [1, 1]} : vector<48x256xf32> to vector<1x256xf32>
    %392 = vector.broadcast %390 : vector<8x1xf32> to vector<8x256xf32>
    %393 = vector.broadcast %391 : vector<1x256xf32> to vector<8x256xf32>
    %394 = arith.mulf %392, %393 : vector<8x256xf32>
    %395 = arith.addf %388, %394 : vector<8x256xf32>
    %c28 = arith.constant 28 : index
    %c0_164 = arith.constant 0 : index
    %c0_165 = arith.constant 0 : index
    %396 = vector.load %arg9[%c28, %c0_164, %c0_165] : memref<48x8x1xf32, #tpu.memory_space<vmem>>, vector<1x8x1xf32>
    %397 = vector.shape_cast %396 : vector<1x8x1xf32> to vector<8x1xf32>
    %398 = vector.extract_strided_slice %198 {offsets = [28, 0], sizes = [1, 256], strides = [1, 1]} : vector<48x256xf32> to vector<1x256xf32>
    %399 = vector.broadcast %397 : vector<8x1xf32> to vector<8x256xf32>
    %400 = vector.broadcast %398 : vector<1x256xf32> to vector<8x256xf32>
    %401 = arith.mulf %399, %400 : vector<8x256xf32>
    %402 = arith.addf %395, %401 : vector<8x256xf32>
    %c29 = arith.constant 29 : index
    %c0_166 = arith.constant 0 : index
    %c0_167 = arith.constant 0 : index
    %403 = vector.load %arg9[%c29, %c0_166, %c0_167] : memref<48x8x1xf32, #tpu.memory_space<vmem>>, vector<1x8x1xf32>
    %404 = vector.shape_cast %403 : vector<1x8x1xf32> to vector<8x1xf32>
    %405 = vector.extract_strided_slice %198 {offsets = [29, 0], sizes = [1, 256], strides = [1, 1]} : vector<48x256xf32> to vector<1x256xf32>
    %406 = vector.broadcast %404 : vector<8x1xf32> to vector<8x256xf32>
    %407 = vector.broadcast %405 : vector<1x256xf32> to vector<8x256xf32>
    %408 = arith.mulf %406, %407 : vector<8x256xf32>
    %409 = arith.addf %402, %408 : vector<8x256xf32>
    %c30 = arith.constant 30 : index
    %c0_168 = arith.constant 0 : index
    %c0_169 = arith.constant 0 : index
    %410 = vector.load %arg9[%c30, %c0_168, %c0_169] : memref<48x8x1xf32, #tpu.memory_space<vmem>>, vector<1x8x1xf32>
    %411 = vector.shape_cast %410 : vector<1x8x1xf32> to vector<8x1xf32>
    %412 = vector.extract_strided_slice %198 {offsets = [30, 0], sizes = [1, 256], strides = [1, 1]} : vector<48x256xf32> to vector<1x256xf32>
    %413 = vector.broadcast %411 : vector<8x1xf32> to vector<8x256xf32>
    %414 = vector.broadcast %412 : vector<1x256xf32> to vector<8x256xf32>
    %415 = arith.mulf %413, %414 : vector<8x256xf32>
    %416 = arith.addf %409, %415 : vector<8x256xf32>
    %c31 = arith.constant 31 : index
    %c0_170 = arith.constant 0 : index
    %c0_171 = arith.constant 0 : index
    %417 = vector.load %arg9[%c31, %c0_170, %c0_171] : memref<48x8x1xf32, #tpu.memory_space<vmem>>, vector<1x8x1xf32>
    %418 = vector.shape_cast %417 : vector<1x8x1xf32> to vector<8x1xf32>
    %419 = vector.extract_strided_slice %198 {offsets = [31, 0], sizes = [1, 256], strides = [1, 1]} : vector<48x256xf32> to vector<1x256xf32>
    %420 = vector.broadcast %418 : vector<8x1xf32> to vector<8x256xf32>
    %421 = vector.broadcast %419 : vector<1x256xf32> to vector<8x256xf32>
    %422 = arith.mulf %420, %421 : vector<8x256xf32>
    %423 = arith.addf %416, %422 : vector<8x256xf32>
    %c32 = arith.constant 32 : index
    %c0_172 = arith.constant 0 : index
    %c0_173 = arith.constant 0 : index
    %424 = vector.load %arg9[%c32, %c0_172, %c0_173] : memref<48x8x1xf32, #tpu.memory_space<vmem>>, vector<1x8x1xf32>
    %425 = vector.shape_cast %424 : vector<1x8x1xf32> to vector<8x1xf32>
    %426 = vector.extract_strided_slice %198 {offsets = [32, 0], sizes = [1, 256], strides = [1, 1]} : vector<48x256xf32> to vector<1x256xf32>
    %427 = vector.broadcast %425 : vector<8x1xf32> to vector<8x256xf32>
    %428 = vector.broadcast %426 : vector<1x256xf32> to vector<8x256xf32>
    %429 = arith.mulf %427, %428 : vector<8x256xf32>
    %430 = arith.addf %423, %429 : vector<8x256xf32>
    %c33 = arith.constant 33 : index
    %c0_174 = arith.constant 0 : index
    %c0_175 = arith.constant 0 : index
    %431 = vector.load %arg9[%c33, %c0_174, %c0_175] : memref<48x8x1xf32, #tpu.memory_space<vmem>>, vector<1x8x1xf32>
    %432 = vector.shape_cast %431 : vector<1x8x1xf32> to vector<8x1xf32>
    %433 = vector.extract_strided_slice %198 {offsets = [33, 0], sizes = [1, 256], strides = [1, 1]} : vector<48x256xf32> to vector<1x256xf32>
    %434 = vector.broadcast %432 : vector<8x1xf32> to vector<8x256xf32>
    %435 = vector.broadcast %433 : vector<1x256xf32> to vector<8x256xf32>
    %436 = arith.mulf %434, %435 : vector<8x256xf32>
    %437 = arith.addf %430, %436 : vector<8x256xf32>
    %c34 = arith.constant 34 : index
    %c0_176 = arith.constant 0 : index
    %c0_177 = arith.constant 0 : index
    %438 = vector.load %arg9[%c34, %c0_176, %c0_177] : memref<48x8x1xf32, #tpu.memory_space<vmem>>, vector<1x8x1xf32>
    %439 = vector.shape_cast %438 : vector<1x8x1xf32> to vector<8x1xf32>
    %440 = vector.extract_strided_slice %198 {offsets = [34, 0], sizes = [1, 256], strides = [1, 1]} : vector<48x256xf32> to vector<1x256xf32>
    %441 = vector.broadcast %439 : vector<8x1xf32> to vector<8x256xf32>
    %442 = vector.broadcast %440 : vector<1x256xf32> to vector<8x256xf32>
    %443 = arith.mulf %441, %442 : vector<8x256xf32>
    %444 = arith.addf %437, %443 : vector<8x256xf32>
    %c35 = arith.constant 35 : index
    %c0_178 = arith.constant 0 : index
    %c0_179 = arith.constant 0 : index
    %445 = vector.load %arg9[%c35, %c0_178, %c0_179] : memref<48x8x1xf32, #tpu.memory_space<vmem>>, vector<1x8x1xf32>
    %446 = vector.shape_cast %445 : vector<1x8x1xf32> to vector<8x1xf32>
    %447 = vector.extract_strided_slice %198 {offsets = [35, 0], sizes = [1, 256], strides = [1, 1]} : vector<48x256xf32> to vector<1x256xf32>
    %448 = vector.broadcast %446 : vector<8x1xf32> to vector<8x256xf32>
    %449 = vector.broadcast %447 : vector<1x256xf32> to vector<8x256xf32>
    %450 = arith.mulf %448, %449 : vector<8x256xf32>
    %451 = arith.addf %444, %450 : vector<8x256xf32>
    %c36 = arith.constant 36 : index
    %c0_180 = arith.constant 0 : index
    %c0_181 = arith.constant 0 : index
    %452 = vector.load %arg9[%c36, %c0_180, %c0_181] : memref<48x8x1xf32, #tpu.memory_space<vmem>>, vector<1x8x1xf32>
    %453 = vector.shape_cast %452 : vector<1x8x1xf32> to vector<8x1xf32>
    %454 = vector.extract_strided_slice %198 {offsets = [36, 0], sizes = [1, 256], strides = [1, 1]} : vector<48x256xf32> to vector<1x256xf32>
    %455 = vector.broadcast %453 : vector<8x1xf32> to vector<8x256xf32>
    %456 = vector.broadcast %454 : vector<1x256xf32> to vector<8x256xf32>
    %457 = arith.mulf %455, %456 : vector<8x256xf32>
    %458 = arith.addf %451, %457 : vector<8x256xf32>
    %c37 = arith.constant 37 : index
    %c0_182 = arith.constant 0 : index
    %c0_183 = arith.constant 0 : index
    %459 = vector.load %arg9[%c37, %c0_182, %c0_183] : memref<48x8x1xf32, #tpu.memory_space<vmem>>, vector<1x8x1xf32>
    %460 = vector.shape_cast %459 : vector<1x8x1xf32> to vector<8x1xf32>
    %461 = vector.extract_strided_slice %198 {offsets = [37, 0], sizes = [1, 256], strides = [1, 1]} : vector<48x256xf32> to vector<1x256xf32>
    %462 = vector.broadcast %460 : vector<8x1xf32> to vector<8x256xf32>
    %463 = vector.broadcast %461 : vector<1x256xf32> to vector<8x256xf32>
    %464 = arith.mulf %462, %463 : vector<8x256xf32>
    %465 = arith.addf %458, %464 : vector<8x256xf32>
    %c38 = arith.constant 38 : index
    %c0_184 = arith.constant 0 : index
    %c0_185 = arith.constant 0 : index
    %466 = vector.load %arg9[%c38, %c0_184, %c0_185] : memref<48x8x1xf32, #tpu.memory_space<vmem>>, vector<1x8x1xf32>
    %467 = vector.shape_cast %466 : vector<1x8x1xf32> to vector<8x1xf32>
    %468 = vector.extract_strided_slice %198 {offsets = [38, 0], sizes = [1, 256], strides = [1, 1]} : vector<48x256xf32> to vector<1x256xf32>
    %469 = vector.broadcast %467 : vector<8x1xf32> to vector<8x256xf32>
    %470 = vector.broadcast %468 : vector<1x256xf32> to vector<8x256xf32>
    %471 = arith.mulf %469, %470 : vector<8x256xf32>
    %472 = arith.addf %465, %471 : vector<8x256xf32>
    %c39 = arith.constant 39 : index
    %c0_186 = arith.constant 0 : index
    %c0_187 = arith.constant 0 : index
    %473 = vector.load %arg9[%c39, %c0_186, %c0_187] : memref<48x8x1xf32, #tpu.memory_space<vmem>>, vector<1x8x1xf32>
    %474 = vector.shape_cast %473 : vector<1x8x1xf32> to vector<8x1xf32>
    %475 = vector.extract_strided_slice %198 {offsets = [39, 0], sizes = [1, 256], strides = [1, 1]} : vector<48x256xf32> to vector<1x256xf32>
    %476 = vector.broadcast %474 : vector<8x1xf32> to vector<8x256xf32>
    %477 = vector.broadcast %475 : vector<1x256xf32> to vector<8x256xf32>
    %478 = arith.mulf %476, %477 : vector<8x256xf32>
    %479 = arith.addf %472, %478 : vector<8x256xf32>
    %c40 = arith.constant 40 : index
    %c0_188 = arith.constant 0 : index
    %c0_189 = arith.constant 0 : index
    %480 = vector.load %arg9[%c40, %c0_188, %c0_189] : memref<48x8x1xf32, #tpu.memory_space<vmem>>, vector<1x8x1xf32>
    %481 = vector.shape_cast %480 : vector<1x8x1xf32> to vector<8x1xf32>
    %482 = vector.extract_strided_slice %198 {offsets = [40, 0], sizes = [1, 256], strides = [1, 1]} : vector<48x256xf32> to vector<1x256xf32>
    %483 = vector.broadcast %481 : vector<8x1xf32> to vector<8x256xf32>
    %484 = vector.broadcast %482 : vector<1x256xf32> to vector<8x256xf32>
    %485 = arith.mulf %483, %484 : vector<8x256xf32>
    %486 = arith.addf %479, %485 : vector<8x256xf32>
    %c41 = arith.constant 41 : index
    %c0_190 = arith.constant 0 : index
    %c0_191 = arith.constant 0 : index
    %487 = vector.load %arg9[%c41, %c0_190, %c0_191] : memref<48x8x1xf32, #tpu.memory_space<vmem>>, vector<1x8x1xf32>
    %488 = vector.shape_cast %487 : vector<1x8x1xf32> to vector<8x1xf32>
    %489 = vector.extract_strided_slice %198 {offsets = [41, 0], sizes = [1, 256], strides = [1, 1]} : vector<48x256xf32> to vector<1x256xf32>
    %490 = vector.broadcast %488 : vector<8x1xf32> to vector<8x256xf32>
    %491 = vector.broadcast %489 : vector<1x256xf32> to vector<8x256xf32>
    %492 = arith.mulf %490, %491 : vector<8x256xf32>
    %493 = arith.addf %486, %492 : vector<8x256xf32>
    %c42 = arith.constant 42 : index
    %c0_192 = arith.constant 0 : index
    %c0_193 = arith.constant 0 : index
    %494 = vector.load %arg9[%c42, %c0_192, %c0_193] : memref<48x8x1xf32, #tpu.memory_space<vmem>>, vector<1x8x1xf32>
    %495 = vector.shape_cast %494 : vector<1x8x1xf32> to vector<8x1xf32>
    %496 = vector.extract_strided_slice %198 {offsets = [42, 0], sizes = [1, 256], strides = [1, 1]} : vector<48x256xf32> to vector<1x256xf32>
    %497 = vector.broadcast %495 : vector<8x1xf32> to vector<8x256xf32>
    %498 = vector.broadcast %496 : vector<1x256xf32> to vector<8x256xf32>
    %499 = arith.mulf %497, %498 : vector<8x256xf32>
    %500 = arith.addf %493, %499 : vector<8x256xf32>
    %c43 = arith.constant 43 : index
    %c0_194 = arith.constant 0 : index
    %c0_195 = arith.constant 0 : index
    %501 = vector.load %arg9[%c43, %c0_194, %c0_195] : memref<48x8x1xf32, #tpu.memory_space<vmem>>, vector<1x8x1xf32>
    %502 = vector.shape_cast %501 : vector<1x8x1xf32> to vector<8x1xf32>
    %503 = vector.extract_strided_slice %198 {offsets = [43, 0], sizes = [1, 256], strides = [1, 1]} : vector<48x256xf32> to vector<1x256xf32>
    %504 = vector.broadcast %502 : vector<8x1xf32> to vector<8x256xf32>
    %505 = vector.broadcast %503 : vector<1x256xf32> to vector<8x256xf32>
    %506 = arith.mulf %504, %505 : vector<8x256xf32>
    %507 = arith.addf %500, %506 : vector<8x256xf32>
    %c44 = arith.constant 44 : index
    %c0_196 = arith.constant 0 : index
    %c0_197 = arith.constant 0 : index
    %508 = vector.load %arg9[%c44, %c0_196, %c0_197] : memref<48x8x1xf32, #tpu.memory_space<vmem>>, vector<1x8x1xf32>
    %509 = vector.shape_cast %508 : vector<1x8x1xf32> to vector<8x1xf32>
    %510 = vector.extract_strided_slice %198 {offsets = [44, 0], sizes = [1, 256], strides = [1, 1]} : vector<48x256xf32> to vector<1x256xf32>
    %511 = vector.broadcast %509 : vector<8x1xf32> to vector<8x256xf32>
    %512 = vector.broadcast %510 : vector<1x256xf32> to vector<8x256xf32>
    %513 = arith.mulf %511, %512 : vector<8x256xf32>
    %514 = arith.addf %507, %513 : vector<8x256xf32>
    %c45 = arith.constant 45 : index
    %c0_198 = arith.constant 0 : index
    %c0_199 = arith.constant 0 : index
    %515 = vector.load %arg9[%c45, %c0_198, %c0_199] : memref<48x8x1xf32, #tpu.memory_space<vmem>>, vector<1x8x1xf32>
    %516 = vector.shape_cast %515 : vector<1x8x1xf32> to vector<8x1xf32>
    %517 = vector.extract_strided_slice %198 {offsets = [45, 0], sizes = [1, 256], strides = [1, 1]} : vector<48x256xf32> to vector<1x256xf32>
    %518 = vector.broadcast %516 : vector<8x1xf32> to vector<8x256xf32>
    %519 = vector.broadcast %517 : vector<1x256xf32> to vector<8x256xf32>
    %520 = arith.mulf %518, %519 : vector<8x256xf32>
    %521 = arith.addf %514, %520 : vector<8x256xf32>
    %c46 = arith.constant 46 : index
    %c0_200 = arith.constant 0 : index
    %c0_201 = arith.constant 0 : index
    %522 = vector.load %arg9[%c46, %c0_200, %c0_201] : memref<48x8x1xf32, #tpu.memory_space<vmem>>, vector<1x8x1xf32>
    %523 = vector.shape_cast %522 : vector<1x8x1xf32> to vector<8x1xf32>
    %524 = vector.extract_strided_slice %198 {offsets = [46, 0], sizes = [1, 256], strides = [1, 1]} : vector<48x256xf32> to vector<1x256xf32>
    %525 = vector.broadcast %523 : vector<8x1xf32> to vector<8x256xf32>
    %526 = vector.broadcast %524 : vector<1x256xf32> to vector<8x256xf32>
    %527 = arith.mulf %525, %526 : vector<8x256xf32>
    %528 = arith.addf %521, %527 : vector<8x256xf32>
    %c47 = arith.constant 47 : index
    %c0_202 = arith.constant 0 : index
    %c0_203 = arith.constant 0 : index
    %529 = vector.load %arg9[%c47, %c0_202, %c0_203] : memref<48x8x1xf32, #tpu.memory_space<vmem>>, vector<1x8x1xf32>
    %530 = vector.shape_cast %529 : vector<1x8x1xf32> to vector<8x1xf32>
    %531 = vector.extract_strided_slice %198 {offsets = [47, 0], sizes = [1, 256], strides = [1, 1]} : vector<48x256xf32> to vector<1x256xf32>
    %532 = vector.broadcast %530 : vector<8x1xf32> to vector<8x256xf32>
    %533 = vector.broadcast %531 : vector<1x256xf32> to vector<8x256xf32>
    %534 = arith.mulf %532, %533 : vector<8x256xf32>
    %535 = arith.addf %528, %534 : vector<8x256xf32>
    %c0_204 = arith.constant 0 : index
    %c0_205 = arith.constant 0 : index
    %536 = vector.load %arg10[%c0_204, %c0_205] : memref<8x1xf32, #tpu.memory_space<vmem>>, vector<8x1xf32>
    %537 = vector.broadcast %536 : vector<8x1xf32> to vector<8x256xf32>
    %538 = arith.addf %535, %537 : vector<8x256xf32>
    %c0_206 = arith.constant 0 : index
    %c0_207 = arith.constant 0 : index
    %c0_208 = arith.constant 0 : index
    %539 = vector.load %arg11[%c0_206, %c0_207, %c0_208] : memref<1x8x256xf32, #tpu.memory_space<vmem>>, vector<1x8x256xf32>
    %540 = vector.shape_cast %539 : vector<1x8x256xf32> to vector<8x256xf32>
    %541 = vector.shape_cast %538 : vector<8x256xf32> to vector<1x8x256xf32>
    tpu.vector_store %arg11[%c0_206, %c0_207, %c0_208], %541 {strides = array<i32>} : memref<1x8x256xf32, #tpu.memory_space<vmem>>, vector<1x8x256xf32>,
    return
  }
  func.func @transform_0(%arg0: i32) -> (i32, i32, i32) {
    %c0_i32 = arith.constant 0 : i32
    %c0_i32_0 = arith.constant 0 : i32
    %c0_i32_1 = arith.constant 0 : i32
    return %arg0, %c0_i32, %c0_i32_0 : i32, i32, i32
  }
  func.func @transform_1(%arg0: i32) -> (i32, i32, i32) {
    %c0_i32 = arith.constant 0 : i32
    %c0_i32_0 = arith.constant 0 : i32
    %c0_i32_1 = arith.constant 0 : i32
    %c0_i32_2 = arith.constant 0 : i32
    return %c0_i32, %c0_i32_0, %c0_i32_1 : i32, i32, i32
  }
  func.func @transform_2(%arg0: i32) -> (i32, i32, i32) {
    %c0_i32 = arith.constant 0 : i32
    %c0_i32_0 = arith.constant 0 : i32
    %c0_i32_1 = arith.constant 0 : i32
    %c0_i32_2 = arith.constant 0 : i32
    return %c0_i32, %c0_i32_0, %c0_i32_1 : i32, i32, i32
  }
  func.func @transform_3(%arg0: i32) -> (i32, i32) {
    %c0_i32 = arith.constant 0 : i32
    %c0_i32_0 = arith.constant 0 : i32
    %c0_i32_1 = arith.constant 0 : i32
    return %c0_i32, %c0_i32_0 : i32, i32
  }
  func.func @transform_4(%arg0: i32) -> (i32, i32, i32) {
    %c0_i32 = arith.constant 0 : i32
    %c0_i32_0 = arith.constant 0 : i32
    %c0_i32_1 = arith.constant 0 : i32
    %c0_i32_2 = arith.constant 0 : i32
    return %c0_i32, %c0_i32_0, %c0_i32_1 : i32, i32, i32
  }
  func.func @transform_5(%arg0: i32) -> (i32, i32) {
    %c0_i32 = arith.constant 0 : i32
    %c0_i32_0 = arith.constant 0 : i32
    %c0_i32_1 = arith.constant 0 : i32
    return %c0_i32, %c0_i32_0 : i32, i32
  }
  func.func @transform_6(%arg0: i32) -> (i32, i32, i32) {
    %c0_i32 = arith.constant 0 : i32
    %c0_i32_0 = arith.constant 0 : i32
    %c0_i32_1 = arith.constant 0 : i32
    %c0_i32_2 = arith.constant 0 : i32
    return %c0_i32, %c0_i32_0, %c0_i32_1 : i32, i32, i32
  }
  func.func @transform_7(%arg0: i32) -> (i32, i32) {
    %c0_i32 = arith.constant 0 : i32
    %c0_i32_0 = arith.constant 0 : i32
    %c0_i32_1 = arith.constant 0 : i32
    return %c0_i32, %c0_i32_0 : i32, i32
  }
  func.func @transform_8(%arg0: i32) -> (i32, i32, i32) {
    %c0_i32 = arith.constant 0 : i32
    %c0_i32_0 = arith.constant 0 : i32
    %c0_i32_1 = arith.constant 0 : i32
    %c0_i32_2 = arith.constant 0 : i32
    return %c0_i32, %c0_i32_0, %c0_i32_1 : i32, i32, i32
  }
  func.func @transform_9(%arg0: i32) -> (i32, i32) {
    %c0_i32 = arith.constant 0 : i32
    %c0_i32_0 = arith.constant 0 : i32
    %c0_i32_1 = arith.constant 0 : i32
    return %c0_i32, %c0_i32_0 : i32, i32
  }
  func.func @transform_10(%arg0: i32) -> (i32, i32, i32) {
    %c0_i32 = arith.constant 0 : i32
    %c0_i32_0 = arith.constant 0 : i32
    %c0_i32_1 = arith.constant 0 : i32
    return %arg0, %c0_i32, %c0_i32_0 : i32, i32, i32
  }
}

</mosaic_0001>

<llo_original>
// kernel: tpu_custom_call.1
$region0: #{tpu_custom_call.1}
  #allocation0 [shape = 'u32[]', space=smem, size = 0x4, offset = 0x4, fixed_abs, tag = 'smem constant byte address 0x4 - core index']
  #allocation1 [shape = 'u32[144,128]{1,0:T(1,128)}', space=vmem, size = 0x12000, scoped, tag = 'internal scratch']
  %s0 = inlined_call_operand.vmem [shape: f32[2,4,256], index: 0, kind: input, shape index: {}]
  %s1 = inlined_call_operand.vmem [shape: f32[9,1,256], index: 1, kind: input, shape index: {}]
  %s2 = inlined_call_operand.vmem [shape: f32[4,8,1], index: 2, kind: input, shape index: {}]
  %s3 = inlined_call_operand.vmem [shape: f32[8,1], index: 3, kind: input, shape index: {}]
  %s4 = inlined_call_operand.vmem [shape: f32[8,48,1], index: 4, kind: input, shape index: {}]
  %s5 = inlined_call_operand.vmem [shape: f32[48,1], index: 5, kind: input, shape index: {}]
  %s6 = inlined_call_operand.vmem [shape: f32[9,48,1], index: 6, kind: input, shape index: {}]
  %s7 = inlined_call_operand.vmem [shape: f32[48,1], index: 7, kind: input, shape index: {}]
  %s8 = inlined_call_operand.vmem [shape: f32[48,8,1], index: 8, kind: input, shape index: {}]
  %s9 = inlined_call_operand.vmem [shape: f32[8,1], index: 9, kind: input, shape index: {}]
  %s10 = inlined_call_operand.hbm [shape: f32[2,8,256], index: 10, kind: output, shape index: {}]
  %s11 = sld [smem:[#allocation0]]
  $region73: #{tpu_custom_call.1} parent=0
    _
  %s13 = ssub.s32 1, %s11
  %s14 = scalar_select 0, %s13, %s11
  $region1: #{tpu_custom_call.1} parent=0
    #allocation2 [shape = 'u8[16384]{0}', space=vmem, size = 0x4000, scoped, tag = 'output window, operand 0']
    #allocation3 [shape = 's32[2]{0}', space=sflag, size = 0x8, scoped, tag = 'scoped memory for tpu_custom_call.1']
    %15 = vsyncpa [#allocation3], 0
    %s16 = scalar_lea.sflag [#allocation3], 1
    %17 = vsyncpa %s16, 0
    loop: start=0, step=1, limit=4
    $region2: #{tpu_custom_call.1} parent=1 // loop_pre_header
      _
    $region3: #{tpu_custom_call.1} parent=1 // loop_header
      %s19 = sphi 0, %s23
      %p20 = scmp.ge.s32.totalorder %s19, 4
      %s29 = sphi 0, %s31
      %s32 = sphi 0, %s29
      %s33 = sphi 0, %s32
      %s49 = sphi 0, %s33
      %s53 = sphi 0, %s53
      %s55 = sphi 0, %s53
      %s56 = sphi 0, %s55
      %s70 = sphi 0, %s56
      %s74 = sphi 0, %s74
      %s76 = sphi 0, %s74
      %s77 = sphi 0, %s76
      %s91 = sphi 0, %s77
      %s95 = sphi 0, %s95
      %s97 = sphi 0, %s95
      %s98 = sphi 0, %s97
      %s112 = sphi 0, %s98
      %s116 = sphi 0, %s116
      %s118 = sphi 0, %s116
      %s119 = sphi 0, %s118
      %s133 = sphi 0, %s119
      %s137 = sphi 0, %s137
      %s139 = sphi 0, %s137
      %s140 = sphi 0, %s139
      %s154 = sphi 0, %s140
      %s158 = sphi 0, %s158
      %s160 = sphi 0, %s158
      %s161 = sphi 0, %s160
      %s175 = sphi 0, %s161
      %s179 = sphi 0, %s179
      %s181 = sphi 0, %s179
      %s182 = sphi 0, %s181
      %s196 = sphi 0, %s182
      %s200 = sphi 0, %s200
      %s202 = sphi 0, %s200
      %s203 = sphi 0, %s202
      %s217 = sphi 0, %s203
      %s221 = sphi 0, %s221
      %s223 = sphi 0, %s221
      %s224 = sphi 0, %s223
      %s238 = sphi 0, %s224
      %s244 = sphi 0, %s246
      %s247 = sphi 0, %s244
      %s248 = sphi 0, %s247
      %s264 = sphi 0, %s248
    $region4: #{tpu_custom_call.1} parent=1 // loop_header_branch
      %22 = sbr.rel (%p20) target = $region8
    $region5: #{tpu_custom_call.1} parent=1 // loop_body
      %s24 = ssub.s32 %s19, 1
      %s25 = ssub.s32 %s19, 2
      %s26 = sadd.s32 %s19, 1
      %s27 = ssub.s32 %s19, %s26
      %p28 = scmp.eq.s32.totalorder %s27, 0
      %s30 = sadd.s32 %s29, 1
      %s31 = scalar_select %p28, %s29, %s30
      %p34 = pneg %p28
      %p35 = scmp.eq.s32.totalorder %s19, 1
      %p36 = por %p34, %p35
      %p37 = scmp.ne.s32.totalorder %s29, %s32
      %p38 = scmp.eq.s32.totalorder %s19, 0
      %p39 = por %p37, %p38
      %p40 = scmp.ne.s32.totalorder %s29, %s32
      %p41 = scmp.eq.s32.totalorder %s24, 1
      %p42 = por %p40, %p41
      %p43 = scmp.ne.s32.totalorder %s32, %s33
      %p44 = scmp.eq.s32.totalorder %s24, 0
      %p45 = por %p43, %p44
      %p46 = scmp.ne.s32.totalorder %s32, %s33
      %p47 = scmp.eq.s32.totalorder %s25, 1
      %p48 = por %p46, %p47
      %p50 = scmp.ne.s32.totalorder %s33, %s49
      %p51 = scmp.eq.s32.totalorder %s25, 0
      %p52 = por %p50, %p51
      %s54 = sadd.s32 %s53, 1
      %p57 = scmp.eq.s32.totalorder %s19, 1
      %p58 = scmp.ne.s32.totalorder %s53, %s55
      %p59 = scmp.eq.s32.totalorder %s19, 0
      %p60 = por %p58, %p59
      %p61 = scmp.ne.s32.totalorder %s53, %s55
      %p62 = scmp.eq.s32.totalorder %s24, 1
      %p63 = por %p61, %p62
      %p64 = scmp.ne.s32.totalorder %s55, %s56
      %p65 = scmp.eq.s32.totalorder %s24, 0
      %p66 = por %p64, %p65
      %p67 = scmp.ne.s32.totalorder %s55, %s56
      %p68 = scmp.eq.s32.totalorder %s25, 1
      %p69 = por %p67, %p68
      %p71 = scmp.ne.s32.totalorder %s56, %s70
      %p72 = scmp.eq.s32.totalorder %s25, 0
      %p73 = por %p71, %p72
      %s75 = sadd.s32 %s74, 1
      %p78 = scmp.eq.s32.totalorder %s19, 1
      %p79 = scmp.ne.s32.totalorder %s74, %s76
      %p80 = scmp.eq.s32.totalorder %s19, 0
      %p81 = por %p79, %p80
      %p82 = scmp.ne.s32.totalorder %s74, %s76
      %p83 = scmp.eq.s32.totalorder %s24, 1
      %p84 = por %p82, %p83
      %p85 = scmp.ne.s32.totalorder %s76, %s77
      %p86 = scmp.eq.s32.totalorder %s24, 0
      %p87 = por %p85, %p86
      %p88 = scmp.ne.s32.totalorder %s76, %s77
      %p89 = scmp.eq.s32.totalorder %s25, 1
      %p90 = por %p88, %p89
      %p92 = scmp.ne.s32.totalorder %s77, %s91
      %p93 = scmp.eq.s32.totalorder %s25, 0
      %p94 = por %p92, %p93
      %s96 = sadd.s32 %s95, 1
      %p99 = scmp.eq.s32.totalorder %s19, 1
      %p100 = scmp.ne.s32.totalorder %s95, %s97
      %p101 = scmp.eq.s32.totalorder %s19, 0
      %p102 = por %p100, %p101
      %p103 = scmp.ne.s32.totalorder %s95, %s97
      %p104 = scmp.eq.s32.totalorder %s24, 1
      %p105 = por %p103, %p104
      %p106 = scmp.ne.s32.totalorder %s97, %s98
      %p107 = scmp.eq.s32.totalorder %s24, 0
      %p108 = por %p106, %p107
      %p109 = scmp.ne.s32.totalorder %s97, %s98
      %p110 = scmp.eq.s32.totalorder %s25, 1
      %p111 = por %p109, %p110
      %p113 = scmp.ne.s32.totalorder %s98, %s112
      %p114 = scmp.eq.s32.totalorder %s25, 0
      %p115 = por %p113, %p114
      %s117 = sadd.s32 %s116, 1
      %p120 = scmp.eq.s32.totalorder %s19, 1
      %p121 = scmp.ne.s32.totalorder %s116, %s118
      %p122 = scmp.eq.s32.totalorder %s19, 0
      %p123 = por %p121, %p122
      %p124 = scmp.ne.s32.totalorder %s116, %s118
      %p125 = scmp.eq.s32.totalorder %s24, 1
      %p126 = por %p124, %p125
      %p127 = scmp.ne.s32.totalorder %s118, %s119
      %p128 = scmp.eq.s32.totalorder %s24, 0
      %p129 = por %p127, %p128
      %p130 = scmp.ne.s32.totalorder %s118, %s119
      %p131 = scmp.eq.s32.totalorder %s25, 1
      %p132 = por %p130, %p131
      %p134 = scmp.ne.s32.totalorder %s119, %s133
      %p135 = scmp.eq.s32.totalorder %s25, 0
      %p136 = por %p134, %p135
      %s138 = sadd.s32 %s137, 1
      %p141 = scmp.eq.s32.totalorder %s19, 1
      %p142 = scmp.ne.s32.totalorder %s137, %s139
      %p143 = scmp.eq.s32.totalorder %s19, 0
      %p144 = por %p142, %p143
      %p145 = scmp.ne.s32.totalorder %s137, %s139
      %p146 = scmp.eq.s32.totalorder %s24, 1
      %p147 = por %p145, %p146
      %p148 = scmp.ne.s32.totalorder %s139, %s140
      %p149 = scmp.eq.s32.totalorder %s24, 0
      %p150 = por %p148, %p149
      %p151 = scmp.ne.s32.totalorder %s139, %s140
      %p152 = scmp.eq.s32.totalorder %s25, 1
      %p153 = por %p151, %p152
      %p155 = scmp.ne.s32.totalorder %s140, %s154
      %p156 = scmp.eq.s32.totalorder %s25, 0
      %p157 = por %p155, %p156
      %s159 = sadd.s32 %s158, 1
      %p162 = scmp.eq.s32.totalorder %s19, 1
      %p163 = scmp.ne.s32.totalorder %s158, %s160
      %p164 = scmp.eq.s32.totalorder %s19, 0
      %p165 = por %p163, %p164
      %p166 = scmp.ne.s32.totalorder %s158, %s160
      %p167 = scmp.eq.s32.totalorder %s24, 1
      %p168 = por %p166, %p167
      %p169 = scmp.ne.s32.totalorder %s160, %s161
      %p170 = scmp.eq.s32.totalorder %s24, 0
      %p171 = por %p169, %p170
      %p172 = scmp.ne.s32.totalorder %s160, %s161
      %p173 = scmp.eq.s32.totalorder %s25, 1
      %p174 = por %p172, %p173
      %p176 = scmp.ne.s32.totalorder %s161, %s175
      %p177 = scmp.eq.s32.totalorder %s25, 0
      %p178 = por %p176, %p177
      %s180 = sadd.s32 %s179, 1
      %p183 = scmp.eq.s32.totalorder %s19, 1
      %p184 = scmp.ne.s32.totalorder %s179, %s181
      %p185 = scmp.eq.s32.totalorder %s19, 0
      %p186 = por %p184, %p185
      %p187 = scmp.ne.s32.totalorder %s179, %s181
      %p188 = scmp.eq.s32.totalorder %s24, 1
      %p189 = por %p187, %p188
      %p190 = scmp.ne.s32.totalorder %s181, %s182
      %p191 = scmp.eq.s32.totalorder %s24, 0
      %p192 = por %p190, %p191
      %p193 = scmp.ne.s32.totalorder %s181, %s182
      %p194 = scmp.eq.s32.totalorder %s25, 1
      %p195 = por %p193, %p194
      %p197 = scmp.ne.s32.totalorder %s182, %s196
      %p198 = scmp.eq.s32.totalorder %s25, 0
      %p199 = por %p197, %p198
      %s201 = sadd.s32 %s200, 1
      %p204 = scmp.eq.s32.totalorder %s19, 1
      %p205 = scmp.ne.s32.totalorder %s200, %s202
      %p206 = scmp.eq.s32.totalorder %s19, 0
      %p207 = por %p205, %p206
      %p208 = scmp.ne.s32.totalorder %s200, %s202
      %p209 = scmp.eq.s32.totalorder %s24, 1
      %p210 = por %p208, %p209
      %p211 = scmp.ne.s32.totalorder %s202, %s203
      %p212 = scmp.eq.s32.totalorder %s24, 0
      %p213 = por %p211, %p212
      %p214 = scmp.ne.s32.totalorder %s202, %s203
      %p215 = scmp.eq.s32.totalorder %s25, 1
      %p216 = por %p214, %p215
      %p218 = scmp.ne.s32.totalorder %s203, %s217
      %p219 = scmp.eq.s32.totalorder %s25, 0
      %p220 = por %p218, %p219
      %s222 = sadd.s32 %s221, 1
      %p225 = scmp.eq.s32.totalorder %s19, 1
      %p226 = scmp.ne.s32.totalorder %s221, %s223
      %p227 = scmp.eq.s32.totalorder %s19, 0
      %p228 = por %p226, %p227
      %p229 = scmp.ne.s32.totalorder %s221, %s223
      %p230 = scmp.eq.s32.totalorder %s24, 1
      %p231 = por %p229, %p230
      %p232 = scmp.ne.s32.totalorder %s223, %s224
      %p233 = scmp.eq.s32.totalorder %s24, 0
      %p234 = por %p232, %p233
      %p235 = scmp.ne.s32.totalorder %s223, %s224
      %p236 = scmp.eq.s32.totalorder %s25, 1
      %p237 = por %p235, %p236
      %p239 = scmp.ne.s32.totalorder %s224, %s238
      %p240 = scmp.eq.s32.totalorder %s25, 0
      %p241 = por %p239, %p240
      %s242 = ssub.s32 %s19, %s26
      %p243 = scmp.eq.s32.totalorder %s242, 0
      %s245 = sadd.s32 %s244, 1
      %s246 = scalar_select %p243, %s244, %s245
      %p249 = pneg %p243
      %p250 = scmp.eq.s32.totalorder %s19, 1
      %p251 = por %p249, %p250
      %p252 = scmp.ne.s32.totalorder %s244, %s247
      %p253 = scmp.eq.s32.totalorder %s19, 0
      %p254 = por %p252, %p253
      %p255 = scmp.ne.s32.totalorder %s244, %s247
      %p256 = scmp.eq.s32.totalorder %s24, 1
      %p257 = por %p255, %p256
      %p258 = scmp.ne.s32.totalorder %s247, %s248
      %p259 = scmp.eq.s32.totalorder %s24, 0
      %p260 = por %p258, %p259
      %p261 = scmp.ne.s32.totalorder %s247, %s248
      %p262 = scmp.eq.s32.totalorder %s25, 1
      %p263 = por %p261, %p262
      %p265 = scmp.ne.s32.totalorder %s248, %s264
      %p266 = scmp.eq.s32.totalorder %s25, 0
      %p267 = por %p265, %p266
      %p268 = scmp.le.s32.totalorder 1, %s19
      %p269 = scmp.lt.s32.totalorder %s19, 3
      %p270 = pnand %p268, %p269
      %p271 = pneg %p270
      // Predicated region
      $region9: #{tpu_custom_call.1} parent=5 // pred_check
        _
      $region10: #{tpu_custom_call.1} parent=5 // pred_check_branch
        %273 = sbr.rel (%p270) target = $region12
      $region11: #{tpu_custom_call.1} parent=5 // pred_region
        %s274 = ssub.s32 %s19, 1
        // Predicated region
        $region13: #{tpu_custom_call.1} parent=11 // pred_check
          %p275 = pneg %p66
        $region14: #{tpu_custom_call.1} parent=11 // pred_check_branch
          %277 = sbr.rel (%p275) target = $region16
        $region15: #{tpu_custom_call.1} parent=11 // pred_region
          _
        $region16: #{tpu_custom_call.1} parent=11 // pred_fallthru
          _
        // Predicated region
        $region17: #{tpu_custom_call.1} parent=11 // pred_check
          %p278 = pneg %p87
        $region18: #{tpu_custom_call.1} parent=11 // pred_check_branch
          %280 = sbr.rel (%p278) target = $region20
        $region19: #{tpu_custom_call.1} parent=11 // pred_region
          _
        $region20: #{tpu_custom_call.1} parent=11 // pred_fallthru
          _
        // Predicated region
        $region21: #{tpu_custom_call.1} parent=11 // pred_check
          %p281 = pneg %p108
        $region22: #{tpu_custom_call.1} parent=11 // pred_check_branch
          %283 = sbr.rel (%p281) target = $region24
        $region23: #{tpu_custom_call.1} parent=11 // pred_region
          _
        $region24: #{tpu_custom_call.1} parent=11 // pred_fallthru
          _
        // Predicated region
        $region25: #{tpu_custom_call.1} parent=11 // pred_check
          %p284 = pneg %p129
        $region26: #{tpu_custom_call.1} parent=11 // pred_check_branch
          %286 = sbr.rel (%p284) target = $region28
        $region27: #{tpu_custom_call.1} parent=11 // pred_region
          _
        $region28: #{tpu_custom_call.1} parent=11 // pred_fallthru
          _
        // Predicated region
        $region29: #{tpu_custom_call.1} parent=11 // pred_check
          %p287 = pneg %p150
        $region30: #{tpu_custom_call.1} parent=11 // pred_check_branch
          %289 = sbr.rel (%p287) target = $region32
        $region31: #{tpu_custom_call.1} parent=11 // pred_region
          _
        $region32: #{tpu_custom_call.1} parent=11 // pred_fallthru
          _
        // Predicated region
        $region33: #{tpu_custom_call.1} parent=11 // pred_check
          %p290 = pneg %p171
        $region34: #{tpu_custom_call.1} parent=11 // pred_check_branch
          %292 = sbr.rel (%p290) target = $region36
        $region35: #{tpu_custom_call.1} parent=11 // pred_region
          _
        $region36: #{tpu_custom_call.1} parent=11 // pred_fallthru
          _
        // Predicated region
        $region37: #{tpu_custom_call.1} parent=11 // pred_check
          %p293 = pneg %p192
        $region38: #{tpu_custom_call.1} parent=11 // pred_check_branch
          %295 = sbr.rel (%p293) target = $region40
        $region39: #{tpu_custom_call.1} parent=11 // pred_region
          _
        $region40: #{tpu_custom_call.1} parent=11 // pred_fallthru
          _
        // Predicated region
        $region41: #{tpu_custom_call.1} parent=11 // pred_check
          %p296 = pneg %p213
        $region42: #{tpu_custom_call.1} parent=11 // pred_check_branch
          %298 = sbr.rel (%p296) target = $region44
        $region43: #{tpu_custom_call.1} parent=11 // pred_region
          _
        $region44: #{tpu_custom_call.1} parent=11 // pred_fallthru
          _
        // Predicated region
        $region45: #{tpu_custom_call.1} parent=11 // pred_check
          %p299 = pneg %p234
        $region46: #{tpu_custom_call.1} parent=11 // pred_check_branch
          %301 = sbr.rel (%p299) target = $region48
        $region47: #{tpu_custom_call.1} parent=11 // pred_region
          _
        $region48: #{tpu_custom_call.1} parent=11 // pred_fallthru
          _
      $region12: #{tpu_custom_call.1} parent=5 // pred_fallthru
        _
      %p302 = scmp.lt.s32.totalorder %s19, 2
      // Predicated region
      $region49: #{tpu_custom_call.1} parent=5 // pred_check
        %p303 = pneg %p302
      $region50: #{tpu_custom_call.1} parent=5 // pred_check_branch
        %305 = sbr.rel (%p303) target = $region52
      $region51: #{tpu_custom_call.1} parent=5 // pred_region
        // Predicated region
        $region53: #{tpu_custom_call.1} parent=51 // pred_check
          %p306 = pneg %p39
        $region54: #{tpu_custom_call.1} parent=51 // pred_check_branch
          %308 = sbr.rel (%p306) target = $region56
        $region55: #{tpu_custom_call.1} parent=51 // pred_region
          %p309 = scmp.lt.s32.totalorder %s19, 1
          %s310 = scalar_select %p309, %s19, 1
          %s311 = smul.addr %s310, 2
          %s312 = smul.addr %s311, 4
          %s313 = scalar_lea.vmem %s0, %s312
        $region56: #{tpu_custom_call.1} parent=51 // pred_fallthru
          _
      $region52: #{tpu_custom_call.1} parent=5 // pred_fallthru
        _
      %p314 = scmp.le.s32.totalorder 1, %s19
      %p315 = scmp.lt.s32.totalorder %s19, 3
      %p316 = pnand %p314, %p315
      %p317 = pneg %p316
      // Predicated region
      $region57: #{tpu_custom_call.1} parent=5 // pred_check
        _
      $region58: #{tpu_custom_call.1} parent=5 // pred_check_branch
        %319 = sbr.rel (%p316) target = $region60
      $region59: #{tpu_custom_call.1} parent=5 // pred_region
        %s320 = ssub.s32 %s19, 1
        %p321 = scmp.lt.s32.totalorder %s24, 1
        %s322 = scalar_select %p321, %s24, 1
        %s323 = smul.addr %s322, 2
        %s324 = smul.addr %s323, 4
        %s325 = scalar_lea.vmem %s0, %s324
        %p326 = pneg %p45
        %p327 = pneg %p42
        %p328 = pneg %p66
        %p329 = pneg %p63
        %p330 = pneg %p87
        %p331 = pneg %p84
        %p332 = pneg %p108
        %p333 = pneg %p105
        %p334 = pneg %p129
        %p335 = pneg %p126
        %p336 = pneg %p150
        %p337 = pneg %p147
        %p338 = pneg %p171
        %p339 = pneg %p168
        %p340 = pneg %p192
        %p341 = pneg %p189
        %p342 = pneg %p213
        %p343 = pneg %p210
        %p344 = pneg %p234
        %p345 = pneg %p231
        %p346 = pneg %p260
        %p347 = pneg %p257
        %s348 = sand.u32 %s247, 1
        %s349 = scalar_lea.sflag [#allocation3], %s348
        %s350 = sand.u32 %s247, 1
        %s351 = smul.addr %s350, 16
        %s352 = scalar_lea.vmem [#allocation2], %s351
        %p353 = scmp.lt.s32.totalorder %s24, 1
        %s354 = scalar_select %p353, %s24, 1
        %s355 = smul.addr %s354, 2
        %s356 = smul.addr %s355, 4
        %s357 = scalar_lea.vmem %s0, %s356
        %v358 = vld [vmem:[%s357] sm:$0xff]
        %v359 = vld [vmem:[%s2] sm:$0xff]
        %361 = vset.pattern.permute.xlu0 0
        %362 = vperm.xlu0 %361, %v359
        %v363 = vpop.permute.xlu0 %362
        %v366 = vlaneseq
        %v367 = vshrl.u32 %v366, 7
        %v368 = vsub.s32 0, %v367
        %v369 = vrot.slane %v358, %v368
        %v370 = vlaneseq
        %v371 = vshrl.u32 %v370, 7
        %v372 = vsub.s32 4, %v371
        %v373 = vrot.slane %v358, %v372
        %v376 = vlaneseq
        %v377 = vshrl.u32 %v376, 7
        %v378 = vsub.s32 0, %v377
        %v379 = vrot.slane %v369, %v378
        %v380 = vlaneseq
        %v381 = vshrl.u32 %v380, 7
        %v382 = vsub.s32 0, %v381
        %v383 = vrot.slane %v373, %v382
        %v384 = vmul.f32 %v363, %v379
        %v385 = vmul.f32 %v363, %v383
        %v386 = vadd.f32 %v384, 0.0
        %v387 = vadd.f32 %v385, 0.0
        %s388 = scalar_lea.vmem %s2, 8
        %v389 = vld [vmem:[%s388] sm:$0xff]
        %391 = vset.pattern.permute.xlu0 0
        %392 = vperm.xlu0 %391, %v389
        %v393 = vpop.permute.xlu0 %392
        %v395 = vlaneseq
        %v396 = vshrl.u32 %v395, 7
        %v397 = vsub.s32 1, %v396
        %v398 = vrot.slane %v358, %v397
        %v399 = vlaneseq
        %v400 = vshrl.u32 %v399, 7
        %v401 = vsub.s32 5, %v400
        %v402 = vrot.slane %v358, %v401
        %v405 = vlaneseq
        %v406 = vshrl.u32 %v405, 7
        %v407 = vsub.s32 1, %v406
        %v408 = vrot.slane %v398, %v407
        %v409 = vlaneseq
        %v410 = vshrl.u32 %v409, 7
        %v411 = vsub.s32 1, %v410
        %v412 = vrot.slane %v402, %v411
        %v413 = vmul.f32 %v393, %v408
        %v414 = vmul.f32 %v393, %v412
        %v415 = vadd.f32 %v386, %v413
        %v416 = vadd.f32 %v387, %v414
        %s417 = scalar_lea.vmem %s2, 16
        %v418 = vld [vmem:[%s417] sm:$0xff]
        %420 = vset.pattern.permute.xlu0 0
        %421 = vperm.xlu0 %420, %v418
        %v422 = vpop.permute.xlu0 %421
        %v424 = vlaneseq
        %v425 = vshrl.u32 %v424, 7
        %v426 = vsub.s32 2, %v425
        %v427 = vrot.slane %v358, %v426
        %v428 = vlaneseq
        %v429 = vshrl.u32 %v428, 7
        %v430 = vsub.s32 6, %v429
        %v431 = vrot.slane %v358, %v430
        %v434 = vlaneseq
        %v435 = vshrl.u32 %v434, 7
        %v436 = vsub.s32 2, %v435
        %v437 = vrot.slane %v427, %v436
        %v438 = vlaneseq
        %v439 = vshrl.u32 %v438, 7
        %v440 = vsub.s32 2, %v439
        %v441 = vrot.slane %v431, %v440
        %v442 = vmul.f32 %v422, %v437
        %v443 = vmul.f32 %v422, %v441
        %v444 = vadd.f32 %v415, %v442
        %v445 = vadd.f32 %v416, %v443
        %s446 = scalar_lea.vmem %s2, 24
        %v447 = vld [vmem:[%s446] sm:$0xff]
        %449 = vset.pattern.permute.xlu0 0
        %450 = vperm.xlu0 %449, %v447
        %v451 = vpop.permute.xlu0 %450
        %v453 = vlaneseq
        %v454 = vshrl.u32 %v453, 7
        %v455 = vsub.s32 3, %v454
        %v456 = vrot.slane %v358, %v455
        %v457 = vlaneseq
        %v458 = vshrl.u32 %v457, 7
        %v459 = vsub.s32 7, %v458
        %v460 = vrot.slane %v358, %v459
        %v463 = vlaneseq
        %v464 = vshrl.u32 %v463, 7
        %v465 = vsub.s32 3, %v464
        %v466 = vrot.slane %v456, %v465
        %v467 = vlaneseq
        %v468 = vshrl.u32 %v467, 7
        %v469 = vsub.s32 3, %v468
        %v470 = vrot.slane %v460, %v469
        %v471 = vmul.f32 %v451, %v466
        %v472 = vmul.f32 %v451, %v470
        %v473 = vadd.f32 %v444, %v471
        %v474 = vadd.f32 %v445, %v472
        %v475 = vld [vmem:[%s3] sm:$0xff]
        %477 = vset.pattern.permute.xlu0 0
        %478 = vperm.xlu0 %477, %v475
        %v479 = vpop.permute.xlu0 %478
        %v481 = vadd.f32 %v473, %v479
        %v482 = vadd.f32 %v474, %v479
        %v483 = vmax.f32 %v481, 0.0
        %v484 = vmax.f32 %v482, 0.0
        %v485 = vmin.f32 %v483, 6.0
        %v486 = vmin.f32 %v484, 6.0
        %v487 = vld [vmem:[%s4] sm:$0xff]
        %v488 = vld [vmem:[%s4 + $0x8] sm:$0xff]
        %v489 = vld [vmem:[%s4 + $0x10] sm:$0xff]
        %v490 = vld [vmem:[%s4 + $0x18] sm:$0xff]
        %v491 = vld [vmem:[%s4 + $0x20] sm:$0xff]
        %v492 = vld [vmem:[%s4 + $0x28] sm:$0xff]
        %494 = vset.pattern.permute.xlu0 0
        %495 = vperm.xlu0 %494, %v487
        %v496 = vpop.permute.xlu0 %495
        %499 = vset.pattern.permute.xlu0 0
        %500 = vperm.xlu0 %499, %v488
        %v501 = vpop.permute.xlu0 %500
        %504 = vset.pattern.permute.xlu0 0
        %505 = vperm.xlu0 %504, %v489
        %v506 = vpop.permute.xlu0 %505
        %509 = vset.pattern.permute.xlu0 0
        %510 = vperm.xlu0 %509, %v490
        %v511 = vpop.permute.xlu0 %510
        %514 = vset.pattern.permute.xlu0 0
        %515 = vperm.xlu0 %514, %v491
        %v516 = vpop.permute.xlu0 %515
        %519 = vset.pattern.permute.xlu0 0
        %520 = vperm.xlu0 %519, %v492
        %v521 = vpop.permute.xlu0 %520
        %v523 = vlaneseq
        %v524 = vshrl.u32 %v523, 7
        %v525 = vsub.s32 0, %v524
        %v526 = vrot.slane %v485, %v525
        %v527 = vlaneseq
        %v528 = vshrl.u32 %v527, 7
        %v529 = vsub.s32 0, %v528
        %v530 = vrot.slane %v486, %v529
        %v531 = vmul.f32 %v496, %v526
        %v532 = vmul.f32 %v496, %v530
        %v533 = vmul.f32 %v501, %v526
        %v534 = vmul.f32 %v501, %v530
        %v535 = vmul.f32 %v506, %v526
        %v536 = vmul.f32 %v506, %v530
        %v537 = vmul.f32 %v511, %v526
        %v538 = vmul.f32 %v511, %v530
        %v539 = vmul.f32 %v516, %v526
        %v540 = vmul.f32 %v516, %v530
        %v541 = vmul.f32 %v521, %v526
        %v542 = vmul.f32 %v521, %v530
        %v543 = vadd.f32 %v531, 0.0
        %v544 = vadd.f32 %v532, 0.0
        %v545 = vadd.f32 %v533, 0.0
        %v546 = vadd.f32 %v534, 0.0
        %v547 = vadd.f32 %v535, 0.0
        %v548 = vadd.f32 %v536, 0.0
        %v549 = vadd.f32 %v537, 0.0
        %v550 = vadd.f32 %v538, 0.0
        %v551 = vadd.f32 %v539, 0.0
        %v552 = vadd.f32 %v540, 0.0
        %v553 = vadd.f32 %v541, 0.0
        %v554 = vadd.f32 %v542, 0.0
        %s555 = scalar_lea.vmem %s4, 48
        %v556 = vld [vmem:[%s555] sm:$0xff]
        %v557 = vld [vmem:[%s555 + $0x8] sm:$0xff]
        %v558 = vld [vmem:[%s555 + $0x10] sm:$0xff]
        %v559 = vld [vmem:[%s555 + $0x18] sm:$0xff]
        %v560 = vld [vmem:[%s555 + $0x20] sm:$0xff]
        %v561 = vld [vmem:[%s555 + $0x28] sm:$0xff]
        %563 = vset.pattern.permute.xlu0 0
        %564 = vperm.xlu0 %563, %v556
        %v565 = vpop.permute.xlu0 %564
        %568 = vset.pattern.permute.xlu0 0
        %569 = vperm.xlu0 %568, %v557
        %v570 = vpop.permute.xlu0 %569
        %573 = vset.pattern.permute.xlu0 0
        %574 = vperm.xlu0 %573, %v558
        %v575 = vpop.permute.xlu0 %574
        %578 = vset.pattern.permute.xlu0 0
        %579 = vperm.xlu0 %578, %v559
        %v580 = vpop.permute.xlu0 %579
        %583 = vset.pattern.permute.xlu0 0
        %584 = vperm.xlu0 %583, %v560
        %v585 = vpop.permute.xlu0 %584
        %588 = vset.pattern.permute.xlu0 0
        %589 = vperm.xlu0 %588, %v561
        %v590 = vpop.permute.xlu0 %589
        %v592 = vlaneseq
        %v593 = vshrl.u32 %v592, 7
        %v594 = vsub.s32 1, %v593
        %v595 = vrot.slane %v485, %v594
        %v596 = vlaneseq
        %v597 = vshrl.u32 %v596, 7
        %v598 = vsub.s32 1, %v597
        %v599 = vrot.slane %v486, %v598
        %v600 = vmul.f32 %v565, %v595
        %v601 = vmul.f32 %v565, %v599
        %v602 = vmul.f32 %v570, %v595
        %v603 = vmul.f32 %v570, %v599
        %v604 = vmul.f32 %v575, %v595
        %v605 = vmul.f32 %v575, %v599
        %v606 = vmul.f32 %v580, %v595
        %v607 = vmul.f32 %v580, %v599
        %v608 = vmul.f32 %v585, %v595
        %v609 = vmul.f32 %v585, %v599
        %v610 = vmul.f32 %v590, %v595
        %v611 = vmul.f32 %v590, %v599
        %v612 = vadd.f32 %v543, %v600
        %v613 = vadd.f32 %v544, %v601
        %v614 = vadd.f32 %v545, %v602
        %v615 = vadd.f32 %v546, %v603
        %v616 = vadd.f32 %v547, %v604
        %v617 = vadd.f32 %v548, %v605
        %v618 = vadd.f32 %v549, %v606
        %v619 = vadd.f32 %v550, %v607
        %v620 = vadd.f32 %v551, %v608
        %v621 = vadd.f32 %v552, %v609
        %v622 = vadd.f32 %v553, %v610
        %v623 = vadd.f32 %v554, %v611
        %s624 = scalar_lea.vmem %s4, 96
        %v625 = vld [vmem:[%s624] sm:$0xff]
        %v626 = vld [vmem:[%s624 + $0x8] sm:$0xff]
        %v627 = vld [vmem:[%s624 + $0x10] sm:$0xff]
        %v628 = vld [vmem:[%s624 + $0x18] sm:$0xff]
        %v629 = vld [vmem:[%s624 + $0x20] sm:$0xff]
        %v630 = vld [vmem:[%s624 + $0x28] sm:$0xff]
        %632 = vset.pattern.permute.xlu0 0
        %633 = vperm.xlu0 %632, %v625
        %v634 = vpop.permute.xlu0 %633
        %637 = vset.pattern.permute.xlu0 0
        %638 = vperm.xlu0 %637, %v626
        %v639 = vpop.permute.xlu0 %638
        %642 = vset.pattern.permute.xlu0 0
        %643 = vperm.xlu0 %642, %v627
        %v644 = vpop.permute.xlu0 %643
        %647 = vset.pattern.permute.xlu0 0
        %648 = vperm.xlu0 %647, %v628
        %v649 = vpop.permute.xlu0 %648
        %652 = vset.pattern.permute.xlu0 0
        %653 = vperm.xlu0 %652, %v629
        %v654 = vpop.permute.xlu0 %653
        %657 = vset.pattern.permute.xlu0 0
        %658 = vperm.xlu0 %657, %v630
        %v659 = vpop.permute.xlu0 %658
        %v661 = vlaneseq
        %v662 = vshrl.u32 %v661, 7
        %v663 = vsub.s32 2, %v662
        %v664 = vrot.slane %v485, %v663
        %v665 = vlaneseq
        %v666 = vshrl.u32 %v665, 7
        %v667 = vsub.s32 2, %v666
        %v668 = vrot.slane %v486, %v667
        %v669 = vmul.f32 %v634, %v664
        %v670 = vmul.f32 %v634, %v668
        %v671 = vmul.f32 %v639, %v664
        %v672 = vmul.f32 %v639, %v668
        %v673 = vmul.f32 %v644, %v664
        %v674 = vmul.f32 %v644, %v668
        %v675 = vmul.f32 %v649, %v664
        %v676 = vmul.f32 %v649, %v668
        %v677 = vmul.f32 %v654, %v664
        %v678 = vmul.f32 %v654, %v668
        %v679 = vmul.f32 %v659, %v664
        %v680 = vmul.f32 %v659, %v668
        %v681 = vadd.f32 %v612, %v669
        %v682 = vadd.f32 %v613, %v670
        %v683 = vadd.f32 %v614, %v671
        %v684 = vadd.f32 %v615, %v672
        %v685 = vadd.f32 %v616, %v673
        %v686 = vadd.f32 %v617, %v674
        %v687 = vadd.f32 %v618, %v675
        %v688 = vadd.f32 %v619, %v676
        %v689 = vadd.f32 %v620, %v677
        %v690 = vadd.f32 %v621, %v678
        %v691 = vadd.f32 %v622, %v679
        %v692 = vadd.f32 %v623, %v680
        %s693 = scalar_lea.vmem %s4, 144
        %v694 = vld [vmem:[%s693] sm:$0xff]
        %v695 = vld [vmem:[%s693 + $0x8] sm:$0xff]
        %v696 = vld [vmem:[%s693 + $0x10] sm:$0xff]
        %v697 = vld [vmem:[%s693 + $0x18] sm:$0xff]
        %v698 = vld [vmem:[%s693 + $0x20] sm:$0xff]
        %v699 = vld [vmem:[%s693 + $0x28] sm:$0xff]
        %701 = vset.pattern.permute.xlu0 0
        %702 = vperm.xlu0 %701, %v694
        %v703 = vpop.permute.xlu0 %702
        %706 = vset.pattern.permute.xlu0 0
        %707 = vperm.xlu0 %706, %v695
        %v708 = vpop.permute.xlu0 %707
        %711 = vset.pattern.permute.xlu0 0
        %712 = vperm.xlu0 %711, %v696
        %v713 = vpop.permute.xlu0 %712
        %716 = vset.pattern.permute.xlu0 0
        %717 = vperm.xlu0 %716, %v697
        %v718 = vpop.permute.xlu0 %717
        %721 = vset.pattern.permute.xlu0 0
        %722 = vperm.xlu0 %721, %v698
        %v723 = vpop.permute.xlu0 %722
        %726 = vset.pattern.permute.xlu0 0
        %727 = vperm.xlu0 %726, %v699
        %v728 = vpop.permute.xlu0 %727
        %v730 = vlaneseq
        %v731 = vshrl.u32 %v730, 7
        %v732 = vsub.s32 3, %v731
        %v733 = vrot.slane %v485, %v732
        %v734 = vlaneseq
        %v735 = vshrl.u32 %v734, 7
        %v736 = vsub.s32 3, %v735
        %v737 = vrot.slane %v486, %v736
        %v738 = vmul.f32 %v703, %v733
        %v739 = vmul.f32 %v703, %v737
        %v740 = vmul.f32 %v708, %v733
        %v741 = vmul.f32 %v708, %v737
        %v742 = vmul.f32 %v713, %v733
        %v743 = vmul.f32 %v713, %v737
        %v744 = vmul.f32 %v718, %v733
        %v745 = vmul.f32 %v718, %v737
        %v746 = vmul.f32 %v723, %v733
        %v747 = vmul.f32 %v723, %v737
        %v748 = vmul.f32 %v728, %v733
        %v749 = vmul.f32 %v728, %v737
        %v750 = vadd.f32 %v681, %v738
        %v751 = vadd.f32 %v682, %v739
        %v752 = vadd.f32 %v683, %v740
        %v753 = vadd.f32 %v684, %v741
        %v754 = vadd.f32 %v685, %v742
        %v755 = vadd.f32 %v686, %v743
        %v756 = vadd.f32 %v687, %v744
        %v757 = vadd.f32 %v688, %v745
        %v758 = vadd.f32 %v689, %v746
        %v759 = vadd.f32 %v690, %v747
        %v760 = vadd.f32 %v691, %v748
        %v761 = vadd.f32 %v692, %v749
        %s762 = scalar_lea.vmem %s4, 192
        %v763 = vld [vmem:[%s762] sm:$0xff]
        %v764 = vld [vmem:[%s762 + $0x8] sm:$0xff]
        %v765 = vld [vmem:[%s762 + $0x10] sm:$0xff]
        %v766 = vld [vmem:[%s762 + $0x18] sm:$0xff]
        %v767 = vld [vmem:[%s762 + $0x20] sm:$0xff]
        %v768 = vld [vmem:[%s762 + $0x28] sm:$0xff]
        %770 = vset.pattern.permute.xlu0 0
        %771 = vperm.xlu0 %770, %v763
        %v772 = vpop.permute.xlu0 %771
        %775 = vset.pattern.permute.xlu0 0
        %776 = vperm.xlu0 %775, %v764
        %v777 = vpop.permute.xlu0 %776
        %780 = vset.pattern.permute.xlu0 0
        %781 = vperm.xlu0 %780, %v765
        %v782 = vpop.permute.xlu0 %781
        %785 = vset.pattern.permute.xlu0 0
        %786 = vperm.xlu0 %785, %v766
        %v787 = vpop.permute.xlu0 %786
        %790 = vset.pattern.permute.xlu0 0
        %791 = vperm.xlu0 %790, %v767
        %v792 = vpop.permute.xlu0 %791
        %795 = vset.pattern.permute.xlu0 0
        %796 = vperm.xlu0 %795, %v768
        %v797 = vpop.permute.xlu0 %796
        %v799 = vlaneseq
        %v800 = vshrl.u32 %v799, 7
        %v801 = vsub.s32 4, %v800
        %v802 = vrot.slane %v485, %v801
        %v803 = vlaneseq
        %v804 = vshrl.u32 %v803, 7
        %v805 = vsub.s32 4, %v804
        %v806 = vrot.slane %v486, %v805
        %v807 = vmul.f32 %v772, %v802
        %v808 = vmul.f32 %v772, %v806
        %v809 = vmul.f32 %v777, %v802
        %v810 = vmul.f32 %v777, %v806
        %v811 = vmul.f32 %v782, %v802
        %v812 = vmul.f32 %v782, %v806
        %v813 = vmul.f32 %v787, %v802
        %v814 = vmul.f32 %v787, %v806
        %v815 = vmul.f32 %v792, %v802
        %v816 = vmul.f32 %v792, %v806
        %v817 = vmul.f32 %v797, %v802
        %v818 = vmul.f32 %v797, %v806
        %v819 = vadd.f32 %v750, %v807
        %v820 = vadd.f32 %v751, %v808
        %v821 = vadd.f32 %v752, %v809
        %v822 = vadd.f32 %v753, %v810
        %v823 = vadd.f32 %v754, %v811
        %v824 = vadd.f32 %v755, %v812
        %v825 = vadd.f32 %v756, %v813
        %v826 = vadd.f32 %v757, %v814
        %v827 = vadd.f32 %v758, %v815
        %v828 = vadd.f32 %v759, %v816
        %v829 = vadd.f32 %v760, %v817
        %v830 = vadd.f32 %v761, %v818
        %s831 = scalar_lea.vmem %s4, 240
        %v832 = vld [vmem:[%s831] sm:$0xff]
        %v833 = vld [vmem:[%s831 + $0x8] sm:$0xff]
        %v834 = vld [vmem:[%s831 + $0x10] sm:$0xff]
        %v835 = vld [vmem:[%s831 + $0x18] sm:$0xff]
        %v836 = vld [vmem:[%s831 + $0x20] sm:$0xff]
        %v837 = vld [vmem:[%s831 + $0x28] sm:$0xff]
        %839 = vset.pattern.permute.xlu0 0
        %840 = vperm.xlu0 %839, %v832
        %v841 = vpop.permute.xlu0 %840
        %844 = vset.pattern.permute.xlu0 0
        %845 = vperm.xlu0 %844, %v833
        %v846 = vpop.permute.xlu0 %845
        %849 = vset.pattern.permute.xlu0 0
        %850 = vperm.xlu0 %849, %v834
        %v851 = vpop.permute.xlu0 %850
        %854 = vset.pattern.permute.xlu0 0
        %855 = vperm.xlu0 %854, %v835
        %v856 = vpop.permute.xlu0 %855
        %859 = vset.pattern.permute.xlu0 0
        %860 = vperm.xlu0 %859, %v836
        %v861 = vpop.permute.xlu0 %860
        %864 = vset.pattern.permute.xlu0 0
        %865 = vperm.xlu0 %864, %v837
        %v866 = vpop.permute.xlu0 %865
        %v868 = vlaneseq
        %v869 = vshrl.u32 %v868, 7
        %v870 = vsub.s32 5, %v869
        %v871 = vrot.slane %v485, %v870
        %v872 = vlaneseq
        %v873 = vshrl.u32 %v872, 7
        %v874 = vsub.s32 5, %v873
        %v875 = vrot.slane %v486, %v874
        %v876 = vmul.f32 %v841, %v871
        %v877 = vmul.f32 %v841, %v875
        %v878 = vmul.f32 %v846, %v871
        %v879 = vmul.f32 %v846, %v875
        %v880 = vmul.f32 %v851, %v871
        %v881 = vmul.f32 %v851, %v875
        %v882 = vmul.f32 %v856, %v871
        %v883 = vmul.f32 %v856, %v875
        %v884 = vmul.f32 %v861, %v871
        %v885 = vmul.f32 %v861, %v875
        %v886 = vmul.f32 %v866, %v871
        %v887 = vmul.f32 %v866, %v875
        %v888 = vadd.f32 %v819, %v876
        %v889 = vadd.f32 %v820, %v877
        %v890 = vadd.f32 %v821, %v878
        %v891 = vadd.f32 %v822, %v879
        %v892 = vadd.f32 %v823, %v880
        %v893 = vadd.f32 %v824, %v881
        %v894 = vadd.f32 %v825, %v882
        %v895 = vadd.f32 %v826, %v883
        %v896 = vadd.f32 %v827, %v884
        %v897 = vadd.f32 %v828, %v885
        %v898 = vadd.f32 %v829, %v886
        %v899 = vadd.f32 %v830, %v887
        %s900 = scalar_lea.vmem %s4, 288
        %v901 = vld [vmem:[%s900] sm:$0xff]
        %v902 = vld [vmem:[%s900 + $0x8] sm:$0xff]
        %v903 = vld [vmem:[%s900 + $0x10] sm:$0xff]
        %v904 = vld [vmem:[%s900 + $0x18] sm:$0xff]
        %v905 = vld [vmem:[%s900 + $0x20] sm:$0xff]
        %v906 = vld [vmem:[%s900 + $0x28] sm:$0xff]
        %908 = vset.pattern.permute.xlu0 0
        %909 = vperm.xlu0 %908, %v901
        %v910 = vpop.permute.xlu0 %909
        %913 = vset.pattern.permute.xlu0 0
        %914 = vperm.xlu0 %913, %v902
        %v915 = vpop.permute.xlu0 %914
        %918 = vset.pattern.permute.xlu0 0
        %919 = vperm.xlu0 %918, %v903
        %v920 = vpop.permute.xlu0 %919
        %923 = vset.pattern.permute.xlu0 0
        %924 = vperm.xlu0 %923, %v904
        %v925 = vpop.permute.xlu0 %924
        %928 = vset.pattern.permute.xlu0 0
        %929 = vperm.xlu0 %928, %v905
        %v930 = vpop.permute.xlu0 %929
        %933 = vset.pattern.permute.xlu0 0
        %934 = vperm.xlu0 %933, %v906
        %v935 = vpop.permute.xlu0 %934
        %v937 = vlaneseq
        %v938 = vshrl.u32 %v937, 7
        %v939 = vsub.s32 6, %v938
        %v940 = vrot.slane %v485, %v939
        %v941 = vlaneseq
        %v942 = vshrl.u32 %v941, 7
        %v943 = vsub.s32 6, %v942
        %v944 = vrot.slane %v486, %v943
        %v945 = vmul.f32 %v910, %v940
        %v946 = vmul.f32 %v910, %v944
        %v947 = vmul.f32 %v915, %v940
        %v948 = vmul.f32 %v915, %v944
        %v949 = vmul.f32 %v920, %v940
        %v950 = vmul.f32 %v920, %v944
        %v951 = vmul.f32 %v925, %v940
        %v952 = vmul.f32 %v925, %v944
        %v953 = vmul.f32 %v930, %v940
        %v954 = vmul.f32 %v930, %v944
        %v955 = vmul.f32 %v935, %v940
        %v956 = vmul.f32 %v935, %v944
        %v957 = vadd.f32 %v888, %v945
        %v958 = vadd.f32 %v889, %v946
        %v959 = vadd.f32 %v890, %v947
        %v960 = vadd.f32 %v891, %v948
        %v961 = vadd.f32 %v892, %v949
        %v962 = vadd.f32 %v893, %v950
        %v963 = vadd.f32 %v894, %v951
        %v964 = vadd.f32 %v895, %v952
        %v965 = vadd.f32 %v896, %v953
        %v966 = vadd.f32 %v897, %v954
        %v967 = vadd.f32 %v898, %v955
        %v968 = vadd.f32 %v899, %v956
        %s969 = scalar_lea.vmem %s4, 336
        %v970 = vld [vmem:[%s969] sm:$0xff]
        %v971 = vld [vmem:[%s969 + $0x8] sm:$0xff]
        %v972 = vld [vmem:[%s969 + $0x10] sm:$0xff]
        %v973 = vld [vmem:[%s969 + $0x18] sm:$0xff]
        %v974 = vld [vmem:[%s969 + $0x20] sm:$0xff]
        %v975 = vld [vmem:[%s969 + $0x28] sm:$0xff]
        %977 = vset.pattern.permute.xlu0 0
        %978 = vperm.xlu0 %977, %v970
        %v979 = vpop.permute.xlu0 %978
        %982 = vset.pattern.permute.xlu0 0
        %983 = vperm.xlu0 %982, %v971
        %v984 = vpop.permute.xlu0 %983
        %987 = vset.pattern.permute.xlu0 0
        %988 = vperm.xlu0 %987, %v972
        %v989 = vpop.permute.xlu0 %988
        %992 = vset.pattern.permute.xlu0 0
        %993 = vperm.xlu0 %992, %v973
        %v994 = vpop.permute.xlu0 %993
        %997 = vset.pattern.permute.xlu0 0
        %998 = vperm.xlu0 %997, %v974
        %v999 = vpop.permute.xlu0 %998
        %1002 = vset.pattern.permute.xlu0 0
        %1003 = vperm.xlu0 %1002, %v975
        %v1004 = vpop.permute.xlu0 %1003
        %v1006 = vlaneseq
        %v1007 = vshrl.u32 %v1006, 7
        %v1008 = vsub.s32 7, %v1007
        %v1009 = vrot.slane %v485, %v1008
        %v1010 = vlaneseq
        %v1011 = vshrl.u32 %v1010, 7
        %v1012 = vsub.s32 7, %v1011
        %v1013 = vrot.slane %v486, %v1012
        %v1014 = vmul.f32 %v979, %v1009
        %v1015 = vmul.f32 %v979, %v1013
        %v1016 = vmul.f32 %v984, %v1009
        %v1017 = vmul.f32 %v984, %v1013
        %v1018 = vmul.f32 %v989, %v1009
        %v1019 = vmul.f32 %v989, %v1013
        %v1020 = vmul.f32 %v994, %v1009
        %v1021 = vmul.f32 %v994, %v1013
        %v1022 = vmul.f32 %v999, %v1009
        %v1023 = vmul.f32 %v999, %v1013
        %v1024 = vmul.f32 %v1004, %v1009
        %v1025 = vmul.f32 %v1004, %v1013
        %v1026 = vadd.f32 %v957, %v1014
        %v1027 = vadd.f32 %v958, %v1015
        %v1028 = vadd.f32 %v959, %v1016
        %v1029 = vadd.f32 %v960, %v1017
        %v1030 = vadd.f32 %v961, %v1018
        %v1031 = vadd.f32 %v962, %v1019
        %v1032 = vadd.f32 %v963, %v1020
        %v1033 = vadd.f32 %v964, %v1021
        %v1034 = vadd.f32 %v965, %v1022
        %v1035 = vadd.f32 %v966, %v1023
        %v1036 = vadd.f32 %v967, %v1024
        %v1037 = vadd.f32 %v968, %v1025
        %v1038 = vld [vmem:[%s5] sm:$0xff]
        %v1039 = vld [vmem:[%s5 + $0x8] sm:$0xff]
        %v1040 = vld [vmem:[%s5 + $0x10] sm:$0xff]
        %v1041 = vld [vmem:[%s5 + $0x18] sm:$0xff]
        %v1042 = vld [vmem:[%s5 + $0x20] sm:$0xff]
        %v1043 = vld [vmem:[%s5 + $0x28] sm:$0xff]
        %1045 = vset.pattern.permute.xlu0 0
        %1046 = vperm.xlu0 %1045, %v1038
        %v1047 = vpop.permute.xlu0 %1046
        %1050 = vset.pattern.permute.xlu0 0
        %1051 = vperm.xlu0 %1050, %v1039
        %v1052 = vpop.permute.xlu0 %1051
        %1055 = vset.pattern.permute.xlu0 0
        %1056 = vperm.xlu0 %1055, %v1040
        %v1057 = vpop.permute.xlu0 %1056
        %1060 = vset.pattern.permute.xlu0 0
        %1061 = vperm.xlu0 %1060, %v1041
        %v1062 = vpop.permute.xlu0 %1061
        %1065 = vset.pattern.permute.xlu0 0
        %1066 = vperm.xlu0 %1065, %v1042
        %v1067 = vpop.permute.xlu0 %1066
        %1070 = vset.pattern.permute.xlu0 0
        %1071 = vperm.xlu0 %1070, %v1043
        %v1072 = vpop.permute.xlu0 %1071
        %v1074 = vadd.f32 %v1026, %v1047
        %v1075 = vadd.f32 %v1027, %v1047
        %v1076 = vadd.f32 %v1028, %v1052
        %v1077 = vadd.f32 %v1029, %v1052
        %v1078 = vadd.f32 %v1030, %v1057
        %v1079 = vadd.f32 %v1031, %v1057
        %v1080 = vadd.f32 %v1032, %v1062
        %v1081 = vadd.f32 %v1033, %v1062
        %v1082 = vadd.f32 %v1034, %v1067
        %v1083 = vadd.f32 %v1035, %v1067
        %v1084 = vadd.f32 %v1036, %v1072
        %v1085 = vadd.f32 %v1037, %v1072
        %v1086 = vmax.f32 %v1074, 0.0
        %v1087 = vmax.f32 %v1075, 0.0
        %v1088 = vmax.f32 %v1076, 0.0
        %v1089 = vmax.f32 %v1077, 0.0
        %v1090 = vmax.f32 %v1078, 0.0
        %v1091 = vmax.f32 %v1079, 0.0
        %v1092 = vmax.f32 %v1080, 0.0
        %v1093 = vmax.f32 %v1081, 0.0
        %v1094 = vmax.f32 %v1082, 0.0
        %v1095 = vmax.f32 %v1083, 0.0
        %v1096 = vmax.f32 %v1084, 0.0
        %v1097 = vmax.f32 %v1085, 0.0
        %v1098 = vmin.f32 %v1086, 6.0
        %v1099 = vmin.f32 %v1087, 6.0
        %v1100 = vmin.f32 %v1088, 6.0
        %v1101 = vmin.f32 %v1089, 6.0
        %v1102 = vmin.f32 %v1090, 6.0
        %v1103 = vmin.f32 %v1091, 6.0
        %v1104 = vmin.f32 %v1092, 6.0
        %v1105 = vmin.f32 %v1093, 6.0
        %v1106 = vmin.f32 %v1094, 6.0
        %v1107 = vmin.f32 %v1095, 6.0
        %v1108 = vmin.f32 %v1096, 6.0
        %v1109 = vmin.f32 %v1097, 6.0
        %1110 = vrot.lane.b32.xlu0 %v1098, 17
        %v1111 = vpop.permute.xlu0 %1110
        %1112 = vrot.lane.b32.xlu0 %v1100, 17
        %v1113 = vpop.permute.xlu0 %1112
        %1114 = vrot.lane.b32.xlu0 %v1102, 17
        %v1115 = vpop.permute.xlu0 %1114
        %1116 = vrot.lane.b32.xlu0 %v1104, 17
        %v1117 = vpop.permute.xlu0 %1116
        %1118 = vrot.lane.b32.xlu0 %v1106, 17
        %v1119 = vpop.permute.xlu0 %1118
        %1120 = vrot.lane.b32.xlu0 %v1108, 17
        %v1121 = vpop.permute.xlu0 %1120
        %1122 = vrot.lane.b32.xlu0 %v1099, 17
        %v1123 = vpop.permute.xlu0 %1122
        %1124 = vrot.lane.b32.xlu0 %v1101, 17
        %v1125 = vpop.permute.xlu0 %1124
        %1126 = vrot.lane.b32.xlu0 %v1103, 17
        %v1127 = vpop.permute.xlu0 %1126
        %1128 = vrot.lane.b32.xlu0 %v1105, 17
        %v1129 = vpop.permute.xlu0 %1128
        %1130 = vrot.lane.b32.xlu0 %v1107, 17
        %v1131 = vpop.permute.xlu0 %1130
        %1132 = vrot.lane.b32.xlu0 %v1109, 17
        %v1133 = vpop.permute.xlu0 %1132
        %v1134 = vlaneseq
        %v1135 = vand.u32 %v1134, 127
        %vm1136 = vcmp.lt.s32.totalorder %v1135, 17
        %v1137 = vsel %vm1136, %v1111, %v1123
        %v1138 = vsel %vm1136, %v1113, %v1125
        %v1139 = vsel %vm1136, %v1115, %v1127
        %v1140 = vsel %vm1136, %v1117, %v1129
        %v1141 = vsel %vm1136, %v1119, %v1131
        %v1142 = vsel %vm1136, %v1121, %v1133
        %v1143 = vsel %vm1136, %v1123, %v1111
        %v1144 = vsel %vm1136, %v1125, %v1113
        %v1145 = vsel %vm1136, %v1127, %v1115
        %v1146 = vsel %vm1136, %v1129, %v1117
        %v1147 = vsel %vm1136, %v1131, %v1119
        %v1148 = vsel %vm1136, %v1133, %v1121
        %v1149 = vld [vmem:[%s1] sm:$0x3]
        %v1151 = vlaneseq
        %v1152 = vshrl.u32 %v1151, 7
        %v1153 = vsub.s32 0, %v1152
        %v1154 = vrot.slane %v1149, %v1153
        %v1155 = vlaneseq
        %v1156 = vshrl.u32 %v1155, 7
        %v1157 = vsub.s32 1, %v1156
        %v1158 = vrot.slane %v1149, %v1157
        %v1161 = vmul.f32 %v1143, %v1154
        %v1162 = vmul.f32 %v1137, %v1158
        %v1163 = vmul.f32 %v1144, %v1154
        %v1164 = vmul.f32 %v1138, %v1158
        %v1165 = vmul.f32 %v1145, %v1154
        %v1166 = vmul.f32 %v1139, %v1158
        %v1167 = vmul.f32 %v1146, %v1154
        %v1168 = vmul.f32 %v1140, %v1158
        %v1169 = vmul.f32 %v1147, %v1154
        %v1170 = vmul.f32 %v1141, %v1158
        %v1171 = vmul.f32 %v1148, %v1154
        %v1172 = vmul.f32 %v1142, %v1158
        %v1173 = vld [vmem:[%s6] sm:$0xff]
        %v1174 = vld [vmem:[%s6 + $0x8] sm:$0xff]
        %v1175 = vld [vmem:[%s6 + $0x10] sm:$0xff]
        %v1176 = vld [vmem:[%s6 + $0x18] sm:$0xff]
        %v1177 = vld [vmem:[%s6 + $0x20] sm:$0xff]
        %v1178 = vld [vmem:[%s6 + $0x28] sm:$0xff]
        %1180 = vset.pattern.permute.xlu0 0
        %1181 = vperm.xlu0 %1180, %v1173
        %v1182 = vpop.permute.xlu0 %1181
        %1185 = vset.pattern.permute.xlu0 0
        %1186 = vperm.xlu0 %1185, %v1174
        %v1187 = vpop.permute.xlu0 %1186
        %1190 = vset.pattern.permute.xlu0 0
        %1191 = vperm.xlu0 %1190, %v1175
        %v1192 = vpop.permute.xlu0 %1191
        %1195 = vset.pattern.permute.xlu0 0
        %1196 = vperm.xlu0 %1195, %v1176
        %v1197 = vpop.permute.xlu0 %1196
        %1200 = vset.pattern.permute.xlu0 0
        %1201 = vperm.xlu0 %1200, %v1177
        %v1202 = vpop.permute.xlu0 %1201
        %1205 = vset.pattern.permute.xlu0 0
        %1206 = vperm.xlu0 %1205, %v1178
        %v1207 = vpop.permute.xlu0 %1206
        %v1209 = vmul.f32 %v1161, %v1182
        %v1210 = vmul.f32 %v1162, %v1182
        %v1211 = vmul.f32 %v1163, %v1187
        %v1212 = vmul.f32 %v1164, %v1187
        %v1213 = vmul.f32 %v1165, %v1192
        %v1214 = vmul.f32 %v1166, %v1192
        %v1215 = vmul.f32 %v1167, %v1197
        %v1216 = vmul.f32 %v1168, %v1197
        %v1217 = vmul.f32 %v1169, %v1202
        %v1218 = vmul.f32 %v1170, %v1202
        %v1219 = vmul.f32 %v1171, %v1207
        %v1220 = vmul.f32 %v1172, %v1207
        %v1221 = vadd.f32 %v1209, 0.0
        %v1222 = vadd.f32 %v1210, 0.0
        %v1223 = vadd.f32 %v1211, 0.0
        %v1224 = vadd.f32 %v1212, 0.0
        %v1225 = vadd.f32 %v1213, 0.0
        %v1226 = vadd.f32 %v1214, 0.0
        %v1227 = vadd.f32 %v1215, 0.0
        %v1228 = vadd.f32 %v1216, 0.0
        %v1229 = vadd.f32 %v1217, 0.0
        %v1230 = vadd.f32 %v1218, 0.0
        %v1231 = vadd.f32 %v1219, 0.0
        %v1232 = vadd.f32 %v1220, 0.0
        %1233 = vrot.lane.b32.xlu0 %v1098, 16
        %v1234 = vpop.permute.xlu0 %1233
        %1235 = vrot.lane.b32.xlu0 %v1100, 16
        %v1236 = vpop.permute.xlu0 %1235
        %1237 = vrot.lane.b32.xlu0 %v1102, 16
        %v1238 = vpop.permute.xlu0 %1237
        %1239 = vrot.lane.b32.xlu0 %v1104, 16
        %v1240 = vpop.permute.xlu0 %1239
        %1241 = vrot.lane.b32.xlu0 %v1106, 16
        %v1242 = vpop.permute.xlu0 %1241
        %1243 = vrot.lane.b32.xlu0 %v1108, 16
        %v1244 = vpop.permute.xlu0 %1243
        %1245 = vrot.lane.b32.xlu0 %v1099, 16
        %v1246 = vpop.permute.xlu0 %1245
        %1247 = vrot.lane.b32.xlu0 %v1101, 16
        %v1248 = vpop.permute.xlu0 %1247
        %1249 = vrot.lane.b32.xlu0 %v1103, 16
        %v1250 = vpop.permute.xlu0 %1249
        %1251 = vrot.lane.b32.xlu0 %v1105, 16
        %v1252 = vpop.permute.xlu0 %1251
        %1253 = vrot.lane.b32.xlu0 %v1107, 16
        %v1254 = vpop.permute.xlu0 %1253
        %1255 = vrot.lane.b32.xlu0 %v1109, 16
        %v1256 = vpop.permute.xlu0 %1255
        %vm1257 = vcmp.lt.s32.totalorder %v1135, 16
        %v1258 = vsel %vm1257, %v1234, %v1246
        %v1259 = vsel %vm1257, %v1236, %v1248
        %v1260 = vsel %vm1257, %v1238, %v1250
        %v1261 = vsel %vm1257, %v1240, %v1252
        %v1262 = vsel %vm1257, %v1242, %v1254
        %v1263 = vsel %vm1257, %v1244, %v1256
        %v1264 = vsel %vm1257, %v1246, %v1234
        %v1265 = vsel %vm1257, %v1248, %v1236
        %v1266 = vsel %vm1257, %v1250, %v1238
        %v1267 = vsel %vm1257, %v1252, %v1240
        %v1268 = vsel %vm1257, %v1254, %v1242
        %v1269 = vsel %vm1257, %v1256, %v1244
        %s1270 = scalar_lea.vmem %s1, 2
        %v1271 = vld [vmem:[%s1270] sm:$0x3]
        %v1273 = vlaneseq
        %v1274 = vshrl.u32 %v1273, 7
        %v1275 = vsub.s32 0, %v1274
        %v1276 = vrot.slane %v1271, %v1275
        %v1277 = vlaneseq
        %v1278 = vshrl.u32 %v1277, 7
        %v1279 = vsub.s32 1, %v1278
        %v1280 = vrot.slane %v1271, %v1279
        %v1283 = vmul.f32 %v1264, %v1276
        %v1284 = vmul.f32 %v1258, %v1280
        %v1285 = vmul.f32 %v1265, %v1276
        %v1286 = vmul.f32 %v1259, %v1280
        %v1287 = vmul.f32 %v1266, %v1276
        %v1288 = vmul.f32 %v1260, %v1280
        %v1289 = vmul.f32 %v1267, %v1276
        %v1290 = vmul.f32 %v1261, %v1280
        %v1291 = vmul.f32 %v1268, %v1276
        %v1292 = vmul.f32 %v1262, %v1280
        %v1293 = vmul.f32 %v1269, %v1276
        %v1294 = vmul.f32 %v1263, %v1280
        %s1295 = scalar_lea.vmem %s6, 48
        %v1296 = vld [vmem:[%s1295] sm:$0xff]
        %v1297 = vld [vmem:[%s1295 + $0x8] sm:$0xff]
        %v1298 = vld [vmem:[%s1295 + $0x10] sm:$0xff]
        %v1299 = vld [vmem:[%s1295 + $0x18] sm:$0xff]
        %v1300 = vld [vmem:[%s1295 + $0x20] sm:$0xff]
        %v1301 = vld [vmem:[%s1295 + $0x28] sm:$0xff]
        %1303 = vset.pattern.permute.xlu0 0
        %1304 = vperm.xlu0 %1303, %v1296
        %v1305 = vpop.permute.xlu0 %1304
        %1308 = vset.pattern.permute.xlu0 0
        %1309 = vperm.xlu0 %1308, %v1297
        %v1310 = vpop.permute.xlu0 %1309
        %1313 = vset.pattern.permute.xlu0 0
        %1314 = vperm.xlu0 %1313, %v1298
        %v1315 = vpop.permute.xlu0 %1314
        %1318 = vset.pattern.permute.xlu0 0
        %1319 = vperm.xlu0 %1318, %v1299
        %v1320 = vpop.permute.xlu0 %1319
        %1323 = vset.pattern.permute.xlu0 0
        %1324 = vperm.xlu0 %1323, %v1300
        %v1325 = vpop.permute.xlu0 %1324
        %1328 = vset.pattern.permute.xlu0 0
        %1329 = vperm.xlu0 %1328, %v1301
        %v1330 = vpop.permute.xlu0 %1329
        %v1332 = vmul.f32 %v1283, %v1305
        %v1333 = vmul.f32 %v1284, %v1305
        %v1334 = vmul.f32 %v1285, %v1310
        %v1335 = vmul.f32 %v1286, %v1310
        %v1336 = vmul.f32 %v1287, %v1315
        %v1337 = vmul.f32 %v1288, %v1315
        %v1338 = vmul.f32 %v1289, %v1320
        %v1339 = vmul.f32 %v1290, %v1320
        %v1340 = vmul.f32 %v1291, %v1325
        %v1341 = vmul.f32 %v1292, %v1325
        %v1342 = vmul.f32 %v1293, %v1330
        %v1343 = vmul.f32 %v1294, %v1330
        %v1344 = vadd.f32 %v1221, %v1332
        %v1345 = vadd.f32 %v1222, %v1333
        %v1346 = vadd.f32 %v1223, %v1334
        %v1347 = vadd.f32 %v1224, %v1335
        %v1348 = vadd.f32 %v1225, %v1336
        %v1349 = vadd.f32 %v1226, %v1337
        %v1350 = vadd.f32 %v1227, %v1338
        %v1351 = vadd.f32 %v1228, %v1339
        %v1352 = vadd.f32 %v1229, %v1340
        %v1353 = vadd.f32 %v1230, %v1341
        %v1354 = vadd.f32 %v1231, %v1342
        %v1355 = vadd.f32 %v1232, %v1343
        %1356 = vrot.lane.b32.xlu0 %v1098, 15
        %v1357 = vpop.permute.xlu0 %1356
        %1358 = vrot.lane.b32.xlu0 %v1100, 15
        %v1359 = vpop.permute.xlu0 %1358
        %1360 = vrot.lane.b32.xlu0 %v1102, 15
        %v1361 = vpop.permute.xlu0 %1360
        %1362 = vrot.lane.b32.xlu0 %v1104, 15
        %v1363 = vpop.permute.xlu0 %1362
        %1364 = vrot.lane.b32.xlu0 %v1106, 15
        %v1365 = vpop.permute.xlu0 %1364
        %1366 = vrot.lane.b32.xlu0 %v1108, 15
        %v1367 = vpop.permute.xlu0 %1366
        %1368 = vrot.lane.b32.xlu0 %v1099, 15
        %v1369 = vpop.permute.xlu0 %1368
        %1370 = vrot.lane.b32.xlu0 %v1101, 15
        %v1371 = vpop.permute.xlu0 %1370
        %1372 = vrot.lane.b32.xlu0 %v1103, 15
        %v1373 = vpop.permute.xlu0 %1372
        %1374 = vrot.lane.b32.xlu0 %v1105, 15
        %v1375 = vpop.permute.xlu0 %1374
        %1376 = vrot.lane.b32.xlu0 %v1107, 15
        %v1377 = vpop.permute.xlu0 %1376
        %1378 = vrot.lane.b32.xlu0 %v1109, 15
        %v1379 = vpop.permute.xlu0 %1378
        %vm1380 = vcmp.lt.s32.totalorder %v1135, 15
        %v1381 = vsel %vm1380, %v1357, %v1369
        %v1382 = vsel %vm1380, %v1359, %v1371
        %v1383 = vsel %vm1380, %v1361, %v1373
        %v1384 = vsel %vm1380, %v1363, %v1375
        %v1385 = vsel %vm1380, %v1365, %v1377
        %v1386 = vsel %vm1380, %v1367, %v1379
        %v1387 = vsel %vm1380, %v1369, %v1357
        %v1388 = vsel %vm1380, %v1371, %v1359
        %v1389 = vsel %vm1380, %v1373, %v1361
        %v1390 = vsel %vm1380, %v1375, %v1363
        %v1391 = vsel %vm1380, %v1377, %v1365
        %v1392 = vsel %vm1380, %v1379, %v1367
        %s1393 = scalar_lea.vmem %s1, 4
        %v1394 = vld [vmem:[%s1393] sm:$0x3]
        %v1396 = vlaneseq
        %v1397 = vshrl.u32 %v1396, 7
        %v1398 = vsub.s32 0, %v1397
        %v1399 = vrot.slane %v1394, %v1398
        %v1400 = vlaneseq
        %v1401 = vshrl.u32 %v1400, 7
        %v1402 = vsub.s32 1, %v1401
        %v1403 = vrot.slane %v1394, %v1402
        %v1406 = vmul.f32 %v1387, %v1399
        %v1407 = vmul.f32 %v1381, %v1403
        %v1408 = vmul.f32 %v1388, %v1399
        %v1409 = vmul.f32 %v1382, %v1403
        %v1410 = vmul.f32 %v1389, %v1399
        %v1411 = vmul.f32 %v1383, %v1403
        %v1412 = vmul.f32 %v1390, %v1399
        %v1413 = vmul.f32 %v1384, %v1403
        %v1414 = vmul.f32 %v1391, %v1399
        %v1415 = vmul.f32 %v1385, %v1403
        %v1416 = vmul.f32 %v1392, %v1399
        %v1417 = vmul.f32 %v1386, %v1403
        %s1418 = scalar_lea.vmem %s6, 96
        %v1419 = vld [vmem:[%s1418] sm:$0xff]
        %v1420 = vld [vmem:[%s1418 + $0x8] sm:$0xff]
        %v1421 = vld [vmem:[%s1418 + $0x10] sm:$0xff]
        %v1422 = vld [vmem:[%s1418 + $0x18] sm:$0xff]
        %v1423 = vld [vmem:[%s1418 + $0x20] sm:$0xff]
        %v1424 = vld [vmem:[%s1418 + $0x28] sm:$0xff]
        %1426 = vset.pattern.permute.xlu0 0
        %1427 = vperm.xlu0 %1426, %v1419
        %v1428 = vpop.permute.xlu0 %1427
        %1431 = vset.pattern.permute.xlu0 0
        %1432 = vperm.xlu0 %1431, %v1420
        %v1433 = vpop.permute.xlu0 %1432
        %1436 = vset.pattern.permute.xlu0 0
        %1437 = vperm.xlu0 %1436, %v1421
        %v1438 = vpop.permute.xlu0 %1437
        %1441 = vset.pattern.permute.xlu0 0
        %1442 = vperm.xlu0 %1441, %v1422
        %v1443 = vpop.permute.xlu0 %1442
        %1446 = vset.pattern.permute.xlu0 0
        %1447 = vperm.xlu0 %1446, %v1423
        %v1448 = vpop.permute.xlu0 %1447
        %1451 = vset.pattern.permute.xlu0 0
        %1452 = vperm.xlu0 %1451, %v1424
        %v1453 = vpop.permute.xlu0 %1452
        %v1455 = vmul.f32 %v1406, %v1428
        %v1456 = vmul.f32 %v1407, %v1428
        %v1457 = vmul.f32 %v1408, %v1433
        %v1458 = vmul.f32 %v1409, %v1433
        %v1459 = vmul.f32 %v1410, %v1438
        %v1460 = vmul.f32 %v1411, %v1438
        %v1461 = vmul.f32 %v1412, %v1443
        %v1462 = vmul.f32 %v1413, %v1443
        %v1463 = vmul.f32 %v1414, %v1448
        %v1464 = vmul.f32 %v1415, %v1448
        %v1465 = vmul.f32 %v1416, %v1453
        %v1466 = vmul.f32 %v1417, %v1453
        %v1467 = vadd.f32 %v1344, %v1455
        %v1468 = vadd.f32 %v1345, %v1456
        %v1469 = vadd.f32 %v1346, %v1457
        %v1470 = vadd.f32 %v1347, %v1458
        %v1471 = vadd.f32 %v1348, %v1459
        %v1472 = vadd.f32 %v1349, %v1460
        %v1473 = vadd.f32 %v1350, %v1461
        %v1474 = vadd.f32 %v1351, %v1462
        %v1475 = vadd.f32 %v1352, %v1463
        %v1476 = vadd.f32 %v1353, %v1464
        %v1477 = vadd.f32 %v1354, %v1465
        %v1478 = vadd.f32 %v1355, %v1466
        %1479 = vrot.lane.b32.xlu0 %v1098, 1
        %v1480 = vpop.permute.xlu0 %1479
        %1481 = vrot.lane.b32.xlu0 %v1100, 1
        %v1482 = vpop.permute.xlu0 %1481
        %1483 = vrot.lane.b32.xlu0 %v1102, 1
        %v1484 = vpop.permute.xlu0 %1483
        %1485 = vrot.lane.b32.xlu0 %v1104, 1
        %v1486 = vpop.permute.xlu0 %1485
        %1487 = vrot.lane.b32.xlu0 %v1106, 1
        %v1488 = vpop.permute.xlu0 %1487
        %1489 = vrot.lane.b32.xlu0 %v1108, 1
        %v1490 = vpop.permute.xlu0 %1489
        %1491 = vrot.lane.b32.xlu0 %v1099, 1
        %v1492 = vpop.permute.xlu0 %1491
        %1493 = vrot.lane.b32.xlu0 %v1101, 1
        %v1494 = vpop.permute.xlu0 %1493
        %1495 = vrot.lane.b32.xlu0 %v1103, 1
        %v1496 = vpop.permute.xlu0 %1495
        %1497 = vrot.lane.b32.xlu0 %v1105, 1
        %v1498 = vpop.permute.xlu0 %1497
        %1499 = vrot.lane.b32.xlu0 %v1107, 1
        %v1500 = vpop.permute.xlu0 %1499
        %1501 = vrot.lane.b32.xlu0 %v1109, 1
        %v1502 = vpop.permute.xlu0 %1501
        %vm1503 = vcmp.lt.s32.totalorder %v1135, 1
        %v1504 = vsel %vm1503, %v1480, %v1492
        %v1505 = vsel %vm1503, %v1482, %v1494
        %v1506 = vsel %vm1503, %v1484, %v1496
        %v1507 = vsel %vm1503, %v1486, %v1498
        %v1508 = vsel %vm1503, %v1488, %v1500
        %v1509 = vsel %vm1503, %v1490, %v1502
        %v1510 = vsel %vm1503, %v1492, %v1480
        %v1511 = vsel %vm1503, %v1494, %v1482
        %v1512 = vsel %vm1503, %v1496, %v1484
        %v1513 = vsel %vm1503, %v1498, %v1486
        %v1514 = vsel %vm1503, %v1500, %v1488
        %v1515 = vsel %vm1503, %v1502, %v1490
        %s1516 = scalar_lea.vmem %s1, 6
        %v1517 = vld [vmem:[%s1516] sm:$0x3]
        %v1519 = vlaneseq
        %v1520 = vshrl.u32 %v1519, 7
        %v1521 = vsub.s32 0, %v1520
        %v1522 = vrot.slane %v1517, %v1521
        %v1523 = vlaneseq
        %v1524 = vshrl.u32 %v1523, 7
        %v1525 = vsub.s32 1, %v1524
        %v1526 = vrot.slane %v1517, %v1525
        %v1529 = vmul.f32 %v1510, %v1522
        %v1530 = vmul.f32 %v1504, %v1526
        %v1531 = vmul.f32 %v1511, %v1522
        %v1532 = vmul.f32 %v1505, %v1526
        %v1533 = vmul.f32 %v1512, %v1522
        %v1534 = vmul.f32 %v1506, %v1526
        %v1535 = vmul.f32 %v1513, %v1522
        %v1536 = vmul.f32 %v1507, %v1526
        %v1537 = vmul.f32 %v1514, %v1522
        %v1538 = vmul.f32 %v1508, %v1526
        %v1539 = vmul.f32 %v1515, %v1522
        %v1540 = vmul.f32 %v1509, %v1526
        %s1541 = scalar_lea.vmem %s6, 144
        %v1542 = vld [vmem:[%s1541] sm:$0xff]
        %v1543 = vld [vmem:[%s1541 + $0x8] sm:$0xff]
        %v1544 = vld [vmem:[%s1541 + $0x10] sm:$0xff]
        %v1545 = vld [vmem:[%s1541 + $0x18] sm:$0xff]
        %v1546 = vld [vmem:[%s1541 + $0x20] sm:$0xff]
        %v1547 = vld [vmem:[%s1541 + $0x28] sm:$0xff]
        %1549 = vset.pattern.permute.xlu0 0
        %1550 = vperm.xlu0 %1549, %v1542
        %v1551 = vpop.permute.xlu0 %1550
        %1554 = vset.pattern.permute.xlu0 0
        %1555 = vperm.xlu0 %1554, %v1543
        %v1556 = vpop.permute.xlu0 %1555
        %1559 = vset.pattern.permute.xlu0 0
        %1560 = vperm.xlu0 %1559, %v1544
        %v1561 = vpop.permute.xlu0 %1560
        %1564 = vset.pattern.permute.xlu0 0
        %1565 = vperm.xlu0 %1564, %v1545
        %v1566 = vpop.permute.xlu0 %1565
        %1569 = vset.pattern.permute.xlu0 0
        %1570 = vperm.xlu0 %1569, %v1546
        %v1571 = vpop.permute.xlu0 %1570
        %1574 = vset.pattern.permute.xlu0 0
        %1575 = vperm.xlu0 %1574, %v1547
        %v1576 = vpop.permute.xlu0 %1575
        %v1578 = vmul.f32 %v1529, %v1551
        %v1579 = vmul.f32 %v1530, %v1551
        %v1580 = vmul.f32 %v1531, %v1556
        %v1581 = vmul.f32 %v1532, %v1556
        %v1582 = vmul.f32 %v1533, %v1561
        %v1583 = vmul.f32 %v1534, %v1561
        %v1584 = vmul.f32 %v1535, %v1566
        %v1585 = vmul.f32 %v1536, %v1566
        %v1586 = vmul.f32 %v1537, %v1571
        %v1587 = vmul.f32 %v1538, %v1571
        %v1588 = vmul.f32 %v1539, %v1576
        %v1589 = vmul.f32 %v1540, %v1576
        %v1590 = vadd.f32 %v1467, %v1578
        %v1591 = vadd.f32 %v1468, %v1579
        %v1592 = vadd.f32 %v1469, %v1580
        %v1593 = vadd.f32 %v1470, %v1581
        %v1594 = vadd.f32 %v1471, %v1582
        %v1595 = vadd.f32 %v1472, %v1583
        %v1596 = vadd.f32 %v1473, %v1584
        %v1597 = vadd.f32 %v1474, %v1585
        %v1598 = vadd.f32 %v1475, %v1586
        %v1599 = vadd.f32 %v1476, %v1587
        %v1600 = vadd.f32 %v1477, %v1588
        %v1601 = vadd.f32 %v1478, %v1589
        %s1602 = scalar_lea.vmem %s1, 8
        %v1603 = vld [vmem:[%s1602] sm:$0x3]
        %v1605 = vlaneseq
        %v1606 = vshrl.u32 %v1605, 7
        %v1607 = vsub.s32 0, %v1606
        %v1608 = vrot.slane %v1603, %v1607
        %v1609 = vlaneseq
        %v1610 = vshrl.u32 %v1609, 7
        %v1611 = vsub.s32 1, %v1610
        %v1612 = vrot.slane %v1603, %v1611
        %v1615 = vmul.f32 %v1098, %v1608
        %v1616 = vmul.f32 %v1099, %v1612
        %v1617 = vmul.f32 %v1100, %v1608
        %v1618 = vmul.f32 %v1101, %v1612
        %v1619 = vmul.f32 %v1102, %v1608
        %v1620 = vmul.f32 %v1103, %v1612
        %v1621 = vmul.f32 %v1104, %v1608
        %v1622 = vmul.f32 %v1105, %v1612
        %v1623 = vmul.f32 %v1106, %v1608
        %v1624 = vmul.f32 %v1107, %v1612
        %v1625 = vmul.f32 %v1108, %v1608
        %v1626 = vmul.f32 %v1109, %v1612
        %s1627 = scalar_lea.vmem %s6, 192
        %v1628 = vld [vmem:[%s1627] sm:$0xff]
        %v1629 = vld [vmem:[%s1627 + $0x8] sm:$0xff]
        %v1630 = vld [vmem:[%s1627 + $0x10] sm:$0xff]
        %v1631 = vld [vmem:[%s1627 + $0x18] sm:$0xff]
        %v1632 = vld [vmem:[%s1627 + $0x20] sm:$0xff]
        %v1633 = vld [vmem:[%s1627 + $0x28] sm:$0xff]
        %1635 = vset.pattern.permute.xlu0 0
        %1636 = vperm.xlu0 %1635, %v1628
        %v1637 = vpop.permute.xlu0 %1636
        %1640 = vset.pattern.permute.xlu0 0
        %1641 = vperm.xlu0 %1640, %v1629
        %v1642 = vpop.permute.xlu0 %1641
        %1645 = vset.pattern.permute.xlu0 0
        %1646 = vperm.xlu0 %1645, %v1630
        %v1647 = vpop.permute.xlu0 %1646
        %1650 = vset.pattern.permute.xlu0 0
        %1651 = vperm.xlu0 %1650, %v1631
        %v1652 = vpop.permute.xlu0 %1651
        %1655 = vset.pattern.permute.xlu0 0
        %1656 = vperm.xlu0 %1655, %v1632
        %v1657 = vpop.permute.xlu0 %1656
        %1660 = vset.pattern.permute.xlu0 0
        %1661 = vperm.xlu0 %1660, %v1633
        %v1662 = vpop.permute.xlu0 %1661
        %v1664 = vmul.f32 %v1615, %v1637
        %v1665 = vmul.f32 %v1616, %v1637
        %v1666 = vmul.f32 %v1617, %v1642
        %v1667 = vmul.f32 %v1618, %v1642
        %v1668 = vmul.f32 %v1619, %v1647
        %v1669 = vmul.f32 %v1620, %v1647
        %v1670 = vmul.f32 %v1621, %v1652
        %v1671 = vmul.f32 %v1622, %v1652
        %v1672 = vmul.f32 %v1623, %v1657
        %v1673 = vmul.f32 %v1624, %v1657
        %v1674 = vmul.f32 %v1625, %v1662
        %v1675 = vmul.f32 %v1626, %v1662
        %v1676 = vadd.f32 %v1590, %v1664
        %v1677 = vadd.f32 %v1591, %v1665
        %v1678 = vadd.f32 %v1592, %v1666
        %v1679 = vadd.f32 %v1593, %v1667
        %v1680 = vadd.f32 %v1594, %v1668
        %v1681 = vadd.f32 %v1595, %v1669
        %v1682 = vadd.f32 %v1596, %v1670
        %v1683 = vadd.f32 %v1597, %v1671
        %v1684 = vadd.f32 %v1598, %v1672
        %v1685 = vadd.f32 %v1599, %v1673
        %v1686 = vadd.f32 %v1600, %v1674
        %v1687 = vadd.f32 %v1601, %v1675
        %1688 = vrot.lane.b32.xlu0 %v1098, 127
        %v1689 = vpop.permute.xlu0 %1688
        %1690 = vrot.lane.b32.xlu0 %v1100, 127
        %v1691 = vpop.permute.xlu0 %1690
        %1692 = vrot.lane.b32.xlu0 %v1102, 127
        %v1693 = vpop.permute.xlu0 %1692
        %1694 = vrot.lane.b32.xlu0 %v1104, 127
        %v1695 = vpop.permute.xlu0 %1694
        %1696 = vrot.lane.b32.xlu0 %v1106, 127
        %v1697 = vpop.permute.xlu0 %1696
        %1698 = vrot.lane.b32.xlu0 %v1108, 127
        %v1699 = vpop.permute.xlu0 %1698
        %1700 = vrot.lane.b32.xlu0 %v1099, 127
        %v1701 = vpop.permute.xlu0 %1700
        %1702 = vrot.lane.b32.xlu0 %v1101, 127
        %v1703 = vpop.permute.xlu0 %1702
        %1704 = vrot.lane.b32.xlu0 %v1103, 127
        %v1705 = vpop.permute.xlu0 %1704
        %1706 = vrot.lane.b32.xlu0 %v1105, 127
        %v1707 = vpop.permute.xlu0 %1706
        %1708 = vrot.lane.b32.xlu0 %v1107, 127
        %v1709 = vpop.permute.xlu0 %1708
        %1710 = vrot.lane.b32.xlu0 %v1109, 127
        %v1711 = vpop.permute.xlu0 %1710
        %vm1712 = vcmp.lt.s32.totalorder %v1135, 127
        %v1713 = vsel %vm1712, %v1689, %v1701
        %v1714 = vsel %vm1712, %v1691, %v1703
        %v1715 = vsel %vm1712, %v1693, %v1705
        %v1716 = vsel %vm1712, %v1695, %v1707
        %v1717 = vsel %vm1712, %v1697, %v1709
        %v1718 = vsel %vm1712, %v1699, %v1711
        %v1719 = vsel %vm1712, %v1701, %v1689
        %v1720 = vsel %vm1712, %v1703, %v1691
        %v1721 = vsel %vm1712, %v1705, %v1693
        %v1722 = vsel %vm1712, %v1707, %v1695
        %v1723 = vsel %vm1712, %v1709, %v1697
        %v1724 = vsel %vm1712, %v1711, %v1699
        %s1725 = scalar_lea.vmem %s1, 10
        %v1726 = vld [vmem:[%s1725] sm:$0x3]
        %v1728 = vlaneseq
        %v1729 = vshrl.u32 %v1728, 7
        %v1730 = vsub.s32 0, %v1729
        %v1731 = vrot.slane %v1726, %v1730
        %v1732 = vlaneseq
        %v1733 = vshrl.u32 %v1732, 7
        %v1734 = vsub.s32 1, %v1733
        %v1735 = vrot.slane %v1726, %v1734
        %v1738 = vmul.f32 %v1713, %v1731
        %v1739 = vmul.f32 %v1719, %v1735
        %v1740 = vmul.f32 %v1714, %v1731
        %v1741 = vmul.f32 %v1720, %v1735
        %v1742 = vmul.f32 %v1715, %v1731
        %v1743 = vmul.f32 %v1721, %v1735
        %v1744 = vmul.f32 %v1716, %v1731
        %v1745 = vmul.f32 %v1722, %v1735
        %v1746 = vmul.f32 %v1717, %v1731
        %v1747 = vmul.f32 %v1723, %v1735
        %v1748 = vmul.f32 %v1718, %v1731
        %v1749 = vmul.f32 %v1724, %v1735
        %s1750 = scalar_lea.vmem %s6, 240
        %v1751 = vld [vmem:[%s1750] sm:$0xff]
        %v1752 = vld [vmem:[%s1750 + $0x8] sm:$0xff]
        %v1753 = vld [vmem:[%s1750 + $0x10] sm:$0xff]
        %v1754 = vld [vmem:[%s1750 + $0x18] sm:$0xff]
        %v1755 = vld [vmem:[%s1750 + $0x20] sm:$0xff]
        %v1756 = vld [vmem:[%s1750 + $0x28] sm:$0xff]
        %1758 = vset.pattern.permute.xlu0 0
        %1759 = vperm.xlu0 %1758, %v1751
        %v1760 = vpop.permute.xlu0 %1759
        %1763 = vset.pattern.permute.xlu0 0
        %1764 = vperm.xlu0 %1763, %v1752
        %v1765 = vpop.permute.xlu0 %1764
        %1768 = vset.pattern.permute.xlu0 0
        %1769 = vperm.xlu0 %1768, %v1753
        %v1770 = vpop.permute.xlu0 %1769
        %1773 = vset.pattern.permute.xlu0 0
        %1774 = vperm.xlu0 %1773, %v1754
        %v1775 = vpop.permute.xlu0 %1774
        %1778 = vset.pattern.permute.xlu0 0
        %1779 = vperm.xlu0 %1778, %v1755
        %v1780 = vpop.permute.xlu0 %1779
        %1783 = vset.pattern.permute.xlu0 0
        %1784 = vperm.xlu0 %1783, %v1756
        %v1785 = vpop.permute.xlu0 %1784
        %v1787 = vmul.f32 %v1738, %v1760
        %v1788 = vmul.f32 %v1739, %v1760
        %v1789 = vmul.f32 %v1740, %v1765
        %v1790 = vmul.f32 %v1741, %v1765
        %v1791 = vmul.f32 %v1742, %v1770
        %v1792 = vmul.f32 %v1743, %v1770
        %v1793 = vmul.f32 %v1744, %v1775
        %v1794 = vmul.f32 %v1745, %v1775
        %v1795 = vmul.f32 %v1746, %v1780
        %v1796 = vmul.f32 %v1747, %v1780
        %v1797 = vmul.f32 %v1748, %v1785
        %v1798 = vmul.f32 %v1749, %v1785
        %v1799 = vadd.f32 %v1676, %v1787
        %v1800 = vadd.f32 %v1677, %v1788
        %v1801 = vadd.f32 %v1678, %v1789
        %v1802 = vadd.f32 %v1679, %v1790
        %v1803 = vadd.f32 %v1680, %v1791
        %v1804 = vadd.f32 %v1681, %v1792
        %v1805 = vadd.f32 %v1682, %v1793
        %v1806 = vadd.f32 %v1683, %v1794
        %v1807 = vadd.f32 %v1684, %v1795
        %v1808 = vadd.f32 %v1685, %v1796
        %v1809 = vadd.f32 %v1686, %v1797
        %v1810 = vadd.f32 %v1687, %v1798
        %1811 = vrot.lane.b32.xlu0 %v1098, 113
        %v1812 = vpop.permute.xlu0 %1811
        %1813 = vrot.lane.b32.xlu0 %v1100, 113
        %v1814 = vpop.permute.xlu0 %1813
        %1815 = vrot.lane.b32.xlu0 %v1102, 113
        %v1816 = vpop.permute.xlu0 %1815
        %1817 = vrot.lane.b32.xlu0 %v1104, 113
        %v1818 = vpop.permute.xlu0 %1817
        %1819 = vrot.lane.b32.xlu0 %v1106, 113
        %v1820 = vpop.permute.xlu0 %1819
        %1821 = vrot.lane.b32.xlu0 %v1108, 113
        %v1822 = vpop.permute.xlu0 %1821
        %1823 = vrot.lane.b32.xlu0 %v1099, 113
        %v1824 = vpop.permute.xlu0 %1823
        %1825 = vrot.lane.b32.xlu0 %v1101, 113
        %v1826 = vpop.permute.xlu0 %1825
        %1827 = vrot.lane.b32.xlu0 %v1103, 113
        %v1828 = vpop.permute.xlu0 %1827
        %1829 = vrot.lane.b32.xlu0 %v1105, 113
        %v1830 = vpop.permute.xlu0 %1829
        %1831 = vrot.lane.b32.xlu0 %v1107, 113
        %v1832 = vpop.permute.xlu0 %1831
        %1833 = vrot.lane.b32.xlu0 %v1109, 113
        %v1834 = vpop.permute.xlu0 %1833
        %vm1835 = vcmp.lt.s32.totalorder %v1135, 113
        %v1836 = vsel %vm1835, %v1812, %v1824
        %v1837 = vsel %vm1835, %v1814, %v1826
        %v1838 = vsel %vm1835, %v1816, %v1828
        %v1839 = vsel %vm1835, %v1818, %v1830
        %v1840 = vsel %vm1835, %v1820, %v1832
        %v1841 = vsel %vm1835, %v1822, %v1834
        %v1842 = vsel %vm1835, %v1824, %v1812
        %v1843 = vsel %vm1835, %v1826, %v1814
        %v1844 = vsel %vm1835, %v1828, %v1816
        %v1845 = vsel %vm1835, %v1830, %v1818
        %v1846 = vsel %vm1835, %v1832, %v1820
        %v1847 = vsel %vm1835, %v1834, %v1822
        %s1848 = scalar_lea.vmem %s1, 12
        %v1849 = vld [vmem:[%s1848] sm:$0x3]
        %v1851 = vlaneseq
        %v1852 = vshrl.u32 %v1851, 7
        %v1853 = vsub.s32 0, %v1852
        %v1854 = vrot.slane %v1849, %v1853
        %v1855 = vlaneseq
        %v1856 = vshrl.u32 %v1855, 7
        %v1857 = vsub.s32 1, %v1856
        %v1858 = vrot.slane %v1849, %v1857
        %v1861 = vmul.f32 %v1836, %v1854
        %v1862 = vmul.f32 %v1842, %v1858
        %v1863 = vmul.f32 %v1837, %v1854
        %v1864 = vmul.f32 %v1843, %v1858
        %v1865 = vmul.f32 %v1838, %v1854
        %v1866 = vmul.f32 %v1844, %v1858
        %v1867 = vmul.f32 %v1839, %v1854
        %v1868 = vmul.f32 %v1845, %v1858
        %v1869 = vmul.f32 %v1840, %v1854
        %v1870 = vmul.f32 %v1846, %v1858
        %v1871 = vmul.f32 %v1841, %v1854
        %v1872 = vmul.f32 %v1847, %v1858
        %s1873 = scalar_lea.vmem %s6, 288
        %v1874 = vld [vmem:[%s1873] sm:$0xff]
        %v1875 = vld [vmem:[%s1873 + $0x8] sm:$0xff]
        %v1876 = vld [vmem:[%s1873 + $0x10] sm:$0xff]
        %v1877 = vld [vmem:[%s1873 + $0x18] sm:$0xff]
        %v1878 = vld [vmem:[%s1873 + $0x20] sm:$0xff]
        %v1879 = vld [vmem:[%s1873 + $0x28] sm:$0xff]
        %1881 = vset.pattern.permute.xlu0 0
        %1882 = vperm.xlu0 %1881, %v1874
        %v1883 = vpop.permute.xlu0 %1882
        %1886 = vset.pattern.permute.xlu0 0
        %1887 = vperm.xlu0 %1886, %v1875
        %v1888 = vpop.permute.xlu0 %1887
        %1891 = vset.pattern.permute.xlu0 0
        %1892 = vperm.xlu0 %1891, %v1876
        %v1893 = vpop.permute.xlu0 %1892
        %1896 = vset.pattern.permute.xlu0 0
        %1897 = vperm.xlu0 %1896, %v1877
        %v1898 = vpop.permute.xlu0 %1897
        %1901 = vset.pattern.permute.xlu0 0
        %1902 = vperm.xlu0 %1901, %v1878
        %v1903 = vpop.permute.xlu0 %1902
        %1906 = vset.pattern.permute.xlu0 0
        %1907 = vperm.xlu0 %1906, %v1879
        %v1908 = vpop.permute.xlu0 %1907
        %v1910 = vmul.f32 %v1861, %v1883
        %v1911 = vmul.f32 %v1862, %v1883
        %v1912 = vmul.f32 %v1863, %v1888
        %v1913 = vmul.f32 %v1864, %v1888
        %v1914 = vmul.f32 %v1865, %v1893
        %v1915 = vmul.f32 %v1866, %v1893
        %v1916 = vmul.f32 %v1867, %v1898
        %v1917 = vmul.f32 %v1868, %v1898
        %v1918 = vmul.f32 %v1869, %v1903
        %v1919 = vmul.f32 %v1870, %v1903
        %v1920 = vmul.f32 %v1871, %v1908
        %v1921 = vmul.f32 %v1872, %v1908
        %v1922 = vadd.f32 %v1799, %v1910
        %v1923 = vadd.f32 %v1800, %v1911
        %v1924 = vadd.f32 %v1801, %v1912
        %v1925 = vadd.f32 %v1802, %v1913
        %v1926 = vadd.f32 %v1803, %v1914
        %v1927 = vadd.f32 %v1804, %v1915
        %v1928 = vadd.f32 %v1805, %v1916
        %v1929 = vadd.f32 %v1806, %v1917
        %v1930 = vadd.f32 %v1807, %v1918
        %v1931 = vadd.f32 %v1808, %v1919
        %v1932 = vadd.f32 %v1809, %v1920
        %v1933 = vadd.f32 %v1810, %v1921
        %1934 = vrot.lane.b32.xlu0 %v1098, 112
        %v1935 = vpop.permute.xlu0 %1934
        %1936 = vrot.lane.b32.xlu0 %v1100, 112
        %v1937 = vpop.permute.xlu0 %1936
        %1938 = vrot.lane.b32.xlu0 %v1102, 112
        %v1939 = vpop.permute.xlu0 %1938
        %1940 = vrot.lane.b32.xlu0 %v1104, 112
        %v1941 = vpop.permute.xlu0 %1940
        %1942 = vrot.lane.b32.xlu0 %v1106, 112
        %v1943 = vpop.permute.xlu0 %1942
        %1944 = vrot.lane.b32.xlu0 %v1108, 112
        %v1945 = vpop.permute.xlu0 %1944
        %1946 = vrot.lane.b32.xlu0 %v1099, 112
        %v1947 = vpop.permute.xlu0 %1946
        %1948 = vrot.lane.b32.xlu0 %v1101, 112
        %v1949 = vpop.permute.xlu0 %1948
        %1950 = vrot.lane.b32.xlu0 %v1103, 112
        %v1951 = vpop.permute.xlu0 %1950
        %1952 = vrot.lane.b32.xlu0 %v1105, 112
        %v1953 = vpop.permute.xlu0 %1952
        %1954 = vrot.lane.b32.xlu0 %v1107, 112
        %v1955 = vpop.permute.xlu0 %1954
        %1956 = vrot.lane.b32.xlu0 %v1109, 112
        %v1957 = vpop.permute.xlu0 %1956
        %vm1958 = vcmp.lt.s32.totalorder %v1135, 112
        %v1959 = vsel %vm1958, %v1935, %v1947
        %v1960 = vsel %vm1958, %v1937, %v1949
        %v1961 = vsel %vm1958, %v1939, %v1951
        %v1962 = vsel %vm1958, %v1941, %v1953
        %v1963 = vsel %vm1958, %v1943, %v1955
        %v1964 = vsel %vm1958, %v1945, %v1957
        %v1965 = vsel %vm1958, %v1947, %v1935
        %v1966 = vsel %vm1958, %v1949, %v1937
        %v1967 = vsel %vm1958, %v1951, %v1939
        %v1968 = vsel %vm1958, %v1953, %v1941
        %v1969 = vsel %vm1958, %v1955, %v1943
        %v1970 = vsel %vm1958, %v1957, %v1945
        %s1971 = scalar_lea.vmem %s1, 14
        %v1972 = vld [vmem:[%s1971] sm:$0x3]
        %v1974 = vlaneseq
        %v1975 = vshrl.u32 %v1974, 7
        %v1976 = vsub.s32 0, %v1975
        %v1977 = vrot.slane %v1972, %v1976
        %v1978 = vlaneseq
        %v1979 = vshrl.u32 %v1978, 7
        %v1980 = vsub.s32 1, %v1979
        %v1981 = vrot.slane %v1972, %v1980
        %v1984 = vmul.f32 %v1959, %v1977
        %v1985 = vmul.f32 %v1965, %v1981
        %v1986 = vmul.f32 %v1960, %v1977
        %v1987 = vmul.f32 %v1966, %v1981
        %v1988 = vmul.f32 %v1961, %v1977
        %v1989 = vmul.f32 %v1967, %v1981
        %v1990 = vmul.f32 %v1962, %v1977
        %v1991 = vmul.f32 %v1968, %v1981
        %v1992 = vmul.f32 %v1963, %v1977
        %v1993 = vmul.f32 %v1969, %v1981
        %v1994 = vmul.f32 %v1964, %v1977
        %v1995 = vmul.f32 %v1970, %v1981
        %s1996 = scalar_lea.vmem %s6, 336
        %v1997 = vld [vmem:[%s1996] sm:$0xff]
        %v1998 = vld [vmem:[%s1996 + $0x8] sm:$0xff]
        %v1999 = vld [vmem:[%s1996 + $0x10] sm:$0xff]
        %v2000 = vld [vmem:[%s1996 + $0x18] sm:$0xff]
        %v2001 = vld [vmem:[%s1996 + $0x20] sm:$0xff]
        %v2002 = vld [vmem:[%s1996 + $0x28] sm:$0xff]
        %2004 = vset.pattern.permute.xlu0 0
        %2005 = vperm.xlu0 %2004, %v1997
        %v2006 = vpop.permute.xlu0 %2005
        %2009 = vset.pattern.permute.xlu0 0
        %2010 = vperm.xlu0 %2009, %v1998
        %v2011 = vpop.permute.xlu0 %2010
        %2014 = vset.pattern.permute.xlu0 0
        %2015 = vperm.xlu0 %2014, %v1999
        %v2016 = vpop.permute.xlu0 %2015
        %2019 = vset.pattern.permute.xlu0 0
        %2020 = vperm.xlu0 %2019, %v2000
        %v2021 = vpop.permute.xlu0 %2020
        %2024 = vset.pattern.permute.xlu0 0
        %2025 = vperm.xlu0 %2024, %v2001
        %v2026 = vpop.permute.xlu0 %2025
        %2029 = vset.pattern.permute.xlu0 0
        %2030 = vperm.xlu0 %2029, %v2002
        %v2031 = vpop.permute.xlu0 %2030
        %v2033 = vmul.f32 %v1984, %v2006
        %v2034 = vmul.f32 %v1985, %v2006
        %v2035 = vmul.f32 %v1986, %v2011
        %v2036 = vmul.f32 %v1987, %v2011
        %v2037 = vmul.f32 %v1988, %v2016
        %v2038 = vmul.f32 %v1989, %v2016
        %v2039 = vmul.f32 %v1990, %v2021
        %v2040 = vmul.f32 %v1991, %v2021
        %v2041 = vmul.f32 %v1992, %v2026
        %v2042 = vmul.f32 %v1993, %v2026
        %v2043 = vmul.f32 %v1994, %v2031
        %v2044 = vmul.f32 %v1995, %v2031
        %v2045 = vadd.f32 %v1922, %v2033
        %v2046 = vadd.f32 %v1923, %v2034
        %v2047 = vadd.f32 %v1924, %v2035
        %v2048 = vadd.f32 %v1925, %v2036
        %v2049 = vadd.f32 %v1926, %v2037
        %v2050 = vadd.f32 %v1927, %v2038
        %v2051 = vadd.f32 %v1928, %v2039
        %v2052 = vadd.f32 %v1929, %v2040
        %v2053 = vadd.f32 %v1930, %v2041
        %v2054 = vadd.f32 %v1931, %v2042
        %v2055 = vadd.f32 %v1932, %v2043
        %v2056 = vadd.f32 %v1933, %v2044
        %2057 = vrot.lane.b32.xlu0 %v1098, 111
        %v2058 = vpop.permute.xlu0 %2057
        %2059 = vrot.lane.b32.xlu0 %v1100, 111
        %v2060 = vpop.permute.xlu0 %2059
        %2061 = vrot.lane.b32.xlu0 %v1102, 111
        %v2062 = vpop.permute.xlu0 %2061
        %2063 = vrot.lane.b32.xlu0 %v1104, 111
        %v2064 = vpop.permute.xlu0 %2063
        %2065 = vrot.lane.b32.xlu0 %v1106, 111
        %v2066 = vpop.permute.xlu0 %2065
        %2067 = vrot.lane.b32.xlu0 %v1108, 111
        %v2068 = vpop.permute.xlu0 %2067
        %2069 = vrot.lane.b32.xlu0 %v1099, 111
        %v2070 = vpop.permute.xlu0 %2069
        %2071 = vrot.lane.b32.xlu0 %v1101, 111
        %v2072 = vpop.permute.xlu0 %2071
        %2073 = vrot.lane.b32.xlu0 %v1103, 111
        %v2074 = vpop.permute.xlu0 %2073
        %2075 = vrot.lane.b32.xlu0 %v1105, 111
        %v2076 = vpop.permute.xlu0 %2075
        %2077 = vrot.lane.b32.xlu0 %v1107, 111
        %v2078 = vpop.permute.xlu0 %2077
        %2079 = vrot.lane.b32.xlu0 %v1109, 111
        %v2080 = vpop.permute.xlu0 %2079
        %vm2081 = vcmp.lt.s32.totalorder %v1135, 111
        %v2082 = vsel %vm2081, %v2058, %v2070
        %v2083 = vsel %vm2081, %v2060, %v2072
        %v2084 = vsel %vm2081, %v2062, %v2074
        %v2085 = vsel %vm2081, %v2064, %v2076
        %v2086 = vsel %vm2081, %v2066, %v2078
        %v2087 = vsel %vm2081, %v2068, %v2080
        %v2088 = vsel %vm2081, %v2070, %v2058
        %v2089 = vsel %vm2081, %v2072, %v2060
        %v2090 = vsel %vm2081, %v2074, %v2062
        %v2091 = vsel %vm2081, %v2076, %v2064
        %v2092 = vsel %vm2081, %v2078, %v2066
        %v2093 = vsel %vm2081, %v2080, %v2068
        %s2094 = scalar_lea.vmem %s1, 16
        %v2095 = vld [vmem:[%s2094] sm:$0x3]
        %v2097 = vlaneseq
        %v2098 = vshrl.u32 %v2097, 7
        %v2099 = vsub.s32 0, %v2098
        %v2100 = vrot.slane %v2095, %v2099
        %v2101 = vlaneseq
        %v2102 = vshrl.u32 %v2101, 7
        %v2103 = vsub.s32 1, %v2102
        %v2104 = vrot.slane %v2095, %v2103
        %v2107 = vmul.f32 %v2082, %v2100
        %v2108 = vmul.f32 %v2088, %v2104
        %v2109 = vmul.f32 %v2083, %v2100
        %v2110 = vmul.f32 %v2089, %v2104
        %v2111 = vmul.f32 %v2084, %v2100
        %v2112 = vmul.f32 %v2090, %v2104
        %v2113 = vmul.f32 %v2085, %v2100
        %v2114 = vmul.f32 %v2091, %v2104
        %v2115 = vmul.f32 %v2086, %v2100
        %v2116 = vmul.f32 %v2092, %v2104
        %v2117 = vmul.f32 %v2087, %v2100
        %v2118 = vmul.f32 %v2093, %v2104
        %s2119 = scalar_lea.vmem %s6, 384
        %v2120 = vld [vmem:[%s2119] sm:$0xff]
        %v2121 = vld [vmem:[%s2119 + $0x8] sm:$0xff]
        %v2122 = vld [vmem:[%s2119 + $0x10] sm:$0xff]
        %v2123 = vld [vmem:[%s2119 + $0x18] sm:$0xff]
        %v2124 = vld [vmem:[%s2119 + $0x20] sm:$0xff]
        %v2125 = vld [vmem:[%s2119 + $0x28] sm:$0xff]
        %2127 = vset.pattern.permute.xlu0 0
        %2128 = vperm.xlu0 %2127, %v2120
        %v2129 = vpop.permute.xlu0 %2128
        %2132 = vset.pattern.permute.xlu0 0
        %2133 = vperm.xlu0 %2132, %v2121
        %v2134 = vpop.permute.xlu0 %2133
        %2137 = vset.pattern.permute.xlu0 0
        %2138 = vperm.xlu0 %2137, %v2122
        %v2139 = vpop.permute.xlu0 %2138
        %2142 = vset.pattern.permute.xlu0 0
        %2143 = vperm.xlu0 %2142, %v2123
        %v2144 = vpop.permute.xlu0 %2143
        %2147 = vset.pattern.permute.xlu0 0
        %2148 = vperm.xlu0 %2147, %v2124
        %v2149 = vpop.permute.xlu0 %2148
        %2152 = vset.pattern.permute.xlu0 0
        %2153 = vperm.xlu0 %2152, %v2125
        %v2154 = vpop.permute.xlu0 %2153
        %v2156 = vmul.f32 %v2107, %v2129
        %v2157 = vmul.f32 %v2108, %v2129
        %v2158 = vmul.f32 %v2109, %v2134
        %v2159 = vmul.f32 %v2110, %v2134
        %v2160 = vmul.f32 %v2111, %v2139
        %v2161 = vmul.f32 %v2112, %v2139
        %v2162 = vmul.f32 %v2113, %v2144
        %v2163 = vmul.f32 %v2114, %v2144
        %v2164 = vmul.f32 %v2115, %v2149
        %v2165 = vmul.f32 %v2116, %v2149
        %v2166 = vmul.f32 %v2117, %v2154
        %v2167 = vmul.f32 %v2118, %v2154
        %v2168 = vadd.f32 %v2045, %v2156
        %v2169 = vadd.f32 %v2046, %v2157
        %v2170 = vadd.f32 %v2047, %v2158
        %v2171 = vadd.f32 %v2048, %v2159
        %v2172 = vadd.f32 %v2049, %v2160
        %v2173 = vadd.f32 %v2050, %v2161
        %v2174 = vadd.f32 %v2051, %v2162
        %v2175 = vadd.f32 %v2052, %v2163
        %v2176 = vadd.f32 %v2053, %v2164
        %v2177 = vadd.f32 %v2054, %v2165
        %v2178 = vadd.f32 %v2055, %v2166
        %v2179 = vadd.f32 %v2056, %v2167
        %v2180 = vld [vmem:[%s7] sm:$0xff]
        %v2181 = vld [vmem:[%s7 + $0x8] sm:$0xff]
        %v2182 = vld [vmem:[%s7 + $0x10] sm:$0xff]
        %v2183 = vld [vmem:[%s7 + $0x18] sm:$0xff]
        %v2184 = vld [vmem:[%s7 + $0x20] sm:$0xff]
        %v2185 = vld [vmem:[%s7 + $0x28] sm:$0xff]
        %2187 = vset.pattern.permute.xlu0 0
        %2188 = vperm.xlu0 %2187, %v2180
        %v2189 = vpop.permute.xlu0 %2188
        %2192 = vset.pattern.permute.xlu0 0
        %2193 = vperm.xlu0 %2192, %v2181
        %v2194 = vpop.permute.xlu0 %2193
        %2197 = vset.pattern.permute.xlu0 0
        %2198 = vperm.xlu0 %2197, %v2182
        %v2199 = vpop.permute.xlu0 %2198
        %2202 = vset.pattern.permute.xlu0 0
        %2203 = vperm.xlu0 %2202, %v2183
        %v2204 = vpop.permute.xlu0 %2203
        %2207 = vset.pattern.permute.xlu0 0
        %2208 = vperm.xlu0 %2207, %v2184
        %v2209 = vpop.permute.xlu0 %2208
        %2212 = vset.pattern.permute.xlu0 0
        %2213 = vperm.xlu0 %2212, %v2185
        %v2214 = vpop.permute.xlu0 %2213
        %v2216 = vadd.f32 %v2168, %v2189
        %v2217 = vadd.f32 %v2169, %v2189
        %v2218 = vadd.f32 %v2170, %v2194
        %v2219 = vadd.f32 %v2171, %v2194
        %v2220 = vadd.f32 %v2172, %v2199
        %v2221 = vadd.f32 %v2173, %v2199
        %v2222 = vadd.f32 %v2174, %v2204
        %v2223 = vadd.f32 %v2175, %v2204
        %v2224 = vadd.f32 %v2176, %v2209
        %v2225 = vadd.f32 %v2177, %v2209
        %v2226 = vadd.f32 %v2178, %v2214
        %v2227 = vadd.f32 %v2179, %v2214
        %v2228 = vmax.f32 %v2216, 0.0
        %v2229 = vmax.f32 %v2217, 0.0
        %v2230 = vmax.f32 %v2218, 0.0
        %v2231 = vmax.f32 %v2219, 0.0
        %v2232 = vmax.f32 %v2220, 0.0
        %v2233 = vmax.f32 %v2221, 0.0
        %v2234 = vmax.f32 %v2222, 0.0
        %v2235 = vmax.f32 %v2223, 0.0
        %v2236 = vmax.f32 %v2224, 0.0
        %v2237 = vmax.f32 %v2225, 0.0
        %v2238 = vmax.f32 %v2226, 0.0
        %v2239 = vmax.f32 %v2227, 0.0
        %v2240 = vmin.f32 %v2228, 6.0
        %v2241 = vmin.f32 %v2229, 6.0
        %v2242 = vmin.f32 %v2230, 6.0
        %v2243 = vmin.f32 %v2231, 6.0
        %v2244 = vmin.f32 %v2232, 6.0
        %v2245 = vmin.f32 %v2233, 6.0
        %v2246 = vmin.f32 %v2234, 6.0
        %v2247 = vmin.f32 %v2235, 6.0
        %v2248 = vmin.f32 %v2236, 6.0
        %v2249 = vmin.f32 %v2237, 6.0
        %v2250 = vmin.f32 %v2238, 6.0
        %v2251 = vmin.f32 %v2239, 6.0
        %v2252 = vld [vmem:[%s8] sm:$0xff]
        %2254 = vset.pattern.permute.xlu0 0
        %2255 = vperm.xlu0 %2254, %v2252
        %v2256 = vpop.permute.xlu0 %2255
        %v2258 = vlaneseq
        %v2259 = vshrl.u32 %v2258, 7
        %v2260 = vsub.s32 0, %v2259
        %v2261 = vrot.slane %v2240, %v2260
        %v2262 = vlaneseq
        %v2263 = vshrl.u32 %v2262, 7
        %v2264 = vsub.s32 0, %v2263
        %v2265 = vrot.slane %v2241, %v2264
        %v2266 = vmul.f32 %v2256, %v2261
        %v2267 = vmul.f32 %v2256, %v2265
        %v2268 = vadd.f32 %v2266, 0.0
        %v2269 = vadd.f32 %v2267, 0.0
        %s2270 = scalar_lea.vmem %s8, 8
        %v2271 = vld [vmem:[%s2270] sm:$0xff]
        %2273 = vset.pattern.permute.xlu0 0
        %2274 = vperm.xlu0 %2273, %v2271
        %v2275 = vpop.permute.xlu0 %2274
        %v2277 = vlaneseq
        %v2278 = vshrl.u32 %v2277, 7
        %v2279 = vsub.s32 1, %v2278
        %v2280 = vrot.slane %v2240, %v2279
        %v2281 = vlaneseq
        %v2282 = vshrl.u32 %v2281, 7
        %v2283 = vsub.s32 1, %v2282
        %v2284 = vrot.slane %v2241, %v2283
        %v2285 = vmul.f32 %v2275, %v2280
        %v2286 = vmul.f32 %v2275, %v2284
        %v2287 = vadd.f32 %v2268, %v2285
        %v2288 = vadd.f32 %v2269, %v2286
        %s2289 = scalar_lea.vmem %s8, 16
        %v2290 = vld [vmem:[%s2289] sm:$0xff]
        %2292 = vset.pattern.permute.xlu0 0
        %2293 = vperm.xlu0 %2292, %v2290
        %v2294 = vpop.permute.xlu0 %2293
        %v2296 = vlaneseq
        %v2297 = vshrl.u32 %v2296, 7
        %v2298 = vsub.s32 2, %v2297
        %v2299 = vrot.slane %v2240, %v2298
        %v2300 = vlaneseq
        %v2301 = vshrl.u32 %v2300, 7
        %v2302 = vsub.s32 2, %v2301
        %v2303 = vrot.slane %v2241, %v2302
        %v2304 = vmul.f32 %v2294, %v2299
        %v2305 = vmul.f32 %v2294, %v2303
        %v2306 = vadd.f32 %v2287, %v2304
        %v2307 = vadd.f32 %v2288, %v2305
        %s2308 = scalar_lea.vmem %s8, 24
        %v2309 = vld [vmem:[%s2308] sm:$0xff]
        %2311 = vset.pattern.permute.xlu0 0
        %2312 = vperm.xlu0 %2311, %v2309
        %v2313 = vpop.permute.xlu0 %2312
        %v2315 = vlaneseq
        %v2316 = vshrl.u32 %v2315, 7
        %v2317 = vsub.s32 3, %v2316
        %v2318 = vrot.slane %v2240, %v2317
        %v2319 = vlaneseq
        %v2320 = vshrl.u32 %v2319, 7
        %v2321 = vsub.s32 3, %v2320
        %v2322 = vrot.slane %v2241, %v2321
        %v2323 = vmul.f32 %v2313, %v2318
        %v2324 = vmul.f32 %v2313, %v2322
        %v2325 = vadd.f32 %v2306, %v2323
        %v2326 = vadd.f32 %v2307, %v2324
        %s2327 = scalar_lea.vmem %s8, 32
        %v2328 = vld [vmem:[%s2327] sm:$0xff]
        %2330 = vset.pattern.permute.xlu0 0
        %2331 = vperm.xlu0 %2330, %v2328
        %v2332 = vpop.permute.xlu0 %2331
        %v2334 = vlaneseq
        %v2335 = vshrl.u32 %v2334, 7
        %v2336 = vsub.s32 4, %v2335
        %v2337 = vrot.slane %v2240, %v2336
        %v2338 = vlaneseq
        %v2339 = vshrl.u32 %v2338, 7
        %v2340 = vsub.s32 4, %v2339
        %v2341 = vrot.slane %v2241, %v2340
        %v2342 = vmul.f32 %v2332, %v2337
        %v2343 = vmul.f32 %v2332, %v2341
        %v2344 = vadd.f32 %v2325, %v2342
        %v2345 = vadd.f32 %v2326, %v2343
        %s2346 = scalar_lea.vmem %s8, 40
        %v2347 = vld [vmem:[%s2346] sm:$0xff]
        %2349 = vset.pattern.permute.xlu0 0
        %2350 = vperm.xlu0 %2349, %v2347
        %v2351 = vpop.permute.xlu0 %2350
        %v2353 = vlaneseq
        %v2354 = vshrl.u32 %v2353, 7
        %v2355 = vsub.s32 5, %v2354
        %v2356 = vrot.slane %v2240, %v2355
        %v2357 = vlaneseq
        %v2358 = vshrl.u32 %v2357, 7
        %v2359 = vsub.s32 5, %v2358
        %v2360 = vrot.slane %v2241, %v2359
        %v2361 = vmul.f32 %v2351, %v2356
        %v2362 = vmul.f32 %v2351, %v2360
        %v2363 = vadd.f32 %v2344, %v2361
        %v2364 = vadd.f32 %v2345, %v2362
        %s2365 = scalar_lea.vmem %s8, 48
        %v2366 = vld [vmem:[%s2365] sm:$0xff]
        %2368 = vset.pattern.permute.xlu0 0
        %2369 = vperm.xlu0 %2368, %v2366
        %v2370 = vpop.permute.xlu0 %2369
        %v2372 = vlaneseq
        %v2373 = vshrl.u32 %v2372, 7
        %v2374 = vsub.s32 6, %v2373
        %v2375 = vrot.slane %v2240, %v2374
        %v2376 = vlaneseq
        %v2377 = vshrl.u32 %v2376, 7
        %v2378 = vsub.s32 6, %v2377
        %v2379 = vrot.slane %v2241, %v2378
        %v2380 = vmul.f32 %v2370, %v2375
        %v2381 = vmul.f32 %v2370, %v2379
        %v2382 = vadd.f32 %v2363, %v2380
        %v2383 = vadd.f32 %v2364, %v2381
        %s2384 = scalar_lea.vmem %s8, 56
        %v2385 = vld [vmem:[%s2384] sm:$0xff]
        %2387 = vset.pattern.permute.xlu0 0
        %2388 = vperm.xlu0 %2387, %v2385
        %v2389 = vpop.permute.xlu0 %2388
        %v2391 = vlaneseq
        %v2392 = vshrl.u32 %v2391, 7
        %v2393 = vsub.s32 7, %v2392
        %v2394 = vrot.slane %v2240, %v2393
        %v2395 = vlaneseq
        %v2396 = vshrl.u32 %v2395, 7
        %v2397 = vsub.s32 7, %v2396
        %v2398 = vrot.slane %v2241, %v2397
        %v2399 = vmul.f32 %v2389, %v2394
        %v2400 = vmul.f32 %v2389, %v2398
        %v2401 = vadd.f32 %v2382, %v2399
        %v2402 = vadd.f32 %v2383, %v2400
        %s2403 = scalar_lea.vmem %s8, 64
        %v2404 = vld [vmem:[%s2403] sm:$0xff]
        %2406 = vset.pattern.permute.xlu0 0
        %2407 = vperm.xlu0 %2406, %v2404
        %v2408 = vpop.permute.xlu0 %2407
        %v2410 = vlaneseq
        %v2411 = vshrl.u32 %v2410, 7
        %v2412 = vsub.s32 0, %v2411
        %v2413 = vrot.slane %v2242, %v2412
        %v2414 = vlaneseq
        %v2415 = vshrl.u32 %v2414, 7
        %v2416 = vsub.s32 0, %v2415
        %v2417 = vrot.slane %v2243, %v2416
        %v2418 = vmul.f32 %v2408, %v2413
        %v2419 = vmul.f32 %v2408, %v2417
        %v2420 = vadd.f32 %v2401, %v2418
        %v2421 = vadd.f32 %v2402, %v2419
        %s2422 = scalar_lea.vmem %s8, 72
        %v2423 = vld [vmem:[%s2422] sm:$0xff]
        %2425 = vset.pattern.permute.xlu0 0
        %2426 = vperm.xlu0 %2425, %v2423
        %v2427 = vpop.permute.xlu0 %2426
        %v2429 = vlaneseq
        %v2430 = vshrl.u32 %v2429, 7
        %v2431 = vsub.s32 1, %v2430
        %v2432 = vrot.slane %v2242, %v2431
        %v2433 = vlaneseq
        %v2434 = vshrl.u32 %v2433, 7
        %v2435 = vsub.s32 1, %v2434
        %v2436 = vrot.slane %v2243, %v2435
        %v2437 = vmul.f32 %v2427, %v2432
        %v2438 = vmul.f32 %v2427, %v2436
        %v2439 = vadd.f32 %v2420, %v2437
        %v2440 = vadd.f32 %v2421, %v2438
        %s2441 = scalar_lea.vmem %s8, 80
        %v2442 = vld [vmem:[%s2441] sm:$0xff]
        %2444 = vset.pattern.permute.xlu0 0
        %2445 = vperm.xlu0 %2444, %v2442
        %v2446 = vpop.permute.xlu0 %2445
        %v2448 = vlaneseq
        %v2449 = vshrl.u32 %v2448, 7
        %v2450 = vsub.s32 2, %v2449
        %v2451 = vrot.slane %v2242, %v2450
        %v2452 = vlaneseq
        %v2453 = vshrl.u32 %v2452, 7
        %v2454 = vsub.s32 2, %v2453
        %v2455 = vrot.slane %v2243, %v2454
        %v2456 = vmul.f32 %v2446, %v2451
        %v2457 = vmul.f32 %v2446, %v2455
        %v2458 = vadd.f32 %v2439, %v2456
        %v2459 = vadd.f32 %v2440, %v2457
        %s2460 = scalar_lea.vmem %s8, 88
        %v2461 = vld [vmem:[%s2460] sm:$0xff]
        %2463 = vset.pattern.permute.xlu0 0
        %2464 = vperm.xlu0 %2463, %v2461
        %v2465 = vpop.permute.xlu0 %2464
        %v2467 = vlaneseq
        %v2468 = vshrl.u32 %v2467, 7
        %v2469 = vsub.s32 3, %v2468
        %v2470 = vrot.slane %v2242, %v2469
        %v2471 = vlaneseq
        %v2472 = vshrl.u32 %v2471, 7
        %v2473 = vsub.s32 3, %v2472
        %v2474 = vrot.slane %v2243, %v2473
        %v2475 = vmul.f32 %v2465, %v2470
        %v2476 = vmul.f32 %v2465, %v2474
        %v2477 = vadd.f32 %v2458, %v2475
        %v2478 = vadd.f32 %v2459, %v2476
        %s2479 = scalar_lea.vmem %s8, 96
        %v2480 = vld [vmem:[%s2479] sm:$0xff]
        %2482 = vset.pattern.permute.xlu0 0
        %2483 = vperm.xlu0 %2482, %v2480
        %v2484 = vpop.permute.xlu0 %2483
        %v2486 = vlaneseq
        %v2487 = vshrl.u32 %v2486, 7
        %v2488 = vsub.s32 4, %v2487
        %v2489 = vrot.slane %v2242, %v2488
        %v2490 = vlaneseq
        %v2491 = vshrl.u32 %v2490, 7
        %v2492 = vsub.s32 4, %v2491
        %v2493 = vrot.slane %v2243, %v2492
        %v2494 = vmul.f32 %v2484, %v2489
        %v2495 = vmul.f32 %v2484, %v2493
        %v2496 = vadd.f32 %v2477, %v2494
        %v2497 = vadd.f32 %v2478, %v2495
        %s2498 = scalar_lea.vmem %s8, 104
        %v2499 = vld [vmem:[%s2498] sm:$0xff]
        %2501 = vset.pattern.permute.xlu0 0
        %2502 = vperm.xlu0 %2501, %v2499
        %v2503 = vpop.permute.xlu0 %2502
        %v2505 = vlaneseq
        %v2506 = vshrl.u32 %v2505, 7
        %v2507 = vsub.s32 5, %v2506
        %v2508 = vrot.slane %v2242, %v2507
        %v2509 = vlaneseq
        %v2510 = vshrl.u32 %v2509, 7
        %v2511 = vsub.s32 5, %v2510
        %v2512 = vrot.slane %v2243, %v2511
        %v2513 = vmul.f32 %v2503, %v2508
        %v2514 = vmul.f32 %v2503, %v2512
        %v2515 = vadd.f32 %v2496, %v2513
        %v2516 = vadd.f32 %v2497, %v2514
        %s2517 = scalar_lea.vmem %s8, 112
        %v2518 = vld [vmem:[%s2517] sm:$0xff]
        %2520 = vset.pattern.permute.xlu0 0
        %2521 = vperm.xlu0 %2520, %v2518
        %v2522 = vpop.permute.xlu0 %2521
        %v2524 = vlaneseq
        %v2525 = vshrl.u32 %v2524, 7
        %v2526 = vsub.s32 6, %v2525
        %v2527 = vrot.slane %v2242, %v2526
        %v2528 = vlaneseq
        %v2529 = vshrl.u32 %v2528, 7
        %v2530 = vsub.s32 6, %v2529
        %v2531 = vrot.slane %v2243, %v2530
        %v2532 = vmul.f32 %v2522, %v2527
        %v2533 = vmul.f32 %v2522, %v2531
        %v2534 = vadd.f32 %v2515, %v2532
        %v2535 = vadd.f32 %v2516, %v2533
        %s2536 = scalar_lea.vmem %s8, 120
        %v2537 = vld [vmem:[%s2536] sm:$0xff]
        %2539 = vset.pattern.permute.xlu0 0
        %2540 = vperm.xlu0 %2539, %v2537
        %v2541 = vpop.permute.xlu0 %2540
        %v2543 = vlaneseq
        %v2544 = vshrl.u32 %v2543, 7
        %v2545 = vsub.s32 7, %v2544
        %v2546 = vrot.slane %v2242, %v2545
        %v2547 = vlaneseq
        %v2548 = vshrl.u32 %v2547, 7
        %v2549 = vsub.s32 7, %v2548
        %v2550 = vrot.slane %v2243, %v2549
        %v2551 = vmul.f32 %v2541, %v2546
        %v2552 = vmul.f32 %v2541, %v2550
        %v2553 = vadd.f32 %v2534, %v2551
        %v2554 = vadd.f32 %v2535, %v2552
        %s2555 = scalar_lea.vmem %s8, 128
        %v2556 = vld [vmem:[%s2555] sm:$0xff]
        %2558 = vset.pattern.permute.xlu0 0
        %2559 = vperm.xlu0 %2558, %v2556
        %v2560 = vpop.permute.xlu0 %2559
        %v2562 = vlaneseq
        %v2563 = vshrl.u32 %v2562, 7
        %v2564 = vsub.s32 0, %v2563
        %v2565 = vrot.slane %v2244, %v2564
        %v2566 = vlaneseq
        %v2567 = vshrl.u32 %v2566, 7
        %v2568 = vsub.s32 0, %v2567
        %v2569 = vrot.slane %v2245, %v2568
        %v2570 = vmul.f32 %v2560, %v2565
        %v2571 = vmul.f32 %v2560, %v2569
        %v2572 = vadd.f32 %v2553, %v2570
        %v2573 = vadd.f32 %v2554, %v2571
        %s2574 = scalar_lea.vmem %s8, 136
        %v2575 = vld [vmem:[%s2574] sm:$0xff]
        %2577 = vset.pattern.permute.xlu0 0
        %2578 = vperm.xlu0 %2577, %v2575
        %v2579 = vpop.permute.xlu0 %2578
        %v2581 = vlaneseq
        %v2582 = vshrl.u32 %v2581, 7
        %v2583 = vsub.s32 1, %v2582
        %v2584 = vrot.slane %v2244, %v2583
        %v2585 = vlaneseq
        %v2586 = vshrl.u32 %v2585, 7
        %v2587 = vsub.s32 1, %v2586
        %v2588 = vrot.slane %v2245, %v2587
        %v2589 = vmul.f32 %v2579, %v2584
        %v2590 = vmul.f32 %v2579, %v2588
        %v2591 = vadd.f32 %v2572, %v2589
        %v2592 = vadd.f32 %v2573, %v2590
        %s2593 = scalar_lea.vmem %s8, 144
        %v2594 = vld [vmem:[%s2593] sm:$0xff]
        %2596 = vset.pattern.permute.xlu0 0
        %2597 = vperm.xlu0 %2596, %v2594
        %v2598 = vpop.permute.xlu0 %2597
        %v2600 = vlaneseq
        %v2601 = vshrl.u32 %v2600, 7
        %v2602 = vsub.s32 2, %v2601
        %v2603 = vrot.slane %v2244, %v2602
        %v2604 = vlaneseq
        %v2605 = vshrl.u32 %v2604, 7
        %v2606 = vsub.s32 2, %v2605
        %v2607 = vrot.slane %v2245, %v2606
        %v2608 = vmul.f32 %v2598, %v2603
        %v2609 = vmul.f32 %v2598, %v2607
        %v2610 = vadd.f32 %v2591, %v2608
        %v2611 = vadd.f32 %v2592, %v2609
        %s2612 = scalar_lea.vmem %s8, 152
        %v2613 = vld [vmem:[%s2612] sm:$0xff]
        %2615 = vset.pattern.permute.xlu0 0
        %2616 = vperm.xlu0 %2615, %v2613
        %v2617 = vpop.permute.xlu0 %2616
        %v2619 = vlaneseq
        %v2620 = vshrl.u32 %v2619, 7
        %v2621 = vsub.s32 3, %v2620
        %v2622 = vrot.slane %v2244, %v2621
        %v2623 = vlaneseq
        %v2624 = vshrl.u32 %v2623, 7
        %v2625 = vsub.s32 3, %v2624
        %v2626 = vrot.slane %v2245, %v2625
        %v2627 = vmul.f32 %v2617, %v2622
        %v2628 = vmul.f32 %v2617, %v2626
        %v2629 = vadd.f32 %v2610, %v2627
        %v2630 = vadd.f32 %v2611, %v2628
        %s2631 = scalar_lea.vmem %s8, 160
        %v2632 = vld [vmem:[%s2631] sm:$0xff]
        %2634 = vset.pattern.permute.xlu0 0
        %2635 = vperm.xlu0 %2634, %v2632
        %v2636 = vpop.permute.xlu0 %2635
        %v2638 = vlaneseq
        %v2639 = vshrl.u32 %v2638, 7
        %v2640 = vsub.s32 4, %v2639
        %v2641 = vrot.slane %v2244, %v2640
        %v2642 = vlaneseq
        %v2643 = vshrl.u32 %v2642, 7
        %v2644 = vsub.s32 4, %v2643
        %v2645 = vrot.slane %v2245, %v2644
        %v2646 = vmul.f32 %v2636, %v2641
        %v2647 = vmul.f32 %v2636, %v2645
        %v2648 = vadd.f32 %v2629, %v2646
        %v2649 = vadd.f32 %v2630, %v2647
        %s2650 = scalar_lea.vmem %s8, 168
        %v2651 = vld [vmem:[%s2650] sm:$0xff]
        %2653 = vset.pattern.permute.xlu0 0
        %2654 = vperm.xlu0 %2653, %v2651
        %v2655 = vpop.permute.xlu0 %2654
        %v2657 = vlaneseq
        %v2658 = vshrl.u32 %v2657, 7
        %v2659 = vsub.s32 5, %v2658
        %v2660 = vrot.slane %v2244, %v2659
        %v2661 = vlaneseq
        %v2662 = vshrl.u32 %v2661, 7
        %v2663 = vsub.s32 5, %v2662
        %v2664 = vrot.slane %v2245, %v2663
        %v2665 = vmul.f32 %v2655, %v2660
        %v2666 = vmul.f32 %v2655, %v2664
        %v2667 = vadd.f32 %v2648, %v2665
        %v2668 = vadd.f32 %v2649, %v2666
        %s2669 = scalar_lea.vmem %s8, 176
        %v2670 = vld [vmem:[%s2669] sm:$0xff]
        %2672 = vset.pattern.permute.xlu0 0
        %2673 = vperm.xlu0 %2672, %v2670
        %v2674 = vpop.permute.xlu0 %2673
        %v2676 = vlaneseq
        %v2677 = vshrl.u32 %v2676, 7
        %v2678 = vsub.s32 6, %v2677
        %v2679 = vrot.slane %v2244, %v2678
        %v2680 = vlaneseq
        %v2681 = vshrl.u32 %v2680, 7
        %v2682 = vsub.s32 6, %v2681
        %v2683 = vrot.slane %v2245, %v2682
        %v2684 = vmul.f32 %v2674, %v2679
        %v2685 = vmul.f32 %v2674, %v2683
        %v2686 = vadd.f32 %v2667, %v2684
        %v2687 = vadd.f32 %v2668, %v2685
        %s2688 = scalar_lea.vmem %s8, 184
        %v2689 = vld [vmem:[%s2688] sm:$0xff]
        %2691 = vset.pattern.permute.xlu0 0
        %2692 = vperm.xlu0 %2691, %v2689
        %v2693 = vpop.permute.xlu0 %2692
        %v2695 = vlaneseq
        %v2696 = vshrl.u32 %v2695, 7
        %v2697 = vsub.s32 7, %v2696
        %v2698 = vrot.slane %v2244, %v2697
        %v2699 = vlaneseq
        %v2700 = vshrl.u32 %v2699, 7
        %v2701 = vsub.s32 7, %v2700
        %v2702 = vrot.slane %v2245, %v2701
        %v2703 = vmul.f32 %v2693, %v2698
        %v2704 = vmul.f32 %v2693, %v2702
        %v2705 = vadd.f32 %v2686, %v2703
        %v2706 = vadd.f32 %v2687, %v2704
        %s2707 = scalar_lea.vmem %s8, 192
        %v2708 = vld [vmem:[%s2707] sm:$0xff]
        %2710 = vset.pattern.permute.xlu0 0
        %2711 = vperm.xlu0 %2710, %v2708
        %v2712 = vpop.permute.xlu0 %2711
        %v2714 = vlaneseq
        %v2715 = vshrl.u32 %v2714, 7
        %v2716 = vsub.s32 0, %v2715
        %v2717 = vrot.slane %v2246, %v2716
        %v2718 = vlaneseq
        %v2719 = vshrl.u32 %v2718, 7
        %v2720 = vsub.s32 0, %v2719
        %v2721 = vrot.slane %v2247, %v2720
        %v2722 = vmul.f32 %v2712, %v2717
        %v2723 = vmul.f32 %v2712, %v2721
        %v2724 = vadd.f32 %v2705, %v2722
        %v2725 = vadd.f32 %v2706, %v2723
        %s2726 = scalar_lea.vmem %s8, 200
        %v2727 = vld [vmem:[%s2726] sm:$0xff]
        %2729 = vset.pattern.permute.xlu0 0
        %2730 = vperm.xlu0 %2729, %v2727
        %v2731 = vpop.permute.xlu0 %2730
        %v2733 = vlaneseq
        %v2734 = vshrl.u32 %v2733, 7
        %v2735 = vsub.s32 1, %v2734
        %v2736 = vrot.slane %v2246, %v2735
        %v2737 = vlaneseq
        %v2738 = vshrl.u32 %v2737, 7
        %v2739 = vsub.s32 1, %v2738
        %v2740 = vrot.slane %v2247, %v2739
        %v2741 = vmul.f32 %v2731, %v2736
        %v2742 = vmul.f32 %v2731, %v2740
        %v2743 = vadd.f32 %v2724, %v2741
        %v2744 = vadd.f32 %v2725, %v2742
        %s2745 = scalar_lea.vmem %s8, 208
        %v2746 = vld [vmem:[%s2745] sm:$0xff]
        %2748 = vset.pattern.permute.xlu0 0
        %2749 = vperm.xlu0 %2748, %v2746
        %v2750 = vpop.permute.xlu0 %2749
        %v2752 = vlaneseq
        %v2753 = vshrl.u32 %v2752, 7
        %v2754 = vsub.s32 2, %v2753
        %v2755 = vrot.slane %v2246, %v2754
        %v2756 = vlaneseq
        %v2757 = vshrl.u32 %v2756, 7
        %v2758 = vsub.s32 2, %v2757
        %v2759 = vrot.slane %v2247, %v2758
        %v2760 = vmul.f32 %v2750, %v2755
        %v2761 = vmul.f32 %v2750, %v2759
        %v2762 = vadd.f32 %v2743, %v2760
        %v2763 = vadd.f32 %v2744, %v2761
        %s2764 = scalar_lea.vmem %s8, 216
        %v2765 = vld [vmem:[%s2764] sm:$0xff]
        %2767 = vset.pattern.permute.xlu0 0
        %2768 = vperm.xlu0 %2767, %v2765
        %v2769 = vpop.permute.xlu0 %2768
        %v2771 = vlaneseq
        %v2772 = vshrl.u32 %v2771, 7
        %v2773 = vsub.s32 3, %v2772
        %v2774 = vrot.slane %v2246, %v2773
        %v2775 = vlaneseq
        %v2776 = vshrl.u32 %v2775, 7
        %v2777 = vsub.s32 3, %v2776
        %v2778 = vrot.slane %v2247, %v2777
        %v2779 = vmul.f32 %v2769, %v2774
        %v2780 = vmul.f32 %v2769, %v2778
        %v2781 = vadd.f32 %v2762, %v2779
        %v2782 = vadd.f32 %v2763, %v2780
        %s2783 = scalar_lea.vmem %s8, 224
        %v2784 = vld [vmem:[%s2783] sm:$0xff]
        %2786 = vset.pattern.permute.xlu0 0
        %2787 = vperm.xlu0 %2786, %v2784
        %v2788 = vpop.permute.xlu0 %2787
        %v2790 = vlaneseq
        %v2791 = vshrl.u32 %v2790, 7
        %v2792 = vsub.s32 4, %v2791
        %v2793 = vrot.slane %v2246, %v2792
        %v2794 = vlaneseq
        %v2795 = vshrl.u32 %v2794, 7
        %v2796 = vsub.s32 4, %v2795
        %v2797 = vrot.slane %v2247, %v2796
        %v2798 = vmul.f32 %v2788, %v2793
        %v2799 = vmul.f32 %v2788, %v2797
        %v2800 = vadd.f32 %v2781, %v2798
        %v2801 = vadd.f32 %v2782, %v2799
        %s2802 = scalar_lea.vmem %s8, 232
        %v2803 = vld [vmem:[%s2802] sm:$0xff]
        %2805 = vset.pattern.permute.xlu0 0
        %2806 = vperm.xlu0 %2805, %v2803
        %v2807 = vpop.permute.xlu0 %2806
        %v2809 = vlaneseq
        %v2810 = vshrl.u32 %v2809, 7
        %v2811 = vsub.s32 5, %v2810
        %v2812 = vrot.slane %v2246, %v2811
        %v2813 = vlaneseq
        %v2814 = vshrl.u32 %v2813, 7
        %v2815 = vsub.s32 5, %v2814
        %v2816 = vrot.slane %v2247, %v2815
        %v2817 = vmul.f32 %v2807, %v2812
        %v2818 = vmul.f32 %v2807, %v2816
        %v2819 = vadd.f32 %v2800, %v2817
        %v2820 = vadd.f32 %v2801, %v2818
        %s2821 = scalar_lea.vmem %s8, 240
        %v2822 = vld [vmem:[%s2821] sm:$0xff]
        %2824 = vset.pattern.permute.xlu0 0
        %2825 = vperm.xlu0 %2824, %v2822
        %v2826 = vpop.permute.xlu0 %2825
        %v2828 = vlaneseq
        %v2829 = vshrl.u32 %v2828, 7
        %v2830 = vsub.s32 6, %v2829
        %v2831 = vrot.slane %v2246, %v2830
        %v2832 = vlaneseq
        %v2833 = vshrl.u32 %v2832, 7
        %v2834 = vsub.s32 6, %v2833
        %v2835 = vrot.slane %v2247, %v2834
        %v2836 = vmul.f32 %v2826, %v2831
        %v2837 = vmul.f32 %v2826, %v2835
        %v2838 = vadd.f32 %v2819, %v2836
        %v2839 = vadd.f32 %v2820, %v2837
        %s2840 = scalar_lea.vmem %s8, 248
        %v2841 = vld [vmem:[%s2840] sm:$0xff]
        %2843 = vset.pattern.permute.xlu0 0
        %2844 = vperm.xlu0 %2843, %v2841
        %v2845 = vpop.permute.xlu0 %2844
        %v2847 = vlaneseq
        %v2848 = vshrl.u32 %v2847, 7
        %v2849 = vsub.s32 7, %v2848
        %v2850 = vrot.slane %v2246, %v2849
        %v2851 = vlaneseq
        %v2852 = vshrl.u32 %v2851, 7
        %v2853 = vsub.s32 7, %v2852
        %v2854 = vrot.slane %v2247, %v2853
        %v2855 = vmul.f32 %v2845, %v2850
        %v2856 = vmul.f32 %v2845, %v2854
        %v2857 = vadd.f32 %v2838, %v2855
        %v2858 = vadd.f32 %v2839, %v2856
        %s2859 = scalar_lea.vmem %s8, 256
        %v2860 = vld [vmem:[%s2859] sm:$0xff]
        %2862 = vset.pattern.permute.xlu0 0
        %2863 = vperm.xlu0 %2862, %v2860
        %v2864 = vpop.permute.xlu0 %2863
        %v2866 = vlaneseq
        %v2867 = vshrl.u32 %v2866, 7
        %v2868 = vsub.s32 0, %v2867
        %v2869 = vrot.slane %v2248, %v2868
        %v2870 = vlaneseq
        %v2871 = vshrl.u32 %v2870, 7
        %v2872 = vsub.s32 0, %v2871
        %v2873 = vrot.slane %v2249, %v2872
        %v2874 = vmul.f32 %v2864, %v2869
        %v2875 = vmul.f32 %v2864, %v2873
        %v2876 = vadd.f32 %v2857, %v2874
        %v2877 = vadd.f32 %v2858, %v2875
        %s2878 = scalar_lea.vmem %s8, 264
        %v2879 = vld [vmem:[%s2878] sm:$0xff]
        %2881 = vset.pattern.permute.xlu0 0
        %2882 = vperm.xlu0 %2881, %v2879
        %v2883 = vpop.permute.xlu0 %2882
        %v2885 = vlaneseq
        %v2886 = vshrl.u32 %v2885, 7
        %v2887 = vsub.s32 1, %v2886
        %v2888 = vrot.slane %v2248, %v2887
        %v2889 = vlaneseq
        %v2890 = vshrl.u32 %v2889, 7
        %v2891 = vsub.s32 1, %v2890
        %v2892 = vrot.slane %v2249, %v2891
        %v2893 = vmul.f32 %v2883, %v2888
        %v2894 = vmul.f32 %v2883, %v2892
        %v2895 = vadd.f32 %v2876, %v2893
        %v2896 = vadd.f32 %v2877, %v2894
        %s2897 = scalar_lea.vmem %s8, 272
        %v2898 = vld [vmem:[%s2897] sm:$0xff]
        %2900 = vset.pattern.permute.xlu0 0
        %2901 = vperm.xlu0 %2900, %v2898
        %v2902 = vpop.permute.xlu0 %2901
        %v2904 = vlaneseq
        %v2905 = vshrl.u32 %v2904, 7
        %v2906 = vsub.s32 2, %v2905
        %v2907 = vrot.slane %v2248, %v2906
        %v2908 = vlaneseq
        %v2909 = vshrl.u32 %v2908, 7
        %v2910 = vsub.s32 2, %v2909
        %v2911 = vrot.slane %v2249, %v2910
        %v2912 = vmul.f32 %v2902, %v2907
        %v2913 = vmul.f32 %v2902, %v2911
        %v2914 = vadd.f32 %v2895, %v2912
        %v2915 = vadd.f32 %v2896, %v2913
        %s2916 = scalar_lea.vmem %s8, 280
        %v2917 = vld [vmem:[%s2916] sm:$0xff]
        %2919 = vset.pattern.permute.xlu0 0
        %2920 = vperm.xlu0 %2919, %v2917
        %v2921 = vpop.permute.xlu0 %2920
        %v2923 = vlaneseq
        %v2924 = vshrl.u32 %v2923, 7
        %v2925 = vsub.s32 3, %v2924
        %v2926 = vrot.slane %v2248, %v2925
        %v2927 = vlaneseq
        %v2928 = vshrl.u32 %v2927, 7
        %v2929 = vsub.s32 3, %v2928
        %v2930 = vrot.slane %v2249, %v2929
        %v2931 = vmul.f32 %v2921, %v2926
        %v2932 = vmul.f32 %v2921, %v2930
        %v2933 = vadd.f32 %v2914, %v2931
        %v2934 = vadd.f32 %v2915, %v2932
        %s2935 = scalar_lea.vmem %s8, 288
        %v2936 = vld [vmem:[%s2935] sm:$0xff]
        %2938 = vset.pattern.permute.xlu0 0
        %2939 = vperm.xlu0 %2938, %v2936
        %v2940 = vpop.permute.xlu0 %2939
        %v2942 = vlaneseq
        %v2943 = vshrl.u32 %v2942, 7
        %v2944 = vsub.s32 4, %v2943
        %v2945 = vrot.slane %v2248, %v2944
        %v2946 = vlaneseq
        %v2947 = vshrl.u32 %v2946, 7
        %v2948 = vsub.s32 4, %v2947
        %v2949 = vrot.slane %v2249, %v2948
        %v2950 = vmul.f32 %v2940, %v2945
        %v2951 = vmul.f32 %v2940, %v2949
        %v2952 = vadd.f32 %v2933, %v2950
        %v2953 = vadd.f32 %v2934, %v2951
        %s2954 = scalar_lea.vmem %s8, 296
        %v2955 = vld [vmem:[%s2954] sm:$0xff]
        %2957 = vset.pattern.permute.xlu0 0
        %2958 = vperm.xlu0 %2957, %v2955
        %v2959 = vpop.permute.xlu0 %2958
        %v2961 = vlaneseq
        %v2962 = vshrl.u32 %v2961, 7
        %v2963 = vsub.s32 5, %v2962
        %v2964 = vrot.slane %v2248, %v2963
        %v2965 = vlaneseq
        %v2966 = vshrl.u32 %v2965, 7
        %v2967 = vsub.s32 5, %v2966
        %v2968 = vrot.slane %v2249, %v2967
        %v2969 = vmul.f32 %v2959, %v2964
        %v2970 = vmul.f32 %v2959, %v2968
        %v2971 = vadd.f32 %v2952, %v2969
        %v2972 = vadd.f32 %v2953, %v2970
        %s2973 = scalar_lea.vmem %s8, 304
        %v2974 = vld [vmem:[%s2973] sm:$0xff]
        %2976 = vset.pattern.permute.xlu0 0
        %2977 = vperm.xlu0 %2976, %v2974
        %v2978 = vpop.permute.xlu0 %2977
        %v2980 = vlaneseq
        %v2981 = vshrl.u32 %v2980, 7
        %v2982 = vsub.s32 6, %v2981
        %v2983 = vrot.slane %v2248, %v2982
        %v2984 = vlaneseq
        %v2985 = vshrl.u32 %v2984, 7
        %v2986 = vsub.s32 6, %v2985
        %v2987 = vrot.slane %v2249, %v2986
        %v2988 = vmul.f32 %v2978, %v2983
        %v2989 = vmul.f32 %v2978, %v2987
        %v2990 = vadd.f32 %v2971, %v2988
        %v2991 = vadd.f32 %v2972, %v2989
        %s2992 = scalar_lea.vmem %s8, 312
        %v2993 = vld [vmem:[%s2992] sm:$0xff]
        %2995 = vset.pattern.permute.xlu0 0
        %2996 = vperm.xlu0 %2995, %v2993
        %v2997 = vpop.permute.xlu0 %2996
        %v2999 = vlaneseq
        %v3000 = vshrl.u32 %v2999, 7
        %v3001 = vsub.s32 7, %v3000
        %v3002 = vrot.slane %v2248, %v3001
        %v3003 = vlaneseq
        %v3004 = vshrl.u32 %v3003, 7
        %v3005 = vsub.s32 7, %v3004
        %v3006 = vrot.slane %v2249, %v3005
        %v3007 = vmul.f32 %v2997, %v3002
        %v3008 = vmul.f32 %v2997, %v3006
        %v3009 = vadd.f32 %v2990, %v3007
        %v3010 = vadd.f32 %v2991, %v3008
        %s3011 = scalar_lea.vmem %s8, 320
        %v3012 = vld [vmem:[%s3011] sm:$0xff]
        %3014 = vset.pattern.permute.xlu0 0
        %3015 = vperm.xlu0 %3014, %v3012
        %v3016 = vpop.permute.xlu0 %3015
        %v3018 = vlaneseq
        %v3019 = vshrl.u32 %v3018, 7
        %v3020 = vsub.s32 0, %v3019
        %v3021 = vrot.slane %v2250, %v3020
        %v3022 = vlaneseq
        %v3023 = vshrl.u32 %v3022, 7
        %v3024 = vsub.s32 0, %v3023
        %v3025 = vrot.slane %v2251, %v3024
        %v3026 = vmul.f32 %v3016, %v3021
        %v3027 = vmul.f32 %v3016, %v3025
        %v3028 = vadd.f32 %v3009, %v3026
        %v3029 = vadd.f32 %v3010, %v3027
        %s3030 = scalar_lea.vmem %s8, 328
        %v3031 = vld [vmem:[%s3030] sm:$0xff]
        %3033 = vset.pattern.permute.xlu0 0
        %3034 = vperm.xlu0 %3033, %v3031
        %v3035 = vpop.permute.xlu0 %3034
        %v3037 = vlaneseq
        %v3038 = vshrl.u32 %v3037, 7
        %v3039 = vsub.s32 1, %v3038
        %v3040 = vrot.slane %v2250, %v3039
        %v3041 = vlaneseq
        %v3042 = vshrl.u32 %v3041, 7
        %v3043 = vsub.s32 1, %v3042
        %v3044 = vrot.slane %v2251, %v3043
        %v3045 = vmul.f32 %v3035, %v3040
        %v3046 = vmul.f32 %v3035, %v3044
        %v3047 = vadd.f32 %v3028, %v3045
        %v3048 = vadd.f32 %v3029, %v3046
        %s3049 = scalar_lea.vmem %s8, 336
        %v3050 = vld [vmem:[%s3049] sm:$0xff]
        %3052 = vset.pattern.permute.xlu0 0
        %3053 = vperm.xlu0 %3052, %v3050
        %v3054 = vpop.permute.xlu0 %3053
        %v3056 = vlaneseq
        %v3057 = vshrl.u32 %v3056, 7
        %v3058 = vsub.s32 2, %v3057
        %v3059 = vrot.slane %v2250, %v3058
        %v3060 = vlaneseq
        %v3061 = vshrl.u32 %v3060, 7
        %v3062 = vsub.s32 2, %v3061
        %v3063 = vrot.slane %v2251, %v3062
        %v3064 = vmul.f32 %v3054, %v3059
        %v3065 = vmul.f32 %v3054, %v3063
        %v3066 = vadd.f32 %v3047, %v3064
        %v3067 = vadd.f32 %v3048, %v3065
        %s3068 = scalar_lea.vmem %s8, 344
        %v3069 = vld [vmem:[%s3068] sm:$0xff]
        %3071 = vset.pattern.permute.xlu0 0
        %3072 = vperm.xlu0 %3071, %v3069
        %v3073 = vpop.permute.xlu0 %3072
        %v3075 = vlaneseq
        %v3076 = vshrl.u32 %v3075, 7
        %v3077 = vsub.s32 3, %v3076
        %v3078 = vrot.slane %v2250, %v3077
        %v3079 = vlaneseq
        %v3080 = vshrl.u32 %v3079, 7
        %v3081 = vsub.s32 3, %v3080
        %v3082 = vrot.slane %v2251, %v3081
        %v3083 = vmul.f32 %v3073, %v3078
        %v3084 = vmul.f32 %v3073, %v3082
        %v3085 = vadd.f32 %v3066, %v3083
        %v3086 = vadd.f32 %v3067, %v3084
        %s3087 = scalar_lea.vmem %s8, 352
        %v3088 = vld [vmem:[%s3087] sm:$0xff]
        %3090 = vset.pattern.permute.xlu0 0
        %3091 = vperm.xlu0 %3090, %v3088
        %v3092 = vpop.permute.xlu0 %3091
        %v3094 = vlaneseq
        %v3095 = vshrl.u32 %v3094, 7
        %v3096 = vsub.s32 4, %v3095
        %v3097 = vrot.slane %v2250, %v3096
        %v3098 = vlaneseq
        %v3099 = vshrl.u32 %v3098, 7
        %v3100 = vsub.s32 4, %v3099
        %v3101 = vrot.slane %v2251, %v3100
        %v3102 = vmul.f32 %v3092, %v3097
        %v3103 = vmul.f32 %v3092, %v3101
        %v3104 = vadd.f32 %v3085, %v3102
        %v3105 = vadd.f32 %v3086, %v3103
        %s3106 = scalar_lea.vmem %s8, 360
        %v3107 = vld [vmem:[%s3106] sm:$0xff]
        %3109 = vset.pattern.permute.xlu0 0
        %3110 = vperm.xlu0 %3109, %v3107
        %v3111 = vpop.permute.xlu0 %3110
        %v3113 = vlaneseq
        %v3114 = vshrl.u32 %v3113, 7
        %v3115 = vsub.s32 5, %v3114
        %v3116 = vrot.slane %v2250, %v3115
        %v3117 = vlaneseq
        %v3118 = vshrl.u32 %v3117, 7
        %v3119 = vsub.s32 5, %v3118
        %v3120 = vrot.slane %v2251, %v3119
        %v3121 = vmul.f32 %v3111, %v3116
        %v3122 = vmul.f32 %v3111, %v3120
        %v3123 = vadd.f32 %v3104, %v3121
        %v3124 = vadd.f32 %v3105, %v3122
        %s3125 = scalar_lea.vmem %s8, 368
        %v3126 = vld [vmem:[%s3125] sm:$0xff]
        %3128 = vset.pattern.permute.xlu0 0
        %3129 = vperm.xlu0 %3128, %v3126
        %v3130 = vpop.permute.xlu0 %3129
        %v3132 = vlaneseq
        %v3133 = vshrl.u32 %v3132, 7
        %v3134 = vsub.s32 6, %v3133
        %v3135 = vrot.slane %v2250, %v3134
        %v3136 = vlaneseq
        %v3137 = vshrl.u32 %v3136, 7
        %v3138 = vsub.s32 6, %v3137
        %v3139 = vrot.slane %v2251, %v3138
        %v3140 = vmul.f32 %v3130, %v3135
        %v3141 = vmul.f32 %v3130, %v3139
        %v3142 = vadd.f32 %v3123, %v3140
        %v3143 = vadd.f32 %v3124, %v3141
        %s3144 = scalar_lea.vmem %s8, 376
        %v3145 = vld [vmem:[%s3144] sm:$0xff]
        %3147 = vset.pattern.permute.xlu0 0
        %3148 = vperm.xlu0 %3147, %v3145
        %v3149 = vpop.permute.xlu0 %3148
        %v3151 = vlaneseq
        %v3152 = vshrl.u32 %v3151, 7
        %v3153 = vsub.s32 7, %v3152
        %v3154 = vrot.slane %v2250, %v3153
        %v3155 = vlaneseq
        %v3156 = vshrl.u32 %v3155, 7
        %v3157 = vsub.s32 7, %v3156
        %v3158 = vrot.slane %v2251, %v3157
        %v3159 = vmul.f32 %v3149, %v3154
        %v3160 = vmul.f32 %v3149, %v3158
        %v3161 = vadd.f32 %v3142, %v3159
        %v3162 = vadd.f32 %v3143, %v3160
        %v3163 = vld [vmem:[%s9] sm:$0xff]
        %3165 = vset.pattern.permute.xlu0 0
        %3166 = vperm.xlu0 %3165, %v3163
        %v3167 = vpop.permute.xlu0 %3166
        %v3169 = vadd.f32 %v3161, %v3167
        %v3170 = vadd.f32 %v3162, %v3167
        %3171 = vst [vmem:[%s352] sm:$0xff] %v3169
        %3172 = vst [vmem:[%s352 + $0x8] sm:$0xff] %v3170
        %s3173 = sand.u32 %s247, 1
        %s3174 = scalar_lea.sflag [#allocation3], %s3173
        %s3175 = sand.u32 %s247, 1
        %s3176 = smul.addr %s3175, 16
        %s3177 = scalar_lea.vmem [#allocation2], %s3176
        // Predicated region
        $region61: #{tpu_custom_call.1} parent=59 // pred_check
          %p3178 = pneg %p257
        $region62: #{tpu_custom_call.1} parent=59 // pred_check_branch
          %3180 = sbr.rel (%p3178) target = $region64
        $region63: #{tpu_custom_call.1} parent=59 // pred_region
          %s3182 = ssub.s32 256, 256
          %3183 = vsyncadd %s3174, %s3182
          %s3184 = smul.addr %s24, 2
          %s3185 = smul.addr %s3184, 128
          %s3186 = scalar_lea.hbm %s10, %s3185
          %s3188 = sshll.u32 %s3177, 4
          %s3189 = int_to_ptr.vmem [resolvable:$true] %s3188
          %3191 = dma.vmem_to_hbm [thread:$0]  %s3189, 256, %s3186, %s3174
        $region64: #{tpu_custom_call.1} parent=59 // pred_fallthru
          _
      $region60: #{tpu_custom_call.1} parent=5 // pred_fallthru
        _
      %p3192 = scmp.le.s32.totalorder 2, %s19
      // Predicated region
      $region65: #{tpu_custom_call.1} parent=5 // pred_check
        %p3193 = pneg %p3192
      $region66: #{tpu_custom_call.1} parent=5 // pred_check_branch
        %3195 = sbr.rel (%p3193) target = $region68
      $region67: #{tpu_custom_call.1} parent=5 // pred_region
        %s3196 = ssub.s32 %s19, 2
        // Predicated region
        $region69: #{tpu_custom_call.1} parent=67 // pred_check
          %p3197 = pneg %p263
        $region70: #{tpu_custom_call.1} parent=67 // pred_check_branch
          %3199 = sbr.rel (%p3197) target = $region72
        $region71: #{tpu_custom_call.1} parent=67 // pred_region
          %s3200 = sand.u32 %s248, 1
          %s3201 = scalar_lea.sflag [#allocation3], %s3200
          %s3202 = sand.u32 %s248, 1
          %s3203 = smul.addr %s3202, 16
          %s3204 = scalar_lea.vmem [#allocation2], %s3203
          %3205 = dma.done %s3201, 256
        $region72: #{tpu_custom_call.1} parent=67 // pred_fallthru
          _
      $region68: #{tpu_custom_call.1} parent=5 // pred_fallthru
        _
    $region6: #{tpu_custom_call.1} parent=1 // loop_footer
      %s23 = sadd.s32 1, %s19
    $region7: #{tpu_custom_call.1} parent=1 // loop_footer_branch
      %18 = sbr.rel target = $region3
    $region8: #{tpu_custom_call.1} parent=1 // loop_exit
      _
    %3206 = vsyncpa [#allocation3], 1
    %s3207 = scalar_lea.sflag [#allocation3], 1
    %3208 = vsyncpa %s3207, 1

</llo_original>
